<compile_context>
chip_gen: v7x
topology: tpu7x:2x2x1
jax: 0.10.0
libtpu: 0.0.40
codegen_flags: <defaults>
</compile_context>

<pallas_src>
import jax
import jax.numpy as jnp
from jax import lax
from jax.experimental import pallas as pl
from jax.experimental.pallas import tpu as pltpu


def _sigmoid(x):
    # exact form (same in kernel & reference) to keep 1e-3 parity
    return 1.0 / (1.0 + jnp.exp(-x))


# ------------------------------ fused kernel -------------------------------

def _make_kernel(*, L, T, Np, D, H, OP, offs):
    """Fused BeamEnhancer kernel for static config. Np = padded batch (mult of 8)."""
    G4 = 4 * H
    G8 = 8 * H
    N2 = 2 * Np          # row-stacked [h_fwd ; h_bwd]

    def kernel(x_ref, w_ref, out_ref):
        # hoisted lane mask selecting the g-gate quarter (cols [2H, 3H))
        lane = lax.broadcasted_iota(jnp.int32, (N2, G4), 1)
        g_mask = (lane >= 2 * H) & (lane < 3 * H)

        x2d = x_ref[...]                                    # [T*Np, D] time-major rows

        hf_seq = None                                       # [T*Np, H] fwd hidden seq
        hb_seq = None                                       # [T*Np, H] bwd hidden seq

        for l in range(L):
            # ---- batched input projection for BOTH directions at once ----
            ob = offs[f"b{l}"]
            b_row = w_ref[ob:ob + 1, :]                     # [1, 8H] (b_ih+b_hh, fwd|bwd)
            if l == 0:
                ow = offs["wih0"]
                wih = w_ref[ow:ow + D, :]                   # [D, 8H]
                xproj = jnp.dot(x2d, wih,
                                preferred_element_type=jnp.float32) + b_row
            else:
                oa, obb = offs[f"wihA{l}"], offs[f"wihB{l}"]
                wA = w_ref[oa:oa + H, :]                    # prev-fwd-feature rows, fwd|bwd
                wB = w_ref[obb:obb + H, :]                  # prev-bwd-feature rows, fwd|bwd
                xproj = (jnp.dot(hf_seq, wA, preferred_element_type=jnp.float32)
                         + jnp.dot(hb_seq, wB, preferred_element_type=jnp.float32)
                         + b_row)                           # [T*Np, 8H]
            oh = offs[f"whh{l}"]
            whh = w_ref[oh:oh + H, :]                       # [H, 8H] = [Whh_f | Whh_b]

            # ---- both directions in lockstep (one MXU push per step) ----
            h = jnp.zeros((N2, H), jnp.float32)             # rows 0:Np fwd, Np:2Np bwd
            c = jnp.zeros((N2, H), jnp.float32)
            fwd_steps = [None] * T
            bwd_steps = [None] * T
            for s in range(T):                              # static unroll (T small)
                tf, tb = s, T - 1 - s
                mm = jnp.dot(h, whh, preferred_element_type=jnp.float32)  # [2Np, 8H]
                g_f = mm[0:Np, 0:G4] + xproj[tf * Np:(tf + 1) * Np, 0:G4]
                g_b = mm[Np:N2, G4:G8] + xproj[tb * Np:(tb + 1) * Np, G4:G8]
                gates = jnp.concatenate([g_f, g_b], axis=0)               # [2Np, 4H]
                # 2 full-width transcendental passes + g-gate lane select
                act = jnp.where(g_mask, jnp.tanh(gates), _sigmoid(gates))
                i_g = act[:, 0:H]
                f_g = act[:, H:2 * H]
                g_g = act[:, 2 * H:3 * H]
                o_g = act[:, 3 * H:4 * H]
                c = f_g * c + i_g * g_g
                h = o_g * jnp.tanh(c)
                fwd_steps[tf] = h[0:Np, :]
                bwd_steps[tb] = h[Np:N2, :]
            hf_seq = jnp.concatenate(fwd_steps, axis=0)     # [T*Np, H]
            hb_seq = jnp.concatenate(bwd_steps, axis=0)

        # ---- FC + sigmoid, lane-dense output (O zero-padded to OP=128) ----
        of, obk, obf = offs["wfc_f"], offs["wfc_b"], offs["bfc"]
        wfc_f = w_ref[of:of + H, 0:OP]
        wfc_b = w_ref[obk:obk + H, 0:OP]
        bfc = w_ref[obf:obf + 1, 0:OP]
        logits = (jnp.dot(hf_seq, wfc_f, preferred_element_type=jnp.float32)
                  + jnp.dot(hb_seq, wfc_b, preferred_element_type=jnp.float32)
                  + bfc)
        out_ref[...] = _sigmoid(logits).astype(out_ref.dtype)            # one full store

    return kernel


# --------------------------- weight slab packing ----------------------------

def _pack_weight_slab(params, *, D, H, O, L, OP):
    """Pack every weight/bias into ONE [rows, 8H] f32 slab (8-row aligned sections)."""
    G8 = 8 * H
    blocks, offs = [], {}
    cur = 0

    def add(name, mat):
        nonlocal cur
        mat = jnp.asarray(mat, jnp.float32)
        r = mat.shape[0]
        offs[name] = cur
        rp = ((r + 7) // 8) * 8
        if rp > r:
            mat = jnp.concatenate([mat, jnp.zeros((rp - r, G8), jnp.float32)], axis=0)
        blocks.append(mat)
        cur += rp

    for l in range(L):
        (wih_f, whh_f, b_f), (wih_b, whh_b, b_b) = params["lstm"][l]
        if l == 0:
            add("wih0", jnp.concatenate([wih_f, wih_b], axis=1))            # [D, 8H]
        else:
            add(f"wihA{l}", jnp.concatenate([wih_f[:H], wih_b[:H]], axis=1))  # prev-fwd rows
            add(f"wihB{l}", jnp.concatenate([wih_f[H:], wih_b[H:]], axis=1))  # prev-bwd rows
        add(f"whh{l}", jnp.concatenate([whh_f, whh_b], axis=1))             # [H, 8H]
        add(f"b{l}", jnp.concatenate([b_f, b_b]).reshape(1, G8))            # folded biases

    wfc, bfc = params["wfc"], params["bfc"]                                  # [2H,O], [O]
    pad_cols = G8 - OP
    wfc_pad = jnp.zeros((2 * H, OP), jnp.float32).at[:, :O].set(wfc)
    add("wfc_f", jnp.concatenate([wfc_pad[:H],
                                  jnp.zeros((H, pad_cols), jnp.float32)], axis=1))
    add("wfc_b", jnp.concatenate([wfc_pad[H:],
                                  jnp.zeros((H, pad_cols), jnp.float32)], axis=1))
    add("bfc", jnp.zeros((1, G8), jnp.float32).at[0, :O].set(bfc))

    return jnp.concatenate(blocks, axis=0), offs


# -------------------------------- wrapper -----------------------------------

def beam_enhancer_forward(x, params, *, hidden_size, num_layers):
    """x: [N, T, D] (batch_first) -> [N, T, O], matching BeamEnhancer.forward (eval)."""
    N, T, D = x.shape
    H, L = hidden_size, num_layers
    O = params["bfc"].shape[0]
    Np = ((N + 7) // 8) * 8                    # pad batch to 8 sublanes
    OP = ((O + 127) // 128) * 128              # lane-dense output width
    assert OP <= 8 * H, "output padding assumes padded O <= 8*hidden"

    # time-major 2D layout, batch padded: row t*Np + n  <->  (time t, batch n)
    x_t = jnp.transpose(x, (1, 0, 2)).astype(jnp.float32)              # [T, N, D]
    x_p = jnp.zeros((T, Np, D), jnp.float32).at[:, :N, :].set(x_t)
    x2d = x_p.reshape(T * Np, D)

    slab, offs = _pack_weight_slab(params, D=D, H=H, O=O, L=L, OP=OP)

    # advisory cost estimate for XLA scheduling
    flops, trans = 0, 0
    for l in range(L):
        if l == 0:
            flops += 2 * (T * Np) * D * (8 * H)
        else:
            flops += 2 * 2 * (T * Np) * H * (8 * H)
        flops += T * 2 * (2 * Np) * H * (8 * H)
        trans += T * (2 * (2 * Np) * (4 * H) + (2 * Np) * H)
    flops += 2 * 2 * (T * Np) * H * OP
    trans += (T * Np) * OP
    bytes_accessed = 4 * (int(x2d.size) + int(slab.size) + T * Np * OP)

    out2d = pl.pallas_call(
        _make_kernel(L=L, T=T, Np=Np, D=D, H=H, OP=OP, offs=offs),
        grid=(1,),
        in_specs=[pl.BlockSpec((T * Np, D), lambda i: (0, 0)),
                  pl.BlockSpec(tuple(slab.shape), lambda i: (0, 0))],
        out_specs=pl.BlockSpec((T * Np, OP), lambda i: (0, 0)),
        out_shape=jax.ShapeDtypeStruct((T * Np, OP), jnp.float32),
        compiler_params=pltpu.CompilerParams(dimension_semantics=("arbitrary",)),
        cost_estimate=pl.CostEstimate(flops=flops,
                                      transcendentals=trans,
                                      bytes_accessed=bytes_accessed),
    )(x2d, slab)

    out = out2d[:, :O].reshape(T, Np, O)[:, :N, :]                      # drop padding
    return jnp.transpose(out, (1, 0, 2))                                # [N, T, O]


# --------------------------- parameters / reference -------------------------

def init_params(key, D, H, O, L):
    """PyTorch-style LSTM params; bias = b_ih + b_hh pre-folded. Gate order i,f,g,o."""
    s = 1.0 / jnp.sqrt(jnp.float32(H))
    params = {"lstm": []}
    for l in range(L):
        d_in = D if l == 0 else 2 * H
        dirs = []
        for d in range(2):
            key, k1, k2, k3 = jax.random.split(key, 4)
            wih = jax.random.uniform(k1, (d_in, 4 * H), jnp.float32, -s, s)
            whh = jax.random.uniform(k2, (H, 4 * H), jnp.float32, -s, s)
            b = jax.random.uniform(k3, (4 * H,), jnp.float32, -s, s)
            dirs.append((wih, whh, b))
        params["lstm"].append(dirs)
    key, k1, k2 = jax.random.split(key, 3)
    params["wfc"] = jax.random.uniform(k1, (2 * H, O), jnp.float32, -s, s)
    params["bfc"] = jax.random.uniform(k2, (O,), jnp.float32, -s, s)
    return params


def reference_forward(x, params, *, hidden_size, num_layers):
    """Pure-JAX bidirectional LSTM + FC + sigmoid (eval mode) for correctness check."""
    N, T, _ = x.shape
    H, L = hidden_size, num_layers
    layer_in = x
    for l in range(L):
        outs = []
        for d in range(2):
            wih, whh, b = params["lstm"][l][d]
            h = jnp.zeros((N, H), jnp.float32)
            c = jnp.zeros((N, H), jnp.float32)
            seq = [None] * T
            order = range(T - 1, -1, -1) if d == 1 else range(T)
            for t in order:
                gates = layer_in[:, t, :] @ wih + h @ whh + b
                i_g = _sigmoid(gates[:, 0:H])
                f_g = _sigmoid(gates[:, H:2 * H])
                g_g = jnp.tanh(gates[:, 2 * H:3 * H])
                o_g = _sigmoid(gates[:, 3 * H:4 * H])
                c = f_g * c + i_g * g_g
                h = o_g * jnp.tanh(c)
                seq[t] = h
            outs.append(jnp.stack(seq, axis=1))            # [N, T, H]
        layer_in = jnp.concatenate(outs, axis=-1)          # [N, T, 2H]
    logits = layer_in @ params["wfc"] + params["bfc"]
    return _sigmoid(logits)


if __name__ == "__main__":
    key = jax.random.PRNGKey(0)
    N, T, D, H, O, L = 2, 8, 16, 32, 8, 2                  # batch, seq, input, hidden, out, layers

    params = init_params(jax.random.fold_in(key, 1), D, H, O, L)
    x = jax.random.normal(jax.random.fold_in(key, 2), (N, T, D), jnp.float32)

    fwd = jax.jit(lambda xx: beam_enhancer_forward(xx, params,
                                                   hidden_size=H, num_layers=L))
    out = jax.block_until_ready(fwd(x))
    ref = jax.block_until_ready(reference_forward(x, params,
                                                  hidden_size=H, num_layers=L))

    assert out.shape == (N, T, O), out.shape
    max_err = float(jnp.max(jnp.abs(out - ref)))
    assert jnp.allclose(out, ref, rtol=1e-3, atol=1e-3), max_err
    print("KERNEL_OK")
</pallas_src>

<mosaic_0001>
module attributes {stable_mosaic.version = 11 : i64} {
  func.func @kernel(%arg0: i32, %arg1: memref<64x16xf32, #tpu.memory_space<vmem>>, %arg2: memref<232x256xf32, #tpu.memory_space<vmem>>, %arg3: memref<64x128xf32, #tpu.memory_space<vmem>>) attributes {dimension_semantics = [#tpu.dimension_semantics<arbitrary>], iteration_bounds = array<i64: 1>, scalar_prefetch = 0 : i64, scratch_operands = 0 : i64, tpu.core_type = #tpu.core_type<tc>, window_params = [{pipeline_mode = #tpu.pipeline_mode<synchronous>, transform_indices = @transform_0, window_bounds = array<i64: 64, 16>}, {pipeline_mode = #tpu.pipeline_mode<synchronous>, transform_indices = @transform_1, window_bounds = array<i64: 232, 256>}, {pipeline_mode = #tpu.pipeline_mode<synchronous>, transform_indices = @transform_2, window_bounds = array<i64: 64, 128>}]} {
    %0 = tpu.iota {dimensions = array<i32: 1>} : vector<16x128xi32>
    %c64_i32 = arith.constant 64 : i32
    %1 = vector.broadcast %c64_i32 : i32 to vector<16x128xi32>
    %2 = arith.cmpi sge, %0, %1 : vector<16x128xi32>
    %c96_i32 = arith.constant 96 : i32
    %3 = vector.broadcast %c96_i32 : i32 to vector<16x128xi32>
    %4 = arith.cmpi slt, %0, %3 : vector<16x128xi32>
    %5 = arith.andi %2, %4 : vector<16x128xi1>
    %c0 = arith.constant 0 : index
    %c0_0 = arith.constant 0 : index
    %6 = vector.load %arg1[%c0, %c0_0] : memref<64x16xf32, #tpu.memory_space<vmem>>, vector<64x16xf32>
    %c48 = arith.constant 48 : index
    %c0_1 = arith.constant 0 : index
    %7 = vector.load %arg2[%c48, %c0_1] : memref<232x256xf32, #tpu.memory_space<vmem>>, vector<1x256xf32>
    %c0_2 = arith.constant 0 : index
    %c0_3 = arith.constant 0 : index
    %8 = vector.load %arg2[%c0_2, %c0_3] : memref<232x256xf32, #tpu.memory_space<vmem>>, vector<16x256xf32>
    %cst = arith.constant dense<0.000000e+00> : vector<64x256xf32>
    %9 = tpu.matmul %6, %8, %cst {dimension_numbers = #tpu.dot_dimension_numbers<[1], [0], [0], [1], [0, 0, 1, 1], [], []>} : vector<64x16xf32>, vector<16x256xf32>, vector<64x256xf32> -> vector<64x256xf32>
    %10 = vector.broadcast %7 : vector<1x256xf32> to vector<64x256xf32>
    %11 = arith.addf %9, %10 : vector<64x256xf32>
    %c16 = arith.constant 16 : index
    %c0_4 = arith.constant 0 : index
    %12 = vector.load %arg2[%c16, %c0_4] : memref<232x256xf32, #tpu.memory_space<vmem>>, vector<32x256xf32>
    %cst_5 = arith.constant 0.000000e+00 : f32
    %13 = vector.broadcast %cst_5 : f32 to vector<16x32xf32>
    %cst_6 = arith.constant 0.000000e+00 : f32
    %14 = vector.broadcast %cst_6 : f32 to vector<16x32xf32>
    %cst_7 = arith.constant dense<0.000000e+00> : vector<16x256xf32>
    %15 = tpu.matmul %13, %12, %cst_7 {dimension_numbers = #tpu.dot_dimension_numbers<[1], [0], [0], [1], [0, 0, 1, 1], [], []>} : vector<16x32xf32>, vector<32x256xf32>, vector<16x256xf32> -> vector<16x256xf32>
    %16 = vector.extract_strided_slice %15 {offsets = [0, 0], sizes = [8, 128], strides = [1, 1]} : vector<16x256xf32> to vector<8x128xf32>
    %17 = vector.extract_strided_slice %11 {offsets = [0, 0], sizes = [8, 128], strides = [1, 1]} : vector<64x256xf32> to vector<8x128xf32>
    %18 = arith.addf %16, %17 : vector<8x128xf32>
    %19 = vector.extract_strided_slice %15 {offsets = [8, 128], sizes = [8, 128], strides = [1, 1]} : vector<16x256xf32> to vector<8x128xf32>
    %20 = vector.extract_strided_slice %11 {offsets = [56, 128], sizes = [8, 128], strides = [1, 1]} : vector<64x256xf32> to vector<8x128xf32>
    %21 = arith.addf %19, %20 : vector<8x128xf32>
    %22 = tpu.concatenate %18, %21 in 0 : vector<8x128xf32>, vector<8x128xf32> -> vector<16x128xf32>
    %23 = math.tanh %22 : vector<16x128xf32>
    %cst_8 = arith.constant 0.000000e+00 : f32
    %24 = vector.broadcast %cst_8 : f32 to vector<16x128xf32>
    %25 = arith.subf %24, %22 : vector<16x128xf32>
    %26 = math.exp %25 : vector<16x128xf32>
    %cst_9 = arith.constant 1.000000e+00 : f32
    %27 = vector.broadcast %cst_9 : f32 to vector<16x128xf32>
    %28 = arith.addf %27, %26 : vector<16x128xf32>
    %cst_10 = arith.constant 1.000000e+00 : f32
    %29 = vector.broadcast %cst_10 : f32 to vector<16x128xf32>
    %30 = arith.divf %29, %28 : vector<16x128xf32>
    %31 = arith.select %5, %23, %30 : vector<16x128xi1>, vector<16x128xf32>
    %32 = vector.extract_strided_slice %31 {offsets = [0, 0], sizes = [16, 32], strides = [1, 1]} : vector<16x128xf32> to vector<16x32xf32>
    %33 = vector.extract_strided_slice %31 {offsets = [0, 32], sizes = [16, 32], strides = [1, 1]} : vector<16x128xf32> to vector<16x32xf32>
    %34 = vector.extract_strided_slice %31 {offsets = [0, 64], sizes = [16, 32], strides = [1, 1]} : vector<16x128xf32> to vector<16x32xf32>
    %35 = vector.extract_strided_slice %31 {offsets = [0, 96], sizes = [16, 32], strides = [1, 1]} : vector<16x128xf32> to vector<16x32xf32>
    %36 = arith.mulf %33, %14 : vector<16x32xf32>
    %37 = arith.mulf %32, %34 : vector<16x32xf32>
    %38 = arith.addf %36, %37 : vector<16x32xf32>
    %39 = math.tanh %38 : vector<16x32xf32>
    %40 = arith.mulf %35, %39 : vector<16x32xf32>
    %41 = vector.extract_strided_slice %40 {offsets = [0, 0], sizes = [8, 32], strides = [1, 1]} : vector<16x32xf32> to vector<8x32xf32>
    %42 = vector.extract_strided_slice %40 {offsets = [8, 0], sizes = [8, 32], strides = [1, 1]} : vector<16x32xf32> to vector<8x32xf32>
    %cst_11 = arith.constant dense<0.000000e+00> : vector<16x256xf32>
    %43 = tpu.matmul %40, %12, %cst_11 {dimension_numbers = #tpu.dot_dimension_numbers<[1], [0], [0], [1], [0, 0, 1, 1], [], []>} : vector<16x32xf32>, vector<32x256xf32>, vector<16x256xf32> -> vector<16x256xf32>
    %44 = vector.extract_strided_slice %43 {offsets = [0, 0], sizes = [8, 128], strides = [1, 1]} : vector<16x256xf32> to vector<8x128xf32>
    %45 = vector.extract_strided_slice %11 {offsets = [8, 0], sizes = [8, 128], strides = [1, 1]} : vector<64x256xf32> to vector<8x128xf32>
    %46 = arith.addf %44, %45 : vector<8x128xf32>
    %47 = vector.extract_strided_slice %43 {offsets = [8, 128], sizes = [8, 128], strides = [1, 1]} : vector<16x256xf32> to vector<8x128xf32>
    %48 = vector.extract_strided_slice %11 {offsets = [48, 128], sizes = [8, 128], strides = [1, 1]} : vector<64x256xf32> to vector<8x128xf32>
    %49 = arith.addf %47, %48 : vector<8x128xf32>
    %50 = tpu.concatenate %46, %49 in 0 : vector<8x128xf32>, vector<8x128xf32> -> vector<16x128xf32>
    %51 = math.tanh %50 : vector<16x128xf32>
    %cst_12 = arith.constant 0.000000e+00 : f32
    %52 = vector.broadcast %cst_12 : f32 to vector<16x128xf32>
    %53 = arith.subf %52, %50 : vector<16x128xf32>
    %54 = math.exp %53 : vector<16x128xf32>
    %cst_13 = arith.constant 1.000000e+00 : f32
    %55 = vector.broadcast %cst_13 : f32 to vector<16x128xf32>
    %56 = arith.addf %55, %54 : vector<16x128xf32>
    %cst_14 = arith.constant 1.000000e+00 : f32
    %57 = vector.broadcast %cst_14 : f32 to vector<16x128xf32>
    %58 = arith.divf %57, %56 : vector<16x128xf32>
    %59 = arith.select %5, %51, %58 : vector<16x128xi1>, vector<16x128xf32>
    %60 = vector.extract_strided_slice %59 {offsets = [0, 0], sizes = [16, 32], strides = [1, 1]} : vector<16x128xf32> to vector<16x32xf32>
    %61 = vector.extract_strided_slice %59 {offsets = [0, 32], sizes = [16, 32], strides = [1, 1]} : vector<16x128xf32> to vector<16x32xf32>
    %62 = vector.extract_strided_slice %59 {offsets = [0, 64], sizes = [16, 32], strides = [1, 1]} : vector<16x128xf32> to vector<16x32xf32>
    %63 = vector.extract_strided_slice %59 {offsets = [0, 96], sizes = [16, 32], strides = [1, 1]} : vector<16x128xf32> to vector<16x32xf32>
    %64 = arith.mulf %61, %38 : vector<16x32xf32>
    %65 = arith.mulf %60, %62 : vector<16x32xf32>
    %66 = arith.addf %64, %65 : vector<16x32xf32>
    %67 = math.tanh %66 : vector<16x32xf32>
    %68 = arith.mulf %63, %67 : vector<16x32xf32>
    %69 = vector.extract_strided_slice %68 {offsets = [0, 0], sizes = [8, 32], strides = [1, 1]} : vector<16x32xf32> to vector<8x32xf32>
    %70 = vector.extract_strided_slice %68 {offsets = [8, 0], sizes = [8, 32], strides = [1, 1]} : vector<16x32xf32> to vector<8x32xf32>
    %cst_15 = arith.constant dense<0.000000e+00> : vector<16x256xf32>
    %71 = tpu.matmul %68, %12, %cst_15 {dimension_numbers = #tpu.dot_dimension_numbers<[1], [0], [0], [1], [0, 0, 1, 1], [], []>} : vector<16x32xf32>, vector<32x256xf32>, vector<16x256xf32> -> vector<16x256xf32>
    %72 = vector.extract_strided_slice %71 {offsets = [0, 0], sizes = [8, 128], strides = [1, 1]} : vector<16x256xf32> to vector<8x128xf32>
    %73 = vector.extract_strided_slice %11 {offsets = [16, 0], sizes = [8, 128], strides = [1, 1]} : vector<64x256xf32> to vector<8x128xf32>
    %74 = arith.addf %72, %73 : vector<8x128xf32>
    %75 = vector.extract_strided_slice %71 {offsets = [8, 128], sizes = [8, 128], strides = [1, 1]} : vector<16x256xf32> to vector<8x128xf32>
    %76 = vector.extract_strided_slice %11 {offsets = [40, 128], sizes = [8, 128], strides = [1, 1]} : vector<64x256xf32> to vector<8x128xf32>
    %77 = arith.addf %75, %76 : vector<8x128xf32>
    %78 = tpu.concatenate %74, %77 in 0 : vector<8x128xf32>, vector<8x128xf32> -> vector<16x128xf32>
    %79 = math.tanh %78 : vector<16x128xf32>
    %cst_16 = arith.constant 0.000000e+00 : f32
    %80 = vector.broadcast %cst_16 : f32 to vector<16x128xf32>
    %81 = arith.subf %80, %78 : vector<16x128xf32>
    %82 = math.exp %81 : vector<16x128xf32>
    %cst_17 = arith.constant 1.000000e+00 : f32
    %83 = vector.broadcast %cst_17 : f32 to vector<16x128xf32>
    %84 = arith.addf %83, %82 : vector<16x128xf32>
    %cst_18 = arith.constant 1.000000e+00 : f32
    %85 = vector.broadcast %cst_18 : f32 to vector<16x128xf32>
    %86 = arith.divf %85, %84 : vector<16x128xf32>
    %87 = arith.select %5, %79, %86 : vector<16x128xi1>, vector<16x128xf32>
    %88 = vector.extract_strided_slice %87 {offsets = [0, 0], sizes = [16, 32], strides = [1, 1]} : vector<16x128xf32> to vector<16x32xf32>
    %89 = vector.extract_strided_slice %87 {offsets = [0, 32], sizes = [16, 32], strides = [1, 1]} : vector<16x128xf32> to vector<16x32xf32>
    %90 = vector.extract_strided_slice %87 {offsets = [0, 64], sizes = [16, 32], strides = [1, 1]} : vector<16x128xf32> to vector<16x32xf32>
    %91 = vector.extract_strided_slice %87 {offsets = [0, 96], sizes = [16, 32], strides = [1, 1]} : vector<16x128xf32> to vector<16x32xf32>
    %92 = arith.mulf %89, %66 : vector<16x32xf32>
    %93 = arith.mulf %88, %90 : vector<16x32xf32>
    %94 = arith.addf %92, %93 : vector<16x32xf32>
    %95 = math.tanh %94 : vector<16x32xf32>
    %96 = arith.mulf %91, %95 : vector<16x32xf32>
    %97 = vector.extract_strided_slice %96 {offsets = [0, 0], sizes = [8, 32], strides = [1, 1]} : vector<16x32xf32> to vector<8x32xf32>
    %98 = vector.extract_strided_slice %96 {offsets = [8, 0], sizes = [8, 32], strides = [1, 1]} : vector<16x32xf32> to vector<8x32xf32>
    %cst_19 = arith.constant dense<0.000000e+00> : vector<16x256xf32>
    %99 = tpu.matmul %96, %12, %cst_19 {dimension_numbers = #tpu.dot_dimension_numbers<[1], [0], [0], [1], [0, 0, 1, 1], [], []>} : vector<16x32xf32>, vector<32x256xf32>, vector<16x256xf32> -> vector<16x256xf32>
    %100 = vector.extract_strided_slice %99 {offsets = [0, 0], sizes = [8, 128], strides = [1, 1]} : vector<16x256xf32> to vector<8x128xf32>
    %101 = vector.extract_strided_slice %11 {offsets = [24, 0], sizes = [8, 128], strides = [1, 1]} : vector<64x256xf32> to vector<8x128xf32>
    %102 = arith.addf %100, %101 : vector<8x128xf32>
    %103 = vector.extract_strided_slice %99 {offsets = [8, 128], sizes = [8, 128], strides = [1, 1]} : vector<16x256xf32> to vector<8x128xf32>
    %104 = vector.extract_strided_slice %11 {offsets = [32, 128], sizes = [8, 128], strides = [1, 1]} : vector<64x256xf32> to vector<8x128xf32>
    %105 = arith.addf %103, %104 : vector<8x128xf32>
    %106 = tpu.concatenate %102, %105 in 0 : vector<8x128xf32>, vector<8x128xf32> -> vector<16x128xf32>
    %107 = math.tanh %106 : vector<16x128xf32>
    %cst_20 = arith.constant 0.000000e+00 : f32
    %108 = vector.broadcast %cst_20 : f32 to vector<16x128xf32>
    %109 = arith.subf %108, %106 : vector<16x128xf32>
    %110 = math.exp %109 : vector<16x128xf32>
    %cst_21 = arith.constant 1.000000e+00 : f32
    %111 = vector.broadcast %cst_21 : f32 to vector<16x128xf32>
    %112 = arith.addf %111, %110 : vector<16x128xf32>
    %cst_22 = arith.constant 1.000000e+00 : f32
    %113 = vector.broadcast %cst_22 : f32 to vector<16x128xf32>
    %114 = arith.divf %113, %112 : vector<16x128xf32>
    %115 = arith.select %5, %107, %114 : vector<16x128xi1>, vector<16x128xf32>
    %116 = vector.extract_strided_slice %115 {offsets = [0, 0], sizes = [16, 32], strides = [1, 1]} : vector<16x128xf32> to vector<16x32xf32>
    %117 = vector.extract_strided_slice %115 {offsets = [0, 32], sizes = [16, 32], strides = [1, 1]} : vector<16x128xf32> to vector<16x32xf32>
    %118 = vector.extract_strided_slice %115 {offsets = [0, 64], sizes = [16, 32], strides = [1, 1]} : vector<16x128xf32> to vector<16x32xf32>
    %119 = vector.extract_strided_slice %115 {offsets = [0, 96], sizes = [16, 32], strides = [1, 1]} : vector<16x128xf32> to vector<16x32xf32>
    %120 = arith.mulf %117, %94 : vector<16x32xf32>
    %121 = arith.mulf %116, %118 : vector<16x32xf32>
    %122 = arith.addf %120, %121 : vector<16x32xf32>
    %123 = math.tanh %122 : vector<16x32xf32>
    %124 = arith.mulf %119, %123 : vector<16x32xf32>
    %125 = vector.extract_strided_slice %124 {offsets = [0, 0], sizes = [8, 32], strides = [1, 1]} : vector<16x32xf32> to vector<8x32xf32>
    %126 = vector.extract_strided_slice %124 {offsets = [8, 0], sizes = [8, 32], strides = [1, 1]} : vector<16x32xf32> to vector<8x32xf32>
    %cst_23 = arith.constant dense<0.000000e+00> : vector<16x256xf32>
    %127 = tpu.matmul %124, %12, %cst_23 {dimension_numbers = #tpu.dot_dimension_numbers<[1], [0], [0], [1], [0, 0, 1, 1], [], []>} : vector<16x32xf32>, vector<32x256xf32>, vector<16x256xf32> -> vector<16x256xf32>
    %128 = vector.extract_strided_slice %127 {offsets = [0, 0], sizes = [8, 128], strides = [1, 1]} : vector<16x256xf32> to vector<8x128xf32>
    %129 = vector.extract_strided_slice %11 {offsets = [32, 0], sizes = [8, 128], strides = [1, 1]} : vector<64x256xf32> to vector<8x128xf32>
    %130 = arith.addf %128, %129 : vector<8x128xf32>
    %131 = vector.extract_strided_slice %127 {offsets = [8, 128], sizes = [8, 128], strides = [1, 1]} : vector<16x256xf32> to vector<8x128xf32>
    %132 = vector.extract_strided_slice %11 {offsets = [24, 128], sizes = [8, 128], strides = [1, 1]} : vector<64x256xf32> to vector<8x128xf32>
    %133 = arith.addf %131, %132 : vector<8x128xf32>
    %134 = tpu.concatenate %130, %133 in 0 : vector<8x128xf32>, vector<8x128xf32> -> vector<16x128xf32>
    %135 = math.tanh %134 : vector<16x128xf32>
    %cst_24 = arith.constant 0.000000e+00 : f32
    %136 = vector.broadcast %cst_24 : f32 to vector<16x128xf32>
    %137 = arith.subf %136, %134 : vector<16x128xf32>
    %138 = math.exp %137 : vector<16x128xf32>
    %cst_25 = arith.constant 1.000000e+00 : f32
    %139 = vector.broadcast %cst_25 : f32 to vector<16x128xf32>
    %140 = arith.addf %139, %138 : vector<16x128xf32>
    %cst_26 = arith.constant 1.000000e+00 : f32
    %141 = vector.broadcast %cst_26 : f32 to vector<16x128xf32>
    %142 = arith.divf %141, %140 : vector<16x128xf32>
    %143 = arith.select %5, %135, %142 : vector<16x128xi1>, vector<16x128xf32>
    %144 = vector.extract_strided_slice %143 {offsets = [0, 0], sizes = [16, 32], strides = [1, 1]} : vector<16x128xf32> to vector<16x32xf32>
    %145 = vector.extract_strided_slice %143 {offsets = [0, 32], sizes = [16, 32], strides = [1, 1]} : vector<16x128xf32> to vector<16x32xf32>
    %146 = vector.extract_strided_slice %143 {offsets = [0, 64], sizes = [16, 32], strides = [1, 1]} : vector<16x128xf32> to vector<16x32xf32>
    %147 = vector.extract_strided_slice %143 {offsets = [0, 96], sizes = [16, 32], strides = [1, 1]} : vector<16x128xf32> to vector<16x32xf32>
    %148 = arith.mulf %145, %122 : vector<16x32xf32>
    %149 = arith.mulf %144, %146 : vector<16x32xf32>
    %150 = arith.addf %148, %149 : vector<16x32xf32>
    %151 = math.tanh %150 : vector<16x32xf32>
    %152 = arith.mulf %147, %151 : vector<16x32xf32>
    %153 = vector.extract_strided_slice %152 {offsets = [0, 0], sizes = [8, 32], strides = [1, 1]} : vector<16x32xf32> to vector<8x32xf32>
    %154 = vector.extract_strided_slice %152 {offsets = [8, 0], sizes = [8, 32], strides = [1, 1]} : vector<16x32xf32> to vector<8x32xf32>
    %cst_27 = arith.constant dense<0.000000e+00> : vector<16x256xf32>
    %155 = tpu.matmul %152, %12, %cst_27 {dimension_numbers = #tpu.dot_dimension_numbers<[1], [0], [0], [1], [0, 0, 1, 1], [], []>} : vector<16x32xf32>, vector<32x256xf32>, vector<16x256xf32> -> vector<16x256xf32>
    %156 = vector.extract_strided_slice %155 {offsets = [0, 0], sizes = [8, 128], strides = [1, 1]} : vector<16x256xf32> to vector<8x128xf32>
    %157 = vector.extract_strided_slice %11 {offsets = [40, 0], sizes = [8, 128], strides = [1, 1]} : vector<64x256xf32> to vector<8x128xf32>
    %158 = arith.addf %156, %157 : vector<8x128xf32>
    %159 = vector.extract_strided_slice %155 {offsets = [8, 128], sizes = [8, 128], strides = [1, 1]} : vector<16x256xf32> to vector<8x128xf32>
    %160 = vector.extract_strided_slice %11 {offsets = [16, 128], sizes = [8, 128], strides = [1, 1]} : vector<64x256xf32> to vector<8x128xf32>
    %161 = arith.addf %159, %160 : vector<8x128xf32>
    %162 = tpu.concatenate %158, %161 in 0 : vector<8x128xf32>, vector<8x128xf32> -> vector<16x128xf32>
    %163 = math.tanh %162 : vector<16x128xf32>
    %cst_28 = arith.constant 0.000000e+00 : f32
    %164 = vector.broadcast %cst_28 : f32 to vector<16x128xf32>
    %165 = arith.subf %164, %162 : vector<16x128xf32>
    %166 = math.exp %165 : vector<16x128xf32>
    %cst_29 = arith.constant 1.000000e+00 : f32
    %167 = vector.broadcast %cst_29 : f32 to vector<16x128xf32>
    %168 = arith.addf %167, %166 : vector<16x128xf32>
    %cst_30 = arith.constant 1.000000e+00 : f32
    %169 = vector.broadcast %cst_30 : f32 to vector<16x128xf32>
    %170 = arith.divf %169, %168 : vector<16x128xf32>
    %171 = arith.select %5, %163, %170 : vector<16x128xi1>, vector<16x128xf32>
    %172 = vector.extract_strided_slice %171 {offsets = [0, 0], sizes = [16, 32], strides = [1, 1]} : vector<16x128xf32> to vector<16x32xf32>
    %173 = vector.extract_strided_slice %171 {offsets = [0, 32], sizes = [16, 32], strides = [1, 1]} : vector<16x128xf32> to vector<16x32xf32>
    %174 = vector.extract_strided_slice %171 {offsets = [0, 64], sizes = [16, 32], strides = [1, 1]} : vector<16x128xf32> to vector<16x32xf32>
    %175 = vector.extract_strided_slice %171 {offsets = [0, 96], sizes = [16, 32], strides = [1, 1]} : vector<16x128xf32> to vector<16x32xf32>
    %176 = arith.mulf %173, %150 : vector<16x32xf32>
    %177 = arith.mulf %172, %174 : vector<16x32xf32>
    %178 = arith.addf %176, %177 : vector<16x32xf32>
    %179 = math.tanh %178 : vector<16x32xf32>
    %180 = arith.mulf %175, %179 : vector<16x32xf32>
    %181 = vector.extract_strided_slice %180 {offsets = [0, 0], sizes = [8, 32], strides = [1, 1]} : vector<16x32xf32> to vector<8x32xf32>
    %182 = vector.extract_strided_slice %180 {offsets = [8, 0], sizes = [8, 32], strides = [1, 1]} : vector<16x32xf32> to vector<8x32xf32>
    %cst_31 = arith.constant dense<0.000000e+00> : vector<16x256xf32>
    %183 = tpu.matmul %180, %12, %cst_31 {dimension_numbers = #tpu.dot_dimension_numbers<[1], [0], [0], [1], [0, 0, 1, 1], [], []>} : vector<16x32xf32>, vector<32x256xf32>, vector<16x256xf32> -> vector<16x256xf32>
    %184 = vector.extract_strided_slice %183 {offsets = [0, 0], sizes = [8, 128], strides = [1, 1]} : vector<16x256xf32> to vector<8x128xf32>
    %185 = vector.extract_strided_slice %11 {offsets = [48, 0], sizes = [8, 128], strides = [1, 1]} : vector<64x256xf32> to vector<8x128xf32>
    %186 = arith.addf %184, %185 : vector<8x128xf32>
    %187 = vector.extract_strided_slice %183 {offsets = [8, 128], sizes = [8, 128], strides = [1, 1]} : vector<16x256xf32> to vector<8x128xf32>
    %188 = vector.extract_strided_slice %11 {offsets = [8, 128], sizes = [8, 128], strides = [1, 1]} : vector<64x256xf32> to vector<8x128xf32>
    %189 = arith.addf %187, %188 : vector<8x128xf32>
    %190 = tpu.concatenate %186, %189 in 0 : vector<8x128xf32>, vector<8x128xf32> -> vector<16x128xf32>
    %191 = math.tanh %190 : vector<16x128xf32>
    %cst_32 = arith.constant 0.000000e+00 : f32
    %192 = vector.broadcast %cst_32 : f32 to vector<16x128xf32>
    %193 = arith.subf %192, %190 : vector<16x128xf32>
    %194 = math.exp %193 : vector<16x128xf32>
    %cst_33 = arith.constant 1.000000e+00 : f32
    %195 = vector.broadcast %cst_33 : f32 to vector<16x128xf32>
    %196 = arith.addf %195, %194 : vector<16x128xf32>
    %cst_34 = arith.constant 1.000000e+00 : f32
    %197 = vector.broadcast %cst_34 : f32 to vector<16x128xf32>
    %198 = arith.divf %197, %196 : vector<16x128xf32>
    %199 = arith.select %5, %191, %198 : vector<16x128xi1>, vector<16x128xf32>
    %200 = vector.extract_strided_slice %199 {offsets = [0, 0], sizes = [16, 32], strides = [1, 1]} : vector<16x128xf32> to vector<16x32xf32>
    %201 = vector.extract_strided_slice %199 {offsets = [0, 32], sizes = [16, 32], strides = [1, 1]} : vector<16x128xf32> to vector<16x32xf32>
    %202 = vector.extract_strided_slice %199 {offsets = [0, 64], sizes = [16, 32], strides = [1, 1]} : vector<16x128xf32> to vector<16x32xf32>
    %203 = vector.extract_strided_slice %199 {offsets = [0, 96], sizes = [16, 32], strides = [1, 1]} : vector<16x128xf32> to vector<16x32xf32>
    %204 = arith.mulf %201, %178 : vector<16x32xf32>
    %205 = arith.mulf %200, %202 : vector<16x32xf32>
    %206 = arith.addf %204, %205 : vector<16x32xf32>
    %207 = math.tanh %206 : vector<16x32xf32>
    %208 = arith.mulf %203, %207 : vector<16x32xf32>
    %209 = vector.extract_strided_slice %208 {offsets = [0, 0], sizes = [8, 32], strides = [1, 1]} : vector<16x32xf32> to vector<8x32xf32>
    %210 = vector.extract_strided_slice %208 {offsets = [8, 0], sizes = [8, 32], strides = [1, 1]} : vector<16x32xf32> to vector<8x32xf32>
    %cst_35 = arith.constant dense<0.000000e+00> : vector<16x256xf32>
    %211 = tpu.matmul %208, %12, %cst_35 {dimension_numbers = #tpu.dot_dimension_numbers<[1], [0], [0], [1], [0, 0, 1, 1], [], []>} : vector<16x32xf32>, vector<32x256xf32>, vector<16x256xf32> -> vector<16x256xf32>
    %212 = vector.extract_strided_slice %211 {offsets = [0, 0], sizes = [8, 128], strides = [1, 1]} : vector<16x256xf32> to vector<8x128xf32>
    %213 = vector.extract_strided_slice %11 {offsets = [56, 0], sizes = [8, 128], strides = [1, 1]} : vector<64x256xf32> to vector<8x128xf32>
    %214 = arith.addf %212, %213 : vector<8x128xf32>
    %215 = vector.extract_strided_slice %211 {offsets = [8, 128], sizes = [8, 128], strides = [1, 1]} : vector<16x256xf32> to vector<8x128xf32>
    %216 = vector.extract_strided_slice %11 {offsets = [0, 128], sizes = [8, 128], strides = [1, 1]} : vector<64x256xf32> to vector<8x128xf32>
    %217 = arith.addf %215, %216 : vector<8x128xf32>
    %218 = tpu.concatenate %214, %217 in 0 : vector<8x128xf32>, vector<8x128xf32> -> vector<16x128xf32>
    %219 = math.tanh %218 : vector<16x128xf32>
    %cst_36 = arith.constant 0.000000e+00 : f32
    %220 = vector.broadcast %cst_36 : f32 to vector<16x128xf32>
    %221 = arith.subf %220, %218 : vector<16x128xf32>
    %222 = math.exp %221 : vector<16x128xf32>
    %cst_37 = arith.constant 1.000000e+00 : f32
    %223 = vector.broadcast %cst_37 : f32 to vector<16x128xf32>
    %224 = arith.addf %223, %222 : vector<16x128xf32>
    %cst_38 = arith.constant 1.000000e+00 : f32
    %225 = vector.broadcast %cst_38 : f32 to vector<16x128xf32>
    %226 = arith.divf %225, %224 : vector<16x128xf32>
    %227 = arith.select %5, %219, %226 : vector<16x128xi1>, vector<16x128xf32>
    %228 = vector.extract_strided_slice %227 {offsets = [0, 0], sizes = [16, 32], strides = [1, 1]} : vector<16x128xf32> to vector<16x32xf32>
    %229 = vector.extract_strided_slice %227 {offsets = [0, 32], sizes = [16, 32], strides = [1, 1]} : vector<16x128xf32> to vector<16x32xf32>
    %230 = vector.extract_strided_slice %227 {offsets = [0, 64], sizes = [16, 32], strides = [1, 1]} : vector<16x128xf32> to vector<16x32xf32>
    %231 = vector.extract_strided_slice %227 {offsets = [0, 96], sizes = [16, 32], strides = [1, 1]} : vector<16x128xf32> to vector<16x32xf32>
    %232 = arith.mulf %229, %206 : vector<16x32xf32>
    %233 = arith.mulf %228, %230 : vector<16x32xf32>
    %234 = arith.addf %232, %233 : vector<16x32xf32>
    %235 = math.tanh %234 : vector<16x32xf32>
    %236 = arith.mulf %231, %235 : vector<16x32xf32>
    %237 = vector.extract_strided_slice %236 {offsets = [0, 0], sizes = [8, 32], strides = [1, 1]} : vector<16x32xf32> to vector<8x32xf32>
    %238 = vector.extract_strided_slice %236 {offsets = [8, 0], sizes = [8, 32], strides = [1, 1]} : vector<16x32xf32> to vector<8x32xf32>
    %239 = tpu.concatenate %41, %69, %97, %125, %153, %181, %209, %237 in 0 : vector<8x32xf32>, vector<8x32xf32>, vector<8x32xf32>, vector<8x32xf32>, vector<8x32xf32>, vector<8x32xf32>, vector<8x32xf32>, vector<8x32xf32> -> vector<64x32xf32>
    %240 = tpu.concatenate %238, %210, %182, %154, %126, %98, %70, %42 in 0 : vector<8x32xf32>, vector<8x32xf32>, vector<8x32xf32>, vector<8x32xf32>, vector<8x32xf32>, vector<8x32xf32>, vector<8x32xf32>, vector<8x32xf32> -> vector<64x32xf32>
    %c152 = arith.constant 152 : index
    %c0_39 = arith.constant 0 : index
    %241 = vector.load %arg2[%c152, %c0_39] : memref<232x256xf32, #tpu.memory_space<vmem>>, vector<1x256xf32>
    %c56 = arith.constant 56 : index
    %c0_40 = arith.constant 0 : index
    %242 = vector.load %arg2[%c56, %c0_40] : memref<232x256xf32, #tpu.memory_space<vmem>>, vector<32x256xf32>
    %c88 = arith.constant 88 : index
    %c0_41 = arith.constant 0 : index
    %243 = vector.load %arg2[%c88, %c0_41] : memref<232x256xf32, #tpu.memory_space<vmem>>, vector<32x256xf32>
    %cst_42 = arith.constant dense<0.000000e+00> : vector<64x256xf32>
    %244 = tpu.matmul %239, %242, %cst_42 {dimension_numbers = #tpu.dot_dimension_numbers<[1], [0], [0], [1], [0, 0, 1, 1], [], []>} : vector<64x32xf32>, vector<32x256xf32>, vector<64x256xf32> -> vector<64x256xf32>
    %cst_43 = arith.constant dense<0.000000e+00> : vector<64x256xf32>
    %245 = tpu.matmul %240, %243, %cst_43 {dimension_numbers = #tpu.dot_dimension_numbers<[1], [0], [0], [1], [0, 0, 1, 1], [], []>} : vector<64x32xf32>, vector<32x256xf32>, vector<64x256xf32> -> vector<64x256xf32>
    %246 = arith.addf %244, %245 : vector<64x256xf32>
    %247 = vector.broadcast %241 : vector<1x256xf32> to vector<64x256xf32>
    %248 = arith.addf %246, %247 : vector<64x256xf32>
    %c120 = arith.constant 120 : index
    %c0_44 = arith.constant 0 : index
    %249 = vector.load %arg2[%c120, %c0_44] : memref<232x256xf32, #tpu.memory_space<vmem>>, vector<32x256xf32>
    %cst_45 = arith.constant 0.000000e+00 : f32
    %250 = vector.broadcast %cst_45 : f32 to vector<16x32xf32>
    %cst_46 = arith.constant 0.000000e+00 : f32
    %251 = vector.broadcast %cst_46 : f32 to vector<16x32xf32>
    %cst_47 = arith.constant dense<0.000000e+00> : vector<16x256xf32>
    %252 = tpu.matmul %250, %249, %cst_47 {dimension_numbers = #tpu.dot_dimension_numbers<[1], [0], [0], [1], [0, 0, 1, 1], [], []>} : vector<16x32xf32>, vector<32x256xf32>, vector<16x256xf32> -> vector<16x256xf32>
    %253 = vector.extract_strided_slice %252 {offsets = [0, 0], sizes = [8, 128], strides = [1, 1]} : vector<16x256xf32> to vector<8x128xf32>
    %254 = vector.extract_strided_slice %248 {offsets = [0, 0], sizes = [8, 128], strides = [1, 1]} : vector<64x256xf32> to vector<8x128xf32>
    %255 = arith.addf %253, %254 : vector<8x128xf32>
    %256 = vector.extract_strided_slice %252 {offsets = [8, 128], sizes = [8, 128], strides = [1, 1]} : vector<16x256xf32> to vector<8x128xf32>
    %257 = vector.extract_strided_slice %248 {offsets = [56, 128], sizes = [8, 128], strides = [1, 1]} : vector<64x256xf32> to vector<8x128xf32>
    %258 = arith.addf %256, %257 : vector<8x128xf32>
    %259 = tpu.concatenate %255, %258 in 0 : vector<8x128xf32>, vector<8x128xf32> -> vector<16x128xf32>
    %260 = math.tanh %259 : vector<16x128xf32>
    %cst_48 = arith.constant 0.000000e+00 : f32
    %261 = vector.broadcast %cst_48 : f32 to vector<16x128xf32>
    %262 = arith.subf %261, %259 : vector<16x128xf32>
    %263 = math.exp %262 : vector<16x128xf32>
    %cst_49 = arith.constant 1.000000e+00 : f32
    %264 = vector.broadcast %cst_49 : f32 to vector<16x128xf32>
    %265 = arith.addf %264, %263 : vector<16x128xf32>
    %cst_50 = arith.constant 1.000000e+00 : f32
    %266 = vector.broadcast %cst_50 : f32 to vector<16x128xf32>
    %267 = arith.divf %266, %265 : vector<16x128xf32>
    %268 = arith.select %5, %260, %267 : vector<16x128xi1>, vector<16x128xf32>
    %269 = vector.extract_strided_slice %268 {offsets = [0, 0], sizes = [16, 32], strides = [1, 1]} : vector<16x128xf32> to vector<16x32xf32>
    %270 = vector.extract_strided_slice %268 {offsets = [0, 32], sizes = [16, 32], strides = [1, 1]} : vector<16x128xf32> to vector<16x32xf32>
    %271 = vector.extract_strided_slice %268 {offsets = [0, 64], sizes = [16, 32], strides = [1, 1]} : vector<16x128xf32> to vector<16x32xf32>
    %272 = vector.extract_strided_slice %268 {offsets = [0, 96], sizes = [16, 32], strides = [1, 1]} : vector<16x128xf32> to vector<16x32xf32>
    %273 = arith.mulf %270, %251 : vector<16x32xf32>
    %274 = arith.mulf %269, %271 : vector<16x32xf32>
    %275 = arith.addf %273, %274 : vector<16x32xf32>
    %276 = math.tanh %275 : vector<16x32xf32>
    %277 = arith.mulf %272, %276 : vector<16x32xf32>
    %278 = vector.extract_strided_slice %277 {offsets = [0, 0], sizes = [8, 32], strides = [1, 1]} : vector<16x32xf32> to vector<8x32xf32>
    %279 = vector.extract_strided_slice %277 {offsets = [8, 0], sizes = [8, 32], strides = [1, 1]} : vector<16x32xf32> to vector<8x32xf32>
    %cst_51 = arith.constant dense<0.000000e+00> : vector<16x256xf32>
    %280 = tpu.matmul %277, %249, %cst_51 {dimension_numbers = #tpu.dot_dimension_numbers<[1], [0], [0], [1], [0, 0, 1, 1], [], []>} : vector<16x32xf32>, vector<32x256xf32>, vector<16x256xf32> -> vector<16x256xf32>
    %281 = vector.extract_strided_slice %280 {offsets = [0, 0], sizes = [8, 128], strides = [1, 1]} : vector<16x256xf32> to vector<8x128xf32>
    %282 = vector.extract_strided_slice %248 {offsets = [8, 0], sizes = [8, 128], strides = [1, 1]} : vector<64x256xf32> to vector<8x128xf32>
    %283 = arith.addf %281, %282 : vector<8x128xf32>
    %284 = vector.extract_strided_slice %280 {offsets = [8, 128], sizes = [8, 128], strides = [1, 1]} : vector<16x256xf32> to vector<8x128xf32>
    %285 = vector.extract_strided_slice %248 {offsets = [48, 128], sizes = [8, 128], strides = [1, 1]} : vector<64x256xf32> to vector<8x128xf32>
    %286 = arith.addf %284, %285 : vector<8x128xf32>
    %287 = tpu.concatenate %283, %286 in 0 : vector<8x128xf32>, vector<8x128xf32> -> vector<16x128xf32>
    %288 = math.tanh %287 : vector<16x128xf32>
    %cst_52 = arith.constant 0.000000e+00 : f32
    %289 = vector.broadcast %cst_52 : f32 to vector<16x128xf32>
    %290 = arith.subf %289, %287 : vector<16x128xf32>
    %291 = math.exp %290 : vector<16x128xf32>
    %cst_53 = arith.constant 1.000000e+00 : f32
    %292 = vector.broadcast %cst_53 : f32 to vector<16x128xf32>
    %293 = arith.addf %292, %291 : vector<16x128xf32>
    %cst_54 = arith.constant 1.000000e+00 : f32
    %294 = vector.broadcast %cst_54 : f32 to vector<16x128xf32>
    %295 = arith.divf %294, %293 : vector<16x128xf32>
    %296 = arith.select %5, %288, %295 : vector<16x128xi1>, vector<16x128xf32>
    %297 = vector.extract_strided_slice %296 {offsets = [0, 0], sizes = [16, 32], strides = [1, 1]} : vector<16x128xf32> to vector<16x32xf32>
    %298 = vector.extract_strided_slice %296 {offsets = [0, 32], sizes = [16, 32], strides = [1, 1]} : vector<16x128xf32> to vector<16x32xf32>
    %299 = vector.extract_strided_slice %296 {offsets = [0, 64], sizes = [16, 32], strides = [1, 1]} : vector<16x128xf32> to vector<16x32xf32>
    %300 = vector.extract_strided_slice %296 {offsets = [0, 96], sizes = [16, 32], strides = [1, 1]} : vector<16x128xf32> to vector<16x32xf32>
    %301 = arith.mulf %298, %275 : vector<16x32xf32>
    %302 = arith.mulf %297, %299 : vector<16x32xf32>
    %303 = arith.addf %301, %302 : vector<16x32xf32>
    %304 = math.tanh %303 : vector<16x32xf32>
    %305 = arith.mulf %300, %304 : vector<16x32xf32>
    %306 = vector.extract_strided_slice %305 {offsets = [0, 0], sizes = [8, 32], strides = [1, 1]} : vector<16x32xf32> to vector<8x32xf32>
    %307 = vector.extract_strided_slice %305 {offsets = [8, 0], sizes = [8, 32], strides = [1, 1]} : vector<16x32xf32> to vector<8x32xf32>
    %cst_55 = arith.constant dense<0.000000e+00> : vector<16x256xf32>
    %308 = tpu.matmul %305, %249, %cst_55 {dimension_numbers = #tpu.dot_dimension_numbers<[1], [0], [0], [1], [0, 0, 1, 1], [], []>} : vector<16x32xf32>, vector<32x256xf32>, vector<16x256xf32> -> vector<16x256xf32>
    %309 = vector.extract_strided_slice %308 {offsets = [0, 0], sizes = [8, 128], strides = [1, 1]} : vector<16x256xf32> to vector<8x128xf32>
    %310 = vector.extract_strided_slice %248 {offsets = [16, 0], sizes = [8, 128], strides = [1, 1]} : vector<64x256xf32> to vector<8x128xf32>
    %311 = arith.addf %309, %310 : vector<8x128xf32>
    %312 = vector.extract_strided_slice %308 {offsets = [8, 128], sizes = [8, 128], strides = [1, 1]} : vector<16x256xf32> to vector<8x128xf32>
    %313 = vector.extract_strided_slice %248 {offsets = [40, 128], sizes = [8, 128], strides = [1, 1]} : vector<64x256xf32> to vector<8x128xf32>
    %314 = arith.addf %312, %313 : vector<8x128xf32>
    %315 = tpu.concatenate %311, %314 in 0 : vector<8x128xf32>, vector<8x128xf32> -> vector<16x128xf32>
    %316 = math.tanh %315 : vector<16x128xf32>
    %cst_56 = arith.constant 0.000000e+00 : f32
    %317 = vector.broadcast %cst_56 : f32 to vector<16x128xf32>
    %318 = arith.subf %317, %315 : vector<16x128xf32>
    %319 = math.exp %318 : vector<16x128xf32>
    %cst_57 = arith.constant 1.000000e+00 : f32
    %320 = vector.broadcast %cst_57 : f32 to vector<16x128xf32>
    %321 = arith.addf %320, %319 : vector<16x128xf32>
    %cst_58 = arith.constant 1.000000e+00 : f32
    %322 = vector.broadcast %cst_58 : f32 to vector<16x128xf32>
    %323 = arith.divf %322, %321 : vector<16x128xf32>
    %324 = arith.select %5, %316, %323 : vector<16x128xi1>, vector<16x128xf32>
    %325 = vector.extract_strided_slice %324 {offsets = [0, 0], sizes = [16, 32], strides = [1, 1]} : vector<16x128xf32> to vector<16x32xf32>
    %326 = vector.extract_strided_slice %324 {offsets = [0, 32], sizes = [16, 32], strides = [1, 1]} : vector<16x128xf32> to vector<16x32xf32>
    %327 = vector.extract_strided_slice %324 {offsets = [0, 64], sizes = [16, 32], strides = [1, 1]} : vector<16x128xf32> to vector<16x32xf32>
    %328 = vector.extract_strided_slice %324 {offsets = [0, 96], sizes = [16, 32], strides = [1, 1]} : vector<16x128xf32> to vector<16x32xf32>
    %329 = arith.mulf %326, %303 : vector<16x32xf32>
    %330 = arith.mulf %325, %327 : vector<16x32xf32>
    %331 = arith.addf %329, %330 : vector<16x32xf32>
    %332 = math.tanh %331 : vector<16x32xf32>
    %333 = arith.mulf %328, %332 : vector<16x32xf32>
    %334 = vector.extract_strided_slice %333 {offsets = [0, 0], sizes = [8, 32], strides = [1, 1]} : vector<16x32xf32> to vector<8x32xf32>
    %335 = vector.extract_strided_slice %333 {offsets = [8, 0], sizes = [8, 32], strides = [1, 1]} : vector<16x32xf32> to vector<8x32xf32>
    %cst_59 = arith.constant dense<0.000000e+00> : vector<16x256xf32>
    %336 = tpu.matmul %333, %249, %cst_59 {dimension_numbers = #tpu.dot_dimension_numbers<[1], [0], [0], [1], [0, 0, 1, 1], [], []>} : vector<16x32xf32>, vector<32x256xf32>, vector<16x256xf32> -> vector<16x256xf32>
    %337 = vector.extract_strided_slice %336 {offsets = [0, 0], sizes = [8, 128], strides = [1, 1]} : vector<16x256xf32> to vector<8x128xf32>
    %338 = vector.extract_strided_slice %248 {offsets = [24, 0], sizes = [8, 128], strides = [1, 1]} : vector<64x256xf32> to vector<8x128xf32>
    %339 = arith.addf %337, %338 : vector<8x128xf32>
    %340 = vector.extract_strided_slice %336 {offsets = [8, 128], sizes = [8, 128], strides = [1, 1]} : vector<16x256xf32> to vector<8x128xf32>
    %341 = vector.extract_strided_slice %248 {offsets = [32, 128], sizes = [8, 128], strides = [1, 1]} : vector<64x256xf32> to vector<8x128xf32>
    %342 = arith.addf %340, %341 : vector<8x128xf32>
    %343 = tpu.concatenate %339, %342 in 0 : vector<8x128xf32>, vector<8x128xf32> -> vector<16x128xf32>
    %344 = math.tanh %343 : vector<16x128xf32>
    %cst_60 = arith.constant 0.000000e+00 : f32
    %345 = vector.broadcast %cst_60 : f32 to vector<16x128xf32>
    %346 = arith.subf %345, %343 : vector<16x128xf32>
    %347 = math.exp %346 : vector<16x128xf32>
    %cst_61 = arith.constant 1.000000e+00 : f32
    %348 = vector.broadcast %cst_61 : f32 to vector<16x128xf32>
    %349 = arith.addf %348, %347 : vector<16x128xf32>
    %cst_62 = arith.constant 1.000000e+00 : f32
    %350 = vector.broadcast %cst_62 : f32 to vector<16x128xf32>
    %351 = arith.divf %350, %349 : vector<16x128xf32>
    %352 = arith.select %5, %344, %351 : vector<16x128xi1>, vector<16x128xf32>
    %353 = vector.extract_strided_slice %352 {offsets = [0, 0], sizes = [16, 32], strides = [1, 1]} : vector<16x128xf32> to vector<16x32xf32>
    %354 = vector.extract_strided_slice %352 {offsets = [0, 32], sizes = [16, 32], strides = [1, 1]} : vector<16x128xf32> to vector<16x32xf32>
    %355 = vector.extract_strided_slice %352 {offsets = [0, 64], sizes = [16, 32], strides = [1, 1]} : vector<16x128xf32> to vector<16x32xf32>
    %356 = vector.extract_strided_slice %352 {offsets = [0, 96], sizes = [16, 32], strides = [1, 1]} : vector<16x128xf32> to vector<16x32xf32>
    %357 = arith.mulf %354, %331 : vector<16x32xf32>
    %358 = arith.mulf %353, %355 : vector<16x32xf32>
    %359 = arith.addf %357, %358 : vector<16x32xf32>
    %360 = math.tanh %359 : vector<16x32xf32>
    %361 = arith.mulf %356, %360 : vector<16x32xf32>
    %362 = vector.extract_strided_slice %361 {offsets = [0, 0], sizes = [8, 32], strides = [1, 1]} : vector<16x32xf32> to vector<8x32xf32>
    %363 = vector.extract_strided_slice %361 {offsets = [8, 0], sizes = [8, 32], strides = [1, 1]} : vector<16x32xf32> to vector<8x32xf32>
    %cst_63 = arith.constant dense<0.000000e+00> : vector<16x256xf32>
    %364 = tpu.matmul %361, %249, %cst_63 {dimension_numbers = #tpu.dot_dimension_numbers<[1], [0], [0], [1], [0, 0, 1, 1], [], []>} : vector<16x32xf32>, vector<32x256xf32>, vector<16x256xf32> -> vector<16x256xf32>
    %365 = vector.extract_strided_slice %364 {offsets = [0, 0], sizes = [8, 128], strides = [1, 1]} : vector<16x256xf32> to vector<8x128xf32>
    %366 = vector.extract_strided_slice %248 {offsets = [32, 0], sizes = [8, 128], strides = [1, 1]} : vector<64x256xf32> to vector<8x128xf32>
    %367 = arith.addf %365, %366 : vector<8x128xf32>
    %368 = vector.extract_strided_slice %364 {offsets = [8, 128], sizes = [8, 128], strides = [1, 1]} : vector<16x256xf32> to vector<8x128xf32>
    %369 = vector.extract_strided_slice %248 {offsets = [24, 128], sizes = [8, 128], strides = [1, 1]} : vector<64x256xf32> to vector<8x128xf32>
    %370 = arith.addf %368, %369 : vector<8x128xf32>
    %371 = tpu.concatenate %367, %370 in 0 : vector<8x128xf32>, vector<8x128xf32> -> vector<16x128xf32>
    %372 = math.tanh %371 : vector<16x128xf32>
    %cst_64 = arith.constant 0.000000e+00 : f32
    %373 = vector.broadcast %cst_64 : f32 to vector<16x128xf32>
    %374 = arith.subf %373, %371 : vector<16x128xf32>
    %375 = math.exp %374 : vector<16x128xf32>
    %cst_65 = arith.constant 1.000000e+00 : f32
    %376 = vector.broadcast %cst_65 : f32 to vector<16x128xf32>
    %377 = arith.addf %376, %375 : vector<16x128xf32>
    %cst_66 = arith.constant 1.000000e+00 : f32
    %378 = vector.broadcast %cst_66 : f32 to vector<16x128xf32>
    %379 = arith.divf %378, %377 : vector<16x128xf32>
    %380 = arith.select %5, %372, %379 : vector<16x128xi1>, vector<16x128xf32>
    %381 = vector.extract_strided_slice %380 {offsets = [0, 0], sizes = [16, 32], strides = [1, 1]} : vector<16x128xf32> to vector<16x32xf32>
    %382 = vector.extract_strided_slice %380 {offsets = [0, 32], sizes = [16, 32], strides = [1, 1]} : vector<16x128xf32> to vector<16x32xf32>
    %383 = vector.extract_strided_slice %380 {offsets = [0, 64], sizes = [16, 32], strides = [1, 1]} : vector<16x128xf32> to vector<16x32xf32>
    %384 = vector.extract_strided_slice %380 {offsets = [0, 96], sizes = [16, 32], strides = [1, 1]} : vector<16x128xf32> to vector<16x32xf32>
    %385 = arith.mulf %382, %359 : vector<16x32xf32>
    %386 = arith.mulf %381, %383 : vector<16x32xf32>
    %387 = arith.addf %385, %386 : vector<16x32xf32>
    %388 = math.tanh %387 : vector<16x32xf32>
    %389 = arith.mulf %384, %388 : vector<16x32xf32>
    %390 = vector.extract_strided_slice %389 {offsets = [0, 0], sizes = [8, 32], strides = [1, 1]} : vector<16x32xf32> to vector<8x32xf32>
    %391 = vector.extract_strided_slice %389 {offsets = [8, 0], sizes = [8, 32], strides = [1, 1]} : vector<16x32xf32> to vector<8x32xf32>
    %cst_67 = arith.constant dense<0.000000e+00> : vector<16x256xf32>
    %392 = tpu.matmul %389, %249, %cst_67 {dimension_numbers = #tpu.dot_dimension_numbers<[1], [0], [0], [1], [0, 0, 1, 1], [], []>} : vector<16x32xf32>, vector<32x256xf32>, vector<16x256xf32> -> vector<16x256xf32>
    %393 = vector.extract_strided_slice %392 {offsets = [0, 0], sizes = [8, 128], strides = [1, 1]} : vector<16x256xf32> to vector<8x128xf32>
    %394 = vector.extract_strided_slice %248 {offsets = [40, 0], sizes = [8, 128], strides = [1, 1]} : vector<64x256xf32> to vector<8x128xf32>
    %395 = arith.addf %393, %394 : vector<8x128xf32>
    %396 = vector.extract_strided_slice %392 {offsets = [8, 128], sizes = [8, 128], strides = [1, 1]} : vector<16x256xf32> to vector<8x128xf32>
    %397 = vector.extract_strided_slice %248 {offsets = [16, 128], sizes = [8, 128], strides = [1, 1]} : vector<64x256xf32> to vector<8x128xf32>
    %398 = arith.addf %396, %397 : vector<8x128xf32>
    %399 = tpu.concatenate %395, %398 in 0 : vector<8x128xf32>, vector<8x128xf32> -> vector<16x128xf32>
    %400 = math.tanh %399 : vector<16x128xf32>
    %cst_68 = arith.constant 0.000000e+00 : f32
    %401 = vector.broadcast %cst_68 : f32 to vector<16x128xf32>
    %402 = arith.subf %401, %399 : vector<16x128xf32>
    %403 = math.exp %402 : vector<16x128xf32>
    %cst_69 = arith.constant 1.000000e+00 : f32
    %404 = vector.broadcast %cst_69 : f32 to vector<16x128xf32>
    %405 = arith.addf %404, %403 : vector<16x128xf32>
    %cst_70 = arith.constant 1.000000e+00 : f32
    %406 = vector.broadcast %cst_70 : f32 to vector<16x128xf32>
    %407 = arith.divf %406, %405 : vector<16x128xf32>
    %408 = arith.select %5, %400, %407 : vector<16x128xi1>, vector<16x128xf32>
    %409 = vector.extract_strided_slice %408 {offsets = [0, 0], sizes = [16, 32], strides = [1, 1]} : vector<16x128xf32> to vector<16x32xf32>
    %410 = vector.extract_strided_slice %408 {offsets = [0, 32], sizes = [16, 32], strides = [1, 1]} : vector<16x128xf32> to vector<16x32xf32>
    %411 = vector.extract_strided_slice %408 {offsets = [0, 64], sizes = [16, 32], strides = [1, 1]} : vector<16x128xf32> to vector<16x32xf32>
    %412 = vector.extract_strided_slice %408 {offsets = [0, 96], sizes = [16, 32], strides = [1, 1]} : vector<16x128xf32> to vector<16x32xf32>
    %413 = arith.mulf %410, %387 : vector<16x32xf32>
    %414 = arith.mulf %409, %411 : vector<16x32xf32>
    %415 = arith.addf %413, %414 : vector<16x32xf32>
    %416 = math.tanh %415 : vector<16x32xf32>
    %417 = arith.mulf %412, %416 : vector<16x32xf32>
    %418 = vector.extract_strided_slice %417 {offsets = [0, 0], sizes = [8, 32], strides = [1, 1]} : vector<16x32xf32> to vector<8x32xf32>
    %419 = vector.extract_strided_slice %417 {offsets = [8, 0], sizes = [8, 32], strides = [1, 1]} : vector<16x32xf32> to vector<8x32xf32>
    %cst_71 = arith.constant dense<0.000000e+00> : vector<16x256xf32>
    %420 = tpu.matmul %417, %249, %cst_71 {dimension_numbers = #tpu.dot_dimension_numbers<[1], [0], [0], [1], [0, 0, 1, 1], [], []>} : vector<16x32xf32>, vector<32x256xf32>, vector<16x256xf32> -> vector<16x256xf32>
    %421 = vector.extract_strided_slice %420 {offsets = [0, 0], sizes = [8, 128], strides = [1, 1]} : vector<16x256xf32> to vector<8x128xf32>
    %422 = vector.extract_strided_slice %248 {offsets = [48, 0], sizes = [8, 128], strides = [1, 1]} : vector<64x256xf32> to vector<8x128xf32>
    %423 = arith.addf %421, %422 : vector<8x128xf32>
    %424 = vector.extract_strided_slice %420 {offsets = [8, 128], sizes = [8, 128], strides = [1, 1]} : vector<16x256xf32> to vector<8x128xf32>
    %425 = vector.extract_strided_slice %248 {offsets = [8, 128], sizes = [8, 128], strides = [1, 1]} : vector<64x256xf32> to vector<8x128xf32>
    %426 = arith.addf %424, %425 : vector<8x128xf32>
    %427 = tpu.concatenate %423, %426 in 0 : vector<8x128xf32>, vector<8x128xf32> -> vector<16x128xf32>
    %428 = math.tanh %427 : vector<16x128xf32>
    %cst_72 = arith.constant 0.000000e+00 : f32
    %429 = vector.broadcast %cst_72 : f32 to vector<16x128xf32>
    %430 = arith.subf %429, %427 : vector<16x128xf32>
    %431 = math.exp %430 : vector<16x128xf32>
    %cst_73 = arith.constant 1.000000e+00 : f32
    %432 = vector.broadcast %cst_73 : f32 to vector<16x128xf32>
    %433 = arith.addf %432, %431 : vector<16x128xf32>
    %cst_74 = arith.constant 1.000000e+00 : f32
    %434 = vector.broadcast %cst_74 : f32 to vector<16x128xf32>
    %435 = arith.divf %434, %433 : vector<16x128xf32>
    %436 = arith.select %5, %428, %435 : vector<16x128xi1>, vector<16x128xf32>
    %437 = vector.extract_strided_slice %436 {offsets = [0, 0], sizes = [16, 32], strides = [1, 1]} : vector<16x128xf32> to vector<16x32xf32>
    %438 = vector.extract_strided_slice %436 {offsets = [0, 32], sizes = [16, 32], strides = [1, 1]} : vector<16x128xf32> to vector<16x32xf32>
    %439 = vector.extract_strided_slice %436 {offsets = [0, 64], sizes = [16, 32], strides = [1, 1]} : vector<16x128xf32> to vector<16x32xf32>
    %440 = vector.extract_strided_slice %436 {offsets = [0, 96], sizes = [16, 32], strides = [1, 1]} : vector<16x128xf32> to vector<16x32xf32>
    %441 = arith.mulf %438, %415 : vector<16x32xf32>
    %442 = arith.mulf %437, %439 : vector<16x32xf32>
    %443 = arith.addf %441, %442 : vector<16x32xf32>
    %444 = math.tanh %443 : vector<16x32xf32>
    %445 = arith.mulf %440, %444 : vector<16x32xf32>
    %446 = vector.extract_strided_slice %445 {offsets = [0, 0], sizes = [8, 32], strides = [1, 1]} : vector<16x32xf32> to vector<8x32xf32>
    %447 = vector.extract_strided_slice %445 {offsets = [8, 0], sizes = [8, 32], strides = [1, 1]} : vector<16x32xf32> to vector<8x32xf32>
    %cst_75 = arith.constant dense<0.000000e+00> : vector<16x256xf32>
    %448 = tpu.matmul %445, %249, %cst_75 {dimension_numbers = #tpu.dot_dimension_numbers<[1], [0], [0], [1], [0, 0, 1, 1], [], []>} : vector<16x32xf32>, vector<32x256xf32>, vector<16x256xf32> -> vector<16x256xf32>
    %449 = vector.extract_strided_slice %448 {offsets = [0, 0], sizes = [8, 128], strides = [1, 1]} : vector<16x256xf32> to vector<8x128xf32>
    %450 = vector.extract_strided_slice %248 {offsets = [56, 0], sizes = [8, 128], strides = [1, 1]} : vector<64x256xf32> to vector<8x128xf32>
    %451 = arith.addf %449, %450 : vector<8x128xf32>
    %452 = vector.extract_strided_slice %448 {offsets = [8, 128], sizes = [8, 128], strides = [1, 1]} : vector<16x256xf32> to vector<8x128xf32>
    %453 = vector.extract_strided_slice %248 {offsets = [0, 128], sizes = [8, 128], strides = [1, 1]} : vector<64x256xf32> to vector<8x128xf32>
    %454 = arith.addf %452, %453 : vector<8x128xf32>
    %455 = tpu.concatenate %451, %454 in 0 : vector<8x128xf32>, vector<8x128xf32> -> vector<16x128xf32>
    %456 = math.tanh %455 : vector<16x128xf32>
    %cst_76 = arith.constant 0.000000e+00 : f32
    %457 = vector.broadcast %cst_76 : f32 to vector<16x128xf32>
    %458 = arith.subf %457, %455 : vector<16x128xf32>
    %459 = math.exp %458 : vector<16x128xf32>
    %cst_77 = arith.constant 1.000000e+00 : f32
    %460 = vector.broadcast %cst_77 : f32 to vector<16x128xf32>
    %461 = arith.addf %460, %459 : vector<16x128xf32>
    %cst_78 = arith.constant 1.000000e+00 : f32
    %462 = vector.broadcast %cst_78 : f32 to vector<16x128xf32>
    %463 = arith.divf %462, %461 : vector<16x128xf32>
    %464 = arith.select %5, %456, %463 : vector<16x128xi1>, vector<16x128xf32>
    %465 = vector.extract_strided_slice %464 {offsets = [0, 0], sizes = [16, 32], strides = [1, 1]} : vector<16x128xf32> to vector<16x32xf32>
    %466 = vector.extract_strided_slice %464 {offsets = [0, 32], sizes = [16, 32], strides = [1, 1]} : vector<16x128xf32> to vector<16x32xf32>
    %467 = vector.extract_strided_slice %464 {offsets = [0, 64], sizes = [16, 32], strides = [1, 1]} : vector<16x128xf32> to vector<16x32xf32>
    %468 = vector.extract_strided_slice %464 {offsets = [0, 96], sizes = [16, 32], strides = [1, 1]} : vector<16x128xf32> to vector<16x32xf32>
    %469 = arith.mulf %466, %443 : vector<16x32xf32>
    %470 = arith.mulf %465, %467 : vector<16x32xf32>
    %471 = arith.addf %469, %470 : vector<16x32xf32>
    %472 = math.tanh %471 : vector<16x32xf32>
    %473 = arith.mulf %468, %472 : vector<16x32xf32>
    %474 = vector.extract_strided_slice %473 {offsets = [0, 0], sizes = [8, 32], strides = [1, 1]} : vector<16x32xf32> to vector<8x32xf32>
    %475 = vector.extract_strided_slice %473 {offsets = [8, 0], sizes = [8, 32], strides = [1, 1]} : vector<16x32xf32> to vector<8x32xf32>
    %476 = tpu.concatenate %278, %306, %334, %362, %390, %418, %446, %474 in 0 : vector<8x32xf32>, vector<8x32xf32>, vector<8x32xf32>, vector<8x32xf32>, vector<8x32xf32>, vector<8x32xf32>, vector<8x32xf32>, vector<8x32xf32> -> vector<64x32xf32>
    %477 = tpu.concatenate %475, %447, %419, %391, %363, %335, %307, %279 in 0 : vector<8x32xf32>, vector<8x32xf32>, vector<8x32xf32>, vector<8x32xf32>, vector<8x32xf32>, vector<8x32xf32>, vector<8x32xf32>, vector<8x32xf32> -> vector<64x32xf32>
    %c160 = arith.constant 160 : index
    %c0_79 = arith.constant 0 : index
    %478 = vector.load %arg2[%c160, %c0_79] : memref<232x256xf32, #tpu.memory_space<vmem>>, vector<32x128xf32>
    %c192 = arith.constant 192 : index
    %c0_80 = arith.constant 0 : index
    %479 = vector.load %arg2[%c192, %c0_80] : memref<232x256xf32, #tpu.memory_space<vmem>>, vector<32x128xf32>
    %c224 = arith.constant 224 : index
    %c0_81 = arith.constant 0 : index
    %480 = vector.load %arg2[%c224, %c0_81] : memref<232x256xf32, #tpu.memory_space<vmem>>, vector<1x128xf32>
    %cst_82 = arith.constant dense<0.000000e+00> : vector<64x128xf32>
    %481 = tpu.matmul %476, %478, %cst_82 {dimension_numbers = #tpu.dot_dimension_numbers<[1], [0], [0], [1], [0, 0, 1, 1], [], []>} : vector<64x32xf32>, vector<32x128xf32>, vector<64x128xf32> -> vector<64x128xf32>
    %cst_83 = arith.constant dense<0.000000e+00> : vector<64x128xf32>
    %482 = tpu.matmul %477, %479, %cst_83 {dimension_numbers = #tpu.dot_dimension_numbers<[1], [0], [0], [1], [0, 0, 1, 1], [], []>} : vector<64x32xf32>, vector<32x128xf32>, vector<64x128xf32> -> vector<64x128xf32>
    %483 = arith.addf %481, %482 : vector<64x128xf32>
    %484 = vector.broadcast %480 : vector<1x128xf32> to vector<64x128xf32>
    %485 = arith.addf %483, %484 : vector<64x128xf32>
    %cst_84 = arith.constant 0.000000e+00 : f32
    %486 = vector.broadcast %cst_84 : f32 to vector<64x128xf32>
    %487 = arith.subf %486, %485 : vector<64x128xf32>
    %488 = math.exp %487 : vector<64x128xf32>
    %cst_85 = arith.constant 1.000000e+00 : f32
    %489 = vector.broadcast %cst_85 : f32 to vector<64x128xf32>
    %490 = arith.addf %489, %488 : vector<64x128xf32>
    %cst_86 = arith.constant 1.000000e+00 : f32
    %491 = vector.broadcast %cst_86 : f32 to vector<64x128xf32>
    %492 = arith.divf %491, %490 : vector<64x128xf32>
    %c0_87 = arith.constant 0 : index
    %c0_88 = arith.constant 0 : index
    %493 = vector.load %arg3[%c0_87, %c0_88] : memref<64x128xf32, #tpu.memory_space<vmem>>, vector<64x128xf32>
    tpu.vector_store %arg3[%c0_87, %c0_88], %492 {strides = array<i32>} : memref<64x128xf32, #tpu.memory_space<vmem>>, vector<64x128xf32>,
    return
  }
  func.func @transform_0(%arg0: i32) -> (i32, i32) {
    %c0_i32 = arith.constant 0 : i32
    %c0_i32_0 = arith.constant 0 : i32
    %c0_i32_1 = arith.constant 0 : i32
    return %c0_i32, %c0_i32_0 : i32, i32
  }
  func.func @transform_1(%arg0: i32) -> (i32, i32) {
    %c0_i32 = arith.constant 0 : i32
    %c0_i32_0 = arith.constant 0 : i32
    %c0_i32_1 = arith.constant 0 : i32
    return %c0_i32, %c0_i32_0 : i32, i32
  }
  func.func @transform_2(%arg0: i32) -> (i32, i32) {
    %c0_i32 = arith.constant 0 : i32
    %c0_i32_0 = arith.constant 0 : i32
    %c0_i32_1 = arith.constant 0 : i32
    return %c0_i32, %c0_i32_0 : i32, i32
  }
}

</mosaic_0001>

<llo_original>
// kernel: _lambda_.1
$region0: #{_lambda_.1}
  #allocation0 [shape = 'u32[]', space=smem, size = 0x4, offset = 0x4, fixed_abs, tag = 'smem constant byte address 0x4 - core index']
  #allocation1 [shape = 'u32[144,128]{1,0:T(1,128)}', space=vmem, size = 0x12000, scoped, tag = 'internal scratch']
  %s0 = inlined_call_operand.vmem [shape: f32[64,16], index: 0, kind: input, shape index: {}]
  %s1 = inlined_call_operand.vmem [shape: f32[232,256], index: 1, kind: input, shape index: {}]
  %s2 = inlined_call_operand.vmem [shape: f32[64,128], index: 2, kind: output, shape index: {}]
  %s3 = sld [smem:[#allocation0]]
  $region18: #{_lambda_.1} parent=0
    _
  %s5 = ssub.s32 1, %s3
  %s6 = scalar_select 0, %s5, %s3
  // Predicated region
  $region2: #{_lambda_.1} parent=0 // pred_check
    _
  $region3: #{_lambda_.1} parent=0 // pred_check_branch
    %8 = sbr.rel (0) target = $region5
  $region4: #{_lambda_.1} parent=0 // pred_region
    _
  $region5: #{_lambda_.1} parent=0 // pred_fallthru
    _
  // Predicated region
  $region6: #{_lambda_.1} parent=0 // pred_check
    _
  $region7: #{_lambda_.1} parent=0 // pred_check_branch
    %10 = sbr.rel (0) target = $region9
  $region8: #{_lambda_.1} parent=0 // pred_region
    _
  $region9: #{_lambda_.1} parent=0 // pred_fallthru
    _
  %v11 = vlaneseq
  %v12 = vand.u32 %v11, 127
  %vm13 = vcmp.ge.s32.totalorder %v12, 64
  %vm14 = vcmp.lt.s32.totalorder %v12, 96
  %vm15 = vmand %vm13, %vm14
  %v16 = vld [vmem:[%s0] sm:$0xff]
  %v17 = vld [vmem:[%s0 + $0x8] sm:$0xff]
  %v18 = vld [vmem:[%s0 + $0x10] sm:$0xff]
  %v19 = vld [vmem:[%s0 + $0x18] sm:$0xff]
  %v20 = vld [vmem:[%s0 + $0x20] sm:$0xff]
  %v21 = vld [vmem:[%s0 + $0x28] sm:$0xff]
  %v22 = vld [vmem:[%s0 + $0x30] sm:$0xff]
  %v23 = vld [vmem:[%s0 + $0x38] sm:$0xff]
  %s24 = scalar_lea.vmem %s1, 96
  %v25 = vld [vmem:[%s24] ss:$8 sm:$0x3]
  %v26 = vld [vmem:[%s1] sm:$0xff]
  %v27 = vld [vmem:[%s1 + $0x8] sm:$0xff]
  %v28 = vld [vmem:[%s1 + $0x10] sm:$0xff]
  %v29 = vld [vmem:[%s1 + $0x18] sm:$0xff]
  %v31 = vlaneseq
  %v32 = vshrl.u32 %v31, 7
  %v33 = vsub.s32 0, %v32
  %v34 = vrot.slane %v25, %v33
  %v35 = vlaneseq
  %v36 = vshrl.u32 %v35, 7
  %v37 = vsub.s32 1, %v36
  %v38 = vrot.slane %v25, %v37
  %vm41 = vcmask 130048
  %v43 = vsel %vm41, %v16, 0
  %v46 = vsel %vm41, %v17, 0
  %v49 = vsel %vm41, %v18, 0
  %v52 = vsel %vm41, %v19, 0
  %v55 = vsel %vm41, %v20, 0
  %v58 = vsel %vm41, %v21, 0
  %v61 = vsel %vm41, %v22, 0
  %v64 = vsel %vm41, %v23, 0
  %66 = vmatprep.subr.mxu0 %v27
  %67 = vmatpush1.msra.mxu0 %v26
  %68 = vmatprep.subr.mxu0 %v29
  %69 = vmatpush1.msra.mxu0 %v28
  %70 = vmatprep.subr.mxu0 0.0
  %71 = vmatpush1.msra.mxu0 0.0
  %72 = vmatprep.subr.mxu0 0.0
  %73 = vmatpush1.msra.mxu0 0.0
  %74 = vmatprep.subr.mxu0 0.0
  %75 = vmatpush1.msra.mxu0 0.0
  %76 = vmatprep.subr.mxu0 0.0
  %77 = vmatpush1.msra.mxu0 0.0
  %78 = vmatprep.subr.mxu0 0.0
  %79 = vmatpush1.msra.mxu0 0.0
  %80 = vmatprep.subr.mxu0 0.0
  %81 = vmatpush1.msra.mxu0 0.0
  %82 = vmatprep.subr.mxu0 0.0
  %83 = vmatpush1.msra.mxu0 0.0
  %84 = vmatprep.subr.mxu0 0.0
  %85 = vmatpush1.msra.mxu0 0.0
  %86 = vmatprep.subr.mxu0 0.0
  %87 = vmatpush1.msra.mxu0 0.0
  %88 = vmatprep.subr.mxu0 0.0
  %89 = vmatpush1.msra.mxu0 0.0
  %90 = vmatprep.subr.mxu0 0.0
  %91 = vmatpush1.msra.mxu0 0.0
  %92 = vmatprep.subr.mxu0 0.0
  %93 = vmatpush1.msra.mxu0 0.0
  %94 = vmatprep.subr.mxu0 0.0
  %95 = vmatpush1.msra.mxu0 0.0
  %96 = vmatprep.subr.mxu0 0.0
  %97 = vmatpush1.msra.mxu0 0.0
  %98 = vmatprep.subr.mxu0 0.0
  %99 = vmatpush1.msra.mxu0 0.0
  %100 = vmatprep.subr.mxu0 0.0
  %101 = vmatpush1.msra.mxu0 0.0
  %102 = vmatprep.subr.mxu0 0.0
  %103 = vmatpush1.msra.mxu0 0.0
  %104 = vmatprep.subr.mxu0 0.0
  %105 = vmatpush1.msra.mxu0 0.0
  %106 = vmatprep.subr.mxu0 0.0
  %107 = vmatpush1.msra.mxu0 0.0
  %108 = vmatprep.subr.mxu0 0.0
  %109 = vmatpush1.msra.mxu0 0.0
  %110 = vmatprep.subr.mxu0 0.0
  %111 = vmatpush1.msra.mxu0 0.0
  %112 = vmatprep.subr.mxu0 0.0
  %113 = vmatpush1.msra.mxu0 0.0
  %114 = vmatprep.subr.mxu0 0.0
  %115 = vmatpush1.msra.mxu0 0.0
  %116 = vmatprep.subr.mxu0 0.0
  %117 = vmatpush1.msra.mxu0 0.0
  %118 = vmatprep.subr.mxu0 0.0
  %119 = vmatpush1.msra.mxu0 0.0
  %120 = vmatprep.subr.mxu0 0.0
  %121 = vmatpush1.msra.mxu0 0.0
  %122 = vmatprep.subr.mxu0 0.0
  %123 = vmatpush1.msra.mxu0 0.0
  %124 = vmatprep.subr.mxu0 0.0
  %125 = vmatpush1.msra.mxu0 0.0
  %126 = vmatprep.subr.mxu0 0.0
  %127 = vmatpush1.msra.mxu0 0.0
  %128 = vmatprep.subr.mxu0 0.0
  %129 = vmatpush1.msra.mxu0 0.0
  %130 = vmatprep.mubr.f32.mxu0 0.0
  %131 = vmatmul.mubr.f32.gmra.mrb[0].mxu0 %v43
  %v132 = vpop.f32.mrb[0].mxu0
  %v133 = vadd.f32 %v34, %v132
  %v134 = vpop.f32.mrb[0].mxu0
  %v135 = vadd.f32 %v38, %v134
  %136 = vmatprep.mubr.f32.mxu0 0.0
  %137 = vmatmul.mubr.f32.gmra.mrb[0].mxu0 %v46
  %v138 = vpop.f32.mrb[0].mxu0
  %v139 = vadd.f32 %v34, %v138
  %v140 = vpop.f32.mrb[0].mxu0
  %v141 = vadd.f32 %v38, %v140
  %142 = vmatprep.mubr.f32.mxu0 0.0
  %143 = vmatmul.mubr.f32.gmra.mrb[0].mxu0 %v49
  %v144 = vpop.f32.mrb[0].mxu0
  %v145 = vadd.f32 %v34, %v144
  %v146 = vpop.f32.mrb[0].mxu0
  %v147 = vadd.f32 %v38, %v146
  %148 = vmatprep.mubr.f32.mxu0 0.0
  %149 = vmatmul.mubr.f32.gmra.mrb[0].mxu0 %v52
  %v150 = vpop.f32.mrb[0].mxu0
  %v151 = vadd.f32 %v34, %v150
  %v152 = vpop.f32.mrb[0].mxu0
  %v153 = vadd.f32 %v38, %v152
  %154 = vmatprep.mubr.f32.mxu0 0.0
  %155 = vmatmul.mubr.f32.gmra.mrb[0].mxu0 %v55
  %v156 = vpop.f32.mrb[0].mxu0
  %v157 = vadd.f32 %v34, %v156
  %v158 = vpop.f32.mrb[0].mxu0
  %v159 = vadd.f32 %v38, %v158
  %160 = vmatprep.mubr.f32.mxu0 0.0
  %161 = vmatmul.mubr.f32.gmra.mrb[0].mxu0 %v58
  %v162 = vpop.f32.mrb[0].mxu0
  %v163 = vadd.f32 %v34, %v162
  %v164 = vpop.f32.mrb[0].mxu0
  %v165 = vadd.f32 %v38, %v164
  %166 = vmatprep.mubr.f32.mxu0 0.0
  %167 = vmatmul.mubr.f32.gmra.mrb[0].mxu0 %v61
  %v168 = vpop.f32.mrb[0].mxu0
  %v169 = vadd.f32 %v34, %v168
  %v170 = vpop.f32.mrb[0].mxu0
  %v171 = vadd.f32 %v38, %v170
  %172 = vmatprep.mubr.f32.mxu0 0.0
  %173 = vmatmul.mubr.f32.gmra.mrb[0].mxu0 %v64
  %v174 = vpop.f32.mrb[0].mxu0
  %v175 = vadd.f32 %v34, %v174
  %v176 = vpop.f32.mrb[0].mxu0
  %v177 = vadd.f32 %v38, %v176
  %178 = vdwg.mxu0
  %v179 = vld [vmem:[%s1 + $0x20] sm:$0xff]
  %v180 = vld [vmem:[%s1 + $0x28] sm:$0xff]
  %v181 = vld [vmem:[%s1 + $0x30] sm:$0xff]
  %v182 = vld [vmem:[%s1 + $0x38] sm:$0xff]
  %v183 = vld [vmem:[%s1 + $0x40] sm:$0xff]
  %v184 = vld [vmem:[%s1 + $0x48] sm:$0xff]
  %v185 = vld [vmem:[%s1 + $0x50] sm:$0xff]
  %v186 = vld [vmem:[%s1 + $0x58] sm:$0xff]
  %vm187 = vcmask 261120
  %v189 = vsel %vm187, 0.0, 0
  %191 = vmatprep.subr.mxu0 %v180
  %192 = vmatpush1.msra.mxu0 %v179
  %193 = vmatprep.subr.mxu0 %v182
  %194 = vmatpush1.msra.mxu0 %v181
  %195 = vmatprep.subr.mxu0 %v184
  %196 = vmatpush1.msra.mxu0 %v183
  %197 = vmatprep.subr.mxu0 %v186
  %198 = vmatpush1.msra.mxu0 %v185
  %199 = vmatprep.subr.mxu0 0.0
  %200 = vmatpush1.msra.mxu0 0.0
  %201 = vmatprep.subr.mxu0 0.0
  %202 = vmatpush1.msra.mxu0 0.0
  %203 = vmatprep.subr.mxu0 0.0
  %204 = vmatpush1.msra.mxu0 0.0
  %205 = vmatprep.subr.mxu0 0.0
  %206 = vmatpush1.msra.mxu0 0.0
  %207 = vmatprep.subr.mxu0 0.0
  %208 = vmatpush1.msra.mxu0 0.0
  %209 = vmatprep.subr.mxu0 0.0
  %210 = vmatpush1.msra.mxu0 0.0
  %211 = vmatprep.subr.mxu0 0.0
  %212 = vmatpush1.msra.mxu0 0.0
  %213 = vmatprep.subr.mxu0 0.0
  %214 = vmatpush1.msra.mxu0 0.0
  %215 = vmatprep.subr.mxu0 0.0
  %216 = vmatpush1.msra.mxu0 0.0
  %217 = vmatprep.subr.mxu0 0.0
  %218 = vmatpush1.msra.mxu0 0.0
  %219 = vmatprep.subr.mxu0 0.0
  %220 = vmatpush1.msra.mxu0 0.0
  %221 = vmatprep.subr.mxu0 0.0
  %222 = vmatpush1.msra.mxu0 0.0
  %223 = vmatprep.subr.mxu0 0.0
  %224 = vmatpush1.msra.mxu0 0.0
  %225 = vmatprep.subr.mxu0 0.0
  %226 = vmatpush1.msra.mxu0 0.0
  %227 = vmatprep.subr.mxu0 0.0
  %228 = vmatpush1.msra.mxu0 0.0
  %229 = vmatprep.subr.mxu0 0.0
  %230 = vmatpush1.msra.mxu0 0.0
  %231 = vmatprep.subr.mxu0 0.0
  %232 = vmatpush1.msra.mxu0 0.0
  %233 = vmatprep.subr.mxu0 0.0
  %234 = vmatpush1.msra.mxu0 0.0
  %235 = vmatprep.subr.mxu0 0.0
  %236 = vmatpush1.msra.mxu0 0.0
  %237 = vmatprep.subr.mxu0 0.0
  %238 = vmatpush1.msra.mxu0 0.0
  %239 = vmatprep.subr.mxu0 0.0
  %240 = vmatpush1.msra.mxu0 0.0
  %241 = vmatprep.subr.mxu0 0.0
  %242 = vmatpush1.msra.mxu0 0.0
  %243 = vmatprep.subr.mxu0 0.0
  %244 = vmatpush1.msra.mxu0 0.0
  %245 = vmatprep.subr.mxu0 0.0
  %246 = vmatpush1.msra.mxu0 0.0
  %247 = vmatprep.subr.mxu0 0.0
  %248 = vmatpush1.msra.mxu0 0.0
  %249 = vmatprep.subr.mxu0 0.0
  %250 = vmatpush1.msra.mxu0 0.0
  %251 = vmatprep.subr.mxu0 0.0
  %252 = vmatpush1.msra.mxu0 0.0
  %253 = vmatprep.subr.mxu0 0.0
  %254 = vmatpush1.msra.mxu0 0.0
  %255 = vmatprep.mubr.f32.mxu0 0.0
  %256 = vmatmul.mubr.f32.gmra.mrb[0].mxu0 %v189
  %v257 = vpop.f32.mrb[0].mxu0
  %v258 = vadd.f32 0.0, %v257
  %v259 = vpop.f32.mrb[0].mxu0
  %260 = vmatprep.mubr.f32.mxu0 0.0
  %261 = vmatmul.mubr.f32.gmra.mrb[0].mxu0 %v189
  %v262 = vpop.f32.mrb[0].mxu0
  %v263 = vpop.f32.mrb[0].mxu0
  %v264 = vadd.f32 0.0, %v263
  %265 = vdwg.mxu0
  %v266 = vadd.f32 %v258, %v133
  %v267 = vadd.f32 %v264, %v177
  %v268 = vtanh.pop %v266
  %v269 = vtanh.pop %v267
  %v270 = vsub.f32 0.0, %v266
  %v271 = vsub.f32 0.0, %v267
  %v272 = vmul.f32 %v270, 1.442695
  %v273 = vpow.pop %v272
  %v274 = vmul.f32 %v271, 1.442695
  %v275 = vpow.pop %v274
  %v276 = vadd.f32 %v273, 1.0
  %v277 = vadd.f32 %v275, 1.0
  %v278 = vrcp.pop %v276
  %v279 = vmul.f32 1.0, %v278
  %v280 = vrcp.pop %v277
  %v281 = vmul.f32 1.0, %v280
  %v282 = vsel %vm15, %v268, %v279
  %v283 = vsel %vm15, %v269, %v281
  %v284 = vmul.f32 %v282, 0.0
  %v285 = vmul.f32 %v283, 0.0
  %288 = vrot.lane.b32.xlu0 %v282, 64
  %v289 = vpop.permute.xlu0 %288
  %290 = vrot.lane.b32.xlu0 %v283, 64
  %v291 = vpop.permute.xlu0 %290
  %v294 = vmul.f32 %v282, %v289
  %v295 = vmul.f32 %v283, %v291
  %298 = vrot.lane.b32.xlu0 %v294, 32
  %v299 = vpop.permute.xlu0 %298
  %300 = vrot.lane.b32.xlu0 %v295, 32
  %v301 = vpop.permute.xlu0 %300
  %v304 = vadd.f32 %v284, %v299
  %v305 = vadd.f32 %v285, %v301
  %v306 = vtanh.pop %v304
  %v307 = vtanh.pop %v305
  %310 = vrot.lane.b32.xlu0 %v306, 64
  %v311 = vpop.permute.xlu0 %310
  %312 = vrot.lane.b32.xlu0 %v307, 64
  %v313 = vpop.permute.xlu0 %312
  %v316 = vmul.f32 %v282, %v311
  %v317 = vmul.f32 %v283, %v313
  %320 = vrot.lane.b32.xlu0 %v316, 32
  %v321 = vpop.permute.xlu0 %320
  %322 = vrot.lane.b32.xlu0 %v317, 32
  %v323 = vpop.permute.xlu0 %322
  %v324 = vsel %vm187, %v321, 0
  %v326 = vsel %vm187, %v323, 0
  %328 = vmatprep.subr.mxu0 %v180
  %329 = vmatpush1.msra.mxu0 %v179
  %330 = vmatprep.subr.mxu0 %v182
  %331 = vmatpush1.msra.mxu0 %v181
  %332 = vmatprep.subr.mxu0 %v184
  %333 = vmatpush1.msra.mxu0 %v183
  %334 = vmatprep.subr.mxu0 %v186
  %335 = vmatpush1.msra.mxu0 %v185
  %336 = vmatprep.subr.mxu0 0.0
  %337 = vmatpush1.msra.mxu0 0.0
  %338 = vmatprep.subr.mxu0 0.0
  %339 = vmatpush1.msra.mxu0 0.0
  %340 = vmatprep.subr.mxu0 0.0
  %341 = vmatpush1.msra.mxu0 0.0
  %342 = vmatprep.subr.mxu0 0.0
  %343 = vmatpush1.msra.mxu0 0.0
  %344 = vmatprep.subr.mxu0 0.0
  %345 = vmatpush1.msra.mxu0 0.0
  %346 = vmatprep.subr.mxu0 0.0
  %347 = vmatpush1.msra.mxu0 0.0
  %348 = vmatprep.subr.mxu0 0.0
  %349 = vmatpush1.msra.mxu0 0.0
  %350 = vmatprep.subr.mxu0 0.0
  %351 = vmatpush1.msra.mxu0 0.0
  %352 = vmatprep.subr.mxu0 0.0
  %353 = vmatpush1.msra.mxu0 0.0
  %354 = vmatprep.subr.mxu0 0.0
  %355 = vmatpush1.msra.mxu0 0.0
  %356 = vmatprep.subr.mxu0 0.0
  %357 = vmatpush1.msra.mxu0 0.0
  %358 = vmatprep.subr.mxu0 0.0
  %359 = vmatpush1.msra.mxu0 0.0
  %360 = vmatprep.subr.mxu0 0.0
  %361 = vmatpush1.msra.mxu0 0.0
  %362 = vmatprep.subr.mxu0 0.0
  %363 = vmatpush1.msra.mxu0 0.0
  %364 = vmatprep.subr.mxu0 0.0
  %365 = vmatpush1.msra.mxu0 0.0
  %366 = vmatprep.subr.mxu0 0.0
  %367 = vmatpush1.msra.mxu0 0.0
  %368 = vmatprep.subr.mxu0 0.0
  %369 = vmatpush1.msra.mxu0 0.0
  %370 = vmatprep.subr.mxu0 0.0
  %371 = vmatpush1.msra.mxu0 0.0
  %372 = vmatprep.subr.mxu0 0.0
  %373 = vmatpush1.msra.mxu0 0.0
  %374 = vmatprep.subr.mxu0 0.0
  %375 = vmatpush1.msra.mxu0 0.0
  %376 = vmatprep.subr.mxu0 0.0
  %377 = vmatpush1.msra.mxu0 0.0
  %378 = vmatprep.subr.mxu0 0.0
  %379 = vmatpush1.msra.mxu0 0.0
  %380 = vmatprep.subr.mxu0 0.0
  %381 = vmatpush1.msra.mxu0 0.0
  %382 = vmatprep.subr.mxu0 0.0
  %383 = vmatpush1.msra.mxu0 0.0
  %384 = vmatprep.subr.mxu0 0.0
  %385 = vmatpush1.msra.mxu0 0.0
  %386 = vmatprep.subr.mxu0 0.0
  %387 = vmatpush1.msra.mxu0 0.0
  %388 = vmatprep.subr.mxu0 0.0
  %389 = vmatpush1.msra.mxu0 0.0
  %390 = vmatprep.subr.mxu0 0.0
  %391 = vmatpush1.msra.mxu0 0.0
  %392 = vmatprep.mubr.f32.mxu0 0.0
  %393 = vmatmul.mubr.f32.gmra.mrb[0].mxu0 %v324
  %v394 = vpop.f32.mrb[0].mxu0
  %v395 = vadd.f32 0.0, %v394
  %v396 = vpop.f32.mrb[0].mxu0
  %397 = vmatprep.mubr.f32.mxu0 0.0
  %398 = vmatmul.mubr.f32.gmra.mrb[0].mxu0 %v326
  %v399 = vpop.f32.mrb[0].mxu0
  %v400 = vpop.f32.mrb[0].mxu0
  %v401 = vadd.f32 0.0, %v400
  %402 = vdwg.mxu0
  %v403 = vadd.f32 %v395, %v139
  %v404 = vadd.f32 %v401, %v171
  %v405 = vtanh.pop %v403
  %v406 = vtanh.pop %v404
  %v407 = vsub.f32 0.0, %v403
  %v408 = vsub.f32 0.0, %v404
  %v409 = vmul.f32 %v407, 1.442695
  %v410 = vpow.pop %v409
  %v411 = vmul.f32 %v408, 1.442695
  %v412 = vpow.pop %v411
  %v413 = vadd.f32 %v410, 1.0
  %v414 = vadd.f32 %v412, 1.0
  %v415 = vrcp.pop %v413
  %v416 = vmul.f32 1.0, %v415
  %v417 = vrcp.pop %v414
  %v418 = vmul.f32 1.0, %v417
  %v419 = vsel %vm15, %v405, %v416
  %v420 = vsel %vm15, %v406, %v418
  %v421 = vmul.f32 %v419, %v304
  %v422 = vmul.f32 %v420, %v305
  %425 = vrot.lane.b32.xlu0 %v419, 64
  %v426 = vpop.permute.xlu0 %425
  %427 = vrot.lane.b32.xlu0 %v420, 64
  %v428 = vpop.permute.xlu0 %427
  %v431 = vmul.f32 %v419, %v426
  %v432 = vmul.f32 %v420, %v428
  %435 = vrot.lane.b32.xlu0 %v431, 32
  %v436 = vpop.permute.xlu0 %435
  %437 = vrot.lane.b32.xlu0 %v432, 32
  %v438 = vpop.permute.xlu0 %437
  %v441 = vadd.f32 %v421, %v436
  %v442 = vadd.f32 %v422, %v438
  %v443 = vtanh.pop %v441
  %v444 = vtanh.pop %v442
  %447 = vrot.lane.b32.xlu0 %v443, 64
  %v448 = vpop.permute.xlu0 %447
  %449 = vrot.lane.b32.xlu0 %v444, 64
  %v450 = vpop.permute.xlu0 %449
  %v453 = vmul.f32 %v419, %v448
  %v454 = vmul.f32 %v420, %v450
  %457 = vrot.lane.b32.xlu0 %v453, 32
  %v458 = vpop.permute.xlu0 %457
  %459 = vrot.lane.b32.xlu0 %v454, 32
  %v460 = vpop.permute.xlu0 %459
  %v461 = vsel %vm187, %v458, 0
  %v463 = vsel %vm187, %v460, 0
  %465 = vmatprep.subr.mxu0 %v180
  %466 = vmatpush1.msra.mxu0 %v179
  %467 = vmatprep.subr.mxu0 %v182
  %468 = vmatpush1.msra.mxu0 %v181
  %469 = vmatprep.subr.mxu0 %v184
  %470 = vmatpush1.msra.mxu0 %v183
  %471 = vmatprep.subr.mxu0 %v186
  %472 = vmatpush1.msra.mxu0 %v185
  %473 = vmatprep.subr.mxu0 0.0
  %474 = vmatpush1.msra.mxu0 0.0
  %475 = vmatprep.subr.mxu0 0.0
  %476 = vmatpush1.msra.mxu0 0.0
  %477 = vmatprep.subr.mxu0 0.0
  %478 = vmatpush1.msra.mxu0 0.0
  %479 = vmatprep.subr.mxu0 0.0
  %480 = vmatpush1.msra.mxu0 0.0
  %481 = vmatprep.subr.mxu0 0.0
  %482 = vmatpush1.msra.mxu0 0.0
  %483 = vmatprep.subr.mxu0 0.0
  %484 = vmatpush1.msra.mxu0 0.0
  %485 = vmatprep.subr.mxu0 0.0
  %486 = vmatpush1.msra.mxu0 0.0
  %487 = vmatprep.subr.mxu0 0.0
  %488 = vmatpush1.msra.mxu0 0.0
  %489 = vmatprep.subr.mxu0 0.0
  %490 = vmatpush1.msra.mxu0 0.0
  %491 = vmatprep.subr.mxu0 0.0
  %492 = vmatpush1.msra.mxu0 0.0
  %493 = vmatprep.subr.mxu0 0.0
  %494 = vmatpush1.msra.mxu0 0.0
  %495 = vmatprep.subr.mxu0 0.0
  %496 = vmatpush1.msra.mxu0 0.0
  %497 = vmatprep.subr.mxu0 0.0
  %498 = vmatpush1.msra.mxu0 0.0
  %499 = vmatprep.subr.mxu0 0.0
  %500 = vmatpush1.msra.mxu0 0.0
  %501 = vmatprep.subr.mxu0 0.0
  %502 = vmatpush1.msra.mxu0 0.0
  %503 = vmatprep.subr.mxu0 0.0
  %504 = vmatpush1.msra.mxu0 0.0
  %505 = vmatprep.subr.mxu0 0.0
  %506 = vmatpush1.msra.mxu0 0.0
  %507 = vmatprep.subr.mxu0 0.0
  %508 = vmatpush1.msra.mxu0 0.0
  %509 = vmatprep.subr.mxu0 0.0
  %510 = vmatpush1.msra.mxu0 0.0
  %511 = vmatprep.subr.mxu0 0.0
  %512 = vmatpush1.msra.mxu0 0.0
  %513 = vmatprep.subr.mxu0 0.0
  %514 = vmatpush1.msra.mxu0 0.0
  %515 = vmatprep.subr.mxu0 0.0
  %516 = vmatpush1.msra.mxu0 0.0
  %517 = vmatprep.subr.mxu0 0.0
  %518 = vmatpush1.msra.mxu0 0.0
  %519 = vmatprep.subr.mxu0 0.0
  %520 = vmatpush1.msra.mxu0 0.0
  %521 = vmatprep.subr.mxu0 0.0
  %522 = vmatpush1.msra.mxu0 0.0
  %523 = vmatprep.subr.mxu0 0.0
  %524 = vmatpush1.msra.mxu0 0.0
  %525 = vmatprep.subr.mxu0 0.0
  %526 = vmatpush1.msra.mxu0 0.0
  %527 = vmatprep.subr.mxu0 0.0
  %528 = vmatpush1.msra.mxu0 0.0
  %529 = vmatprep.mubr.f32.mxu0 0.0
  %530 = vmatmul.mubr.f32.gmra.mrb[0].mxu0 %v461
  %v531 = vpop.f32.mrb[0].mxu0
  %v532 = vadd.f32 0.0, %v531
  %v533 = vpop.f32.mrb[0].mxu0
  %534 = vmatprep.mubr.f32.mxu0 0.0
  %535 = vmatmul.mubr.f32.gmra.mrb[0].mxu0 %v463
  %v536 = vpop.f32.mrb[0].mxu0
  %v537 = vpop.f32.mrb[0].mxu0
  %v538 = vadd.f32 0.0, %v537
  %539 = vdwg.mxu0
  %v540 = vadd.f32 %v532, %v145
  %v541 = vadd.f32 %v538, %v165
  %v542 = vtanh.pop %v540
  %v543 = vtanh.pop %v541
  %v544 = vsub.f32 0.0, %v540
  %v545 = vsub.f32 0.0, %v541
  %v546 = vmul.f32 %v544, 1.442695
  %v547 = vpow.pop %v546
  %v548 = vmul.f32 %v545, 1.442695
  %v549 = vpow.pop %v548
  %v550 = vadd.f32 %v547, 1.0
  %v551 = vadd.f32 %v549, 1.0
  %v552 = vrcp.pop %v550
  %v553 = vmul.f32 1.0, %v552
  %v554 = vrcp.pop %v551
  %v555 = vmul.f32 1.0, %v554
  %v556 = vsel %vm15, %v542, %v553
  %v557 = vsel %vm15, %v543, %v555
  %v558 = vmul.f32 %v556, %v441
  %v559 = vmul.f32 %v557, %v442
  %562 = vrot.lane.b32.xlu0 %v556, 64
  %v563 = vpop.permute.xlu0 %562
  %564 = vrot.lane.b32.xlu0 %v557, 64
  %v565 = vpop.permute.xlu0 %564
  %v568 = vmul.f32 %v556, %v563
  %v569 = vmul.f32 %v557, %v565
  %572 = vrot.lane.b32.xlu0 %v568, 32
  %v573 = vpop.permute.xlu0 %572
  %574 = vrot.lane.b32.xlu0 %v569, 32
  %v575 = vpop.permute.xlu0 %574
  %v578 = vadd.f32 %v558, %v573
  %v579 = vadd.f32 %v559, %v575
  %v580 = vtanh.pop %v578
  %v581 = vtanh.pop %v579
  %584 = vrot.lane.b32.xlu0 %v580, 64
  %v585 = vpop.permute.xlu0 %584
  %586 = vrot.lane.b32.xlu0 %v581, 64
  %v587 = vpop.permute.xlu0 %586
  %v590 = vmul.f32 %v556, %v585
  %v591 = vmul.f32 %v557, %v587
  %594 = vrot.lane.b32.xlu0 %v590, 32
  %v595 = vpop.permute.xlu0 %594
  %596 = vrot.lane.b32.xlu0 %v591, 32
  %v597 = vpop.permute.xlu0 %596
  %v598 = vsel %vm187, %v595, 0
  %v600 = vsel %vm187, %v597, 0
  %602 = vmatprep.subr.mxu0 %v180
  %603 = vmatpush1.msra.mxu0 %v179
  %604 = vmatprep.subr.mxu0 %v182
  %605 = vmatpush1.msra.mxu0 %v181
  %606 = vmatprep.subr.mxu0 %v184
  %607 = vmatpush1.msra.mxu0 %v183
  %608 = vmatprep.subr.mxu0 %v186
  %609 = vmatpush1.msra.mxu0 %v185
  %610 = vmatprep.subr.mxu0 0.0
  %611 = vmatpush1.msra.mxu0 0.0
  %612 = vmatprep.subr.mxu0 0.0
  %613 = vmatpush1.msra.mxu0 0.0
  %614 = vmatprep.subr.mxu0 0.0
  %615 = vmatpush1.msra.mxu0 0.0
  %616 = vmatprep.subr.mxu0 0.0
  %617 = vmatpush1.msra.mxu0 0.0
  %618 = vmatprep.subr.mxu0 0.0
  %619 = vmatpush1.msra.mxu0 0.0
  %620 = vmatprep.subr.mxu0 0.0
  %621 = vmatpush1.msra.mxu0 0.0
  %622 = vmatprep.subr.mxu0 0.0
  %623 = vmatpush1.msra.mxu0 0.0
  %624 = vmatprep.subr.mxu0 0.0
  %625 = vmatpush1.msra.mxu0 0.0
  %626 = vmatprep.subr.mxu0 0.0
  %627 = vmatpush1.msra.mxu0 0.0
  %628 = vmatprep.subr.mxu0 0.0
  %629 = vmatpush1.msra.mxu0 0.0
  %630 = vmatprep.subr.mxu0 0.0
  %631 = vmatpush1.msra.mxu0 0.0
  %632 = vmatprep.subr.mxu0 0.0
  %633 = vmatpush1.msra.mxu0 0.0
  %634 = vmatprep.subr.mxu0 0.0
  %635 = vmatpush1.msra.mxu0 0.0
  %636 = vmatprep.subr.mxu0 0.0
  %637 = vmatpush1.msra.mxu0 0.0
  %638 = vmatprep.subr.mxu0 0.0
  %639 = vmatpush1.msra.mxu0 0.0
  %640 = vmatprep.subr.mxu0 0.0
  %641 = vmatpush1.msra.mxu0 0.0
  %642 = vmatprep.subr.mxu0 0.0
  %643 = vmatpush1.msra.mxu0 0.0
  %644 = vmatprep.subr.mxu0 0.0
  %645 = vmatpush1.msra.mxu0 0.0
  %646 = vmatprep.subr.mxu0 0.0
  %647 = vmatpush1.msra.mxu0 0.0
  %648 = vmatprep.subr.mxu0 0.0
  %649 = vmatpush1.msra.mxu0 0.0
  %650 = vmatprep.subr.mxu0 0.0
  %651 = vmatpush1.msra.mxu0 0.0
  %652 = vmatprep.subr.mxu0 0.0
  %653 = vmatpush1.msra.mxu0 0.0
  %654 = vmatprep.subr.mxu0 0.0
  %655 = vmatpush1.msra.mxu0 0.0
  %656 = vmatprep.subr.mxu0 0.0
  %657 = vmatpush1.msra.mxu0 0.0
  %658 = vmatprep.subr.mxu0 0.0
  %659 = vmatpush1.msra.mxu0 0.0
  %660 = vmatprep.subr.mxu0 0.0
  %661 = vmatpush1.msra.mxu0 0.0
  %662 = vmatprep.subr.mxu0 0.0
  %663 = vmatpush1.msra.mxu0 0.0
  %664 = vmatprep.subr.mxu0 0.0
  %665 = vmatpush1.msra.mxu0 0.0
  %666 = vmatprep.mubr.f32.mxu0 0.0
  %667 = vmatmul.mubr.f32.gmra.mrb[0].mxu0 %v598
  %v668 = vpop.f32.mrb[0].mxu0
  %v669 = vadd.f32 0.0, %v668
  %v670 = vpop.f32.mrb[0].mxu0
  %671 = vmatprep.mubr.f32.mxu0 0.0
  %672 = vmatmul.mubr.f32.gmra.mrb[0].mxu0 %v600
  %v673 = vpop.f32.mrb[0].mxu0
  %v674 = vpop.f32.mrb[0].mxu0
  %v675 = vadd.f32 0.0, %v674
  %676 = vdwg.mxu0
  %v677 = vadd.f32 %v669, %v151
  %v678 = vadd.f32 %v675, %v159
  %v679 = vtanh.pop %v677
  %v680 = vtanh.pop %v678
  %v681 = vsub.f32 0.0, %v677
  %v682 = vsub.f32 0.0, %v678
  %v683 = vmul.f32 %v681, 1.442695
  %v684 = vpow.pop %v683
  %v685 = vmul.f32 %v682, 1.442695
  %v686 = vpow.pop %v685
  %v687 = vadd.f32 %v684, 1.0
  %v688 = vadd.f32 %v686, 1.0
  %v689 = vrcp.pop %v687
  %v690 = vmul.f32 1.0, %v689
  %v691 = vrcp.pop %v688
  %v692 = vmul.f32 1.0, %v691
  %v693 = vsel %vm15, %v679, %v690
  %v694 = vsel %vm15, %v680, %v692
  %v695 = vmul.f32 %v693, %v578
  %v696 = vmul.f32 %v694, %v579
  %699 = vrot.lane.b32.xlu0 %v693, 64
  %v700 = vpop.permute.xlu0 %699
  %701 = vrot.lane.b32.xlu0 %v694, 64
  %v702 = vpop.permute.xlu0 %701
  %v705 = vmul.f32 %v693, %v700
  %v706 = vmul.f32 %v694, %v702
  %709 = vrot.lane.b32.xlu0 %v705, 32
  %v710 = vpop.permute.xlu0 %709
  %711 = vrot.lane.b32.xlu0 %v706, 32
  %v712 = vpop.permute.xlu0 %711
  %v715 = vadd.f32 %v695, %v710
  %v716 = vadd.f32 %v696, %v712
  %v717 = vtanh.pop %v715
  %v718 = vtanh.pop %v716
  %721 = vrot.lane.b32.xlu0 %v717, 64
  %v722 = vpop.permute.xlu0 %721
  %723 = vrot.lane.b32.xlu0 %v718, 64
  %v724 = vpop.permute.xlu0 %723
  %v727 = vmul.f32 %v693, %v722
  %v728 = vmul.f32 %v694, %v724
  %731 = vrot.lane.b32.xlu0 %v727, 32
  %v732 = vpop.permute.xlu0 %731
  %733 = vrot.lane.b32.xlu0 %v728, 32
  %v734 = vpop.permute.xlu0 %733
  %v735 = vsel %vm187, %v732, 0
  %v737 = vsel %vm187, %v734, 0
  %739 = vmatprep.subr.mxu0 %v180
  %740 = vmatpush1.msra.mxu0 %v179
  %741 = vmatprep.subr.mxu0 %v182
  %742 = vmatpush1.msra.mxu0 %v181
  %743 = vmatprep.subr.mxu0 %v184
  %744 = vmatpush1.msra.mxu0 %v183
  %745 = vmatprep.subr.mxu0 %v186
  %746 = vmatpush1.msra.mxu0 %v185
  %747 = vmatprep.subr.mxu0 0.0
  %748 = vmatpush1.msra.mxu0 0.0
  %749 = vmatprep.subr.mxu0 0.0
  %750 = vmatpush1.msra.mxu0 0.0
  %751 = vmatprep.subr.mxu0 0.0
  %752 = vmatpush1.msra.mxu0 0.0
  %753 = vmatprep.subr.mxu0 0.0
  %754 = vmatpush1.msra.mxu0 0.0
  %755 = vmatprep.subr.mxu0 0.0
  %756 = vmatpush1.msra.mxu0 0.0
  %757 = vmatprep.subr.mxu0 0.0
  %758 = vmatpush1.msra.mxu0 0.0
  %759 = vmatprep.subr.mxu0 0.0
  %760 = vmatpush1.msra.mxu0 0.0
  %761 = vmatprep.subr.mxu0 0.0
  %762 = vmatpush1.msra.mxu0 0.0
  %763 = vmatprep.subr.mxu0 0.0
  %764 = vmatpush1.msra.mxu0 0.0
  %765 = vmatprep.subr.mxu0 0.0
  %766 = vmatpush1.msra.mxu0 0.0
  %767 = vmatprep.subr.mxu0 0.0
  %768 = vmatpush1.msra.mxu0 0.0
  %769 = vmatprep.subr.mxu0 0.0
  %770 = vmatpush1.msra.mxu0 0.0
  %771 = vmatprep.subr.mxu0 0.0
  %772 = vmatpush1.msra.mxu0 0.0
  %773 = vmatprep.subr.mxu0 0.0
  %774 = vmatpush1.msra.mxu0 0.0
  %775 = vmatprep.subr.mxu0 0.0
  %776 = vmatpush1.msra.mxu0 0.0
  %777 = vmatprep.subr.mxu0 0.0
  %778 = vmatpush1.msra.mxu0 0.0
  %779 = vmatprep.subr.mxu0 0.0
  %780 = vmatpush1.msra.mxu0 0.0
  %781 = vmatprep.subr.mxu0 0.0
  %782 = vmatpush1.msra.mxu0 0.0
  %783 = vmatprep.subr.mxu0 0.0
  %784 = vmatpush1.msra.mxu0 0.0
  %785 = vmatprep.subr.mxu0 0.0
  %786 = vmatpush1.msra.mxu0 0.0
  %787 = vmatprep.subr.mxu0 0.0
  %788 = vmatpush1.msra.mxu0 0.0
  %789 = vmatprep.subr.mxu0 0.0
  %790 = vmatpush1.msra.mxu0 0.0
  %791 = vmatprep.subr.mxu0 0.0
  %792 = vmatpush1.msra.mxu0 0.0
  %793 = vmatprep.subr.mxu0 0.0
  %794 = vmatpush1.msra.mxu0 0.0
  %795 = vmatprep.subr.mxu0 0.0
  %796 = vmatpush1.msra.mxu0 0.0
  %797 = vmatprep.subr.mxu0 0.0
  %798 = vmatpush1.msra.mxu0 0.0
  %799 = vmatprep.subr.mxu0 0.0
  %800 = vmatpush1.msra.mxu0 0.0
  %801 = vmatprep.subr.mxu0 0.0
  %802 = vmatpush1.msra.mxu0 0.0
  %803 = vmatprep.mubr.f32.mxu0 0.0
  %804 = vmatmul.mubr.f32.gmra.mrb[0].mxu0 %v735
  %v805 = vpop.f32.mrb[0].mxu0
  %v806 = vadd.f32 0.0, %v805
  %v807 = vpop.f32.mrb[0].mxu0
  %808 = vmatprep.mubr.f32.mxu0 0.0
  %809 = vmatmul.mubr.f32.gmra.mrb[0].mxu0 %v737
  %v810 = vpop.f32.mrb[0].mxu0
  %v811 = vpop.f32.mrb[0].mxu0
  %v812 = vadd.f32 0.0, %v811
  %813 = vdwg.mxu0
  %v814 = vadd.f32 %v806, %v157
  %v815 = vadd.f32 %v812, %v153
  %v816 = vtanh.pop %v814
  %v817 = vtanh.pop %v815
  %v818 = vsub.f32 0.0, %v814
  %v819 = vsub.f32 0.0, %v815
  %v820 = vmul.f32 %v818, 1.442695
  %v821 = vpow.pop %v820
  %v822 = vmul.f32 %v819, 1.442695
  %v823 = vpow.pop %v822
  %v824 = vadd.f32 %v821, 1.0
  %v825 = vadd.f32 %v823, 1.0
  %v826 = vrcp.pop %v824
  %v827 = vmul.f32 1.0, %v826
  %v828 = vrcp.pop %v825
  %v829 = vmul.f32 1.0, %v828
  %v830 = vsel %vm15, %v816, %v827
  %v831 = vsel %vm15, %v817, %v829
  %v832 = vmul.f32 %v830, %v715
  %v833 = vmul.f32 %v831, %v716
  %836 = vrot.lane.b32.xlu0 %v830, 64
  %v837 = vpop.permute.xlu0 %836
  %838 = vrot.lane.b32.xlu0 %v831, 64
  %v839 = vpop.permute.xlu0 %838
  %v842 = vmul.f32 %v830, %v837
  %v843 = vmul.f32 %v831, %v839
  %846 = vrot.lane.b32.xlu0 %v842, 32
  %v847 = vpop.permute.xlu0 %846
  %848 = vrot.lane.b32.xlu0 %v843, 32
  %v849 = vpop.permute.xlu0 %848
  %v852 = vadd.f32 %v832, %v847
  %v853 = vadd.f32 %v833, %v849
  %v854 = vtanh.pop %v852
  %v855 = vtanh.pop %v853
  %858 = vrot.lane.b32.xlu0 %v854, 64
  %v859 = vpop.permute.xlu0 %858
  %860 = vrot.lane.b32.xlu0 %v855, 64
  %v861 = vpop.permute.xlu0 %860
  %v864 = vmul.f32 %v830, %v859
  %v865 = vmul.f32 %v831, %v861
  %868 = vrot.lane.b32.xlu0 %v864, 32
  %v869 = vpop.permute.xlu0 %868
  %870 = vrot.lane.b32.xlu0 %v865, 32
  %v871 = vpop.permute.xlu0 %870
  %v872 = vsel %vm187, %v869, 0
  %v874 = vsel %vm187, %v871, 0
  %876 = vmatprep.subr.mxu0 %v180
  %877 = vmatpush1.msra.mxu0 %v179
  %878 = vmatprep.subr.mxu0 %v182
  %879 = vmatpush1.msra.mxu0 %v181
  %880 = vmatprep.subr.mxu0 %v184
  %881 = vmatpush1.msra.mxu0 %v183
  %882 = vmatprep.subr.mxu0 %v186
  %883 = vmatpush1.msra.mxu0 %v185
  %884 = vmatprep.subr.mxu0 0.0
  %885 = vmatpush1.msra.mxu0 0.0
  %886 = vmatprep.subr.mxu0 0.0
  %887 = vmatpush1.msra.mxu0 0.0
  %888 = vmatprep.subr.mxu0 0.0
  %889 = vmatpush1.msra.mxu0 0.0
  %890 = vmatprep.subr.mxu0 0.0
  %891 = vmatpush1.msra.mxu0 0.0
  %892 = vmatprep.subr.mxu0 0.0
  %893 = vmatpush1.msra.mxu0 0.0
  %894 = vmatprep.subr.mxu0 0.0
  %895 = vmatpush1.msra.mxu0 0.0
  %896 = vmatprep.subr.mxu0 0.0
  %897 = vmatpush1.msra.mxu0 0.0
  %898 = vmatprep.subr.mxu0 0.0
  %899 = vmatpush1.msra.mxu0 0.0
  %900 = vmatprep.subr.mxu0 0.0
  %901 = vmatpush1.msra.mxu0 0.0
  %902 = vmatprep.subr.mxu0 0.0
  %903 = vmatpush1.msra.mxu0 0.0
  %904 = vmatprep.subr.mxu0 0.0
  %905 = vmatpush1.msra.mxu0 0.0
  %906 = vmatprep.subr.mxu0 0.0
  %907 = vmatpush1.msra.mxu0 0.0
  %908 = vmatprep.subr.mxu0 0.0
  %909 = vmatpush1.msra.mxu0 0.0
  %910 = vmatprep.subr.mxu0 0.0
  %911 = vmatpush1.msra.mxu0 0.0
  %912 = vmatprep.subr.mxu0 0.0
  %913 = vmatpush1.msra.mxu0 0.0
  %914 = vmatprep.subr.mxu0 0.0
  %915 = vmatpush1.msra.mxu0 0.0
  %916 = vmatprep.subr.mxu0 0.0
  %917 = vmatpush1.msra.mxu0 0.0
  %918 = vmatprep.subr.mxu0 0.0
  %919 = vmatpush1.msra.mxu0 0.0
  %920 = vmatprep.subr.mxu0 0.0
  %921 = vmatpush1.msra.mxu0 0.0
  %922 = vmatprep.subr.mxu0 0.0
  %923 = vmatpush1.msra.mxu0 0.0
  %924 = vmatprep.subr.mxu0 0.0
  %925 = vmatpush1.msra.mxu0 0.0
  %926 = vmatprep.subr.mxu0 0.0
  %927 = vmatpush1.msra.mxu0 0.0
  %928 = vmatprep.subr.mxu0 0.0
  %929 = vmatpush1.msra.mxu0 0.0
  %930 = vmatprep.subr.mxu0 0.0
  %931 = vmatpush1.msra.mxu0 0.0
  %932 = vmatprep.subr.mxu0 0.0
  %933 = vmatpush1.msra.mxu0 0.0
  %934 = vmatprep.subr.mxu0 0.0
  %935 = vmatpush1.msra.mxu0 0.0
  %936 = vmatprep.subr.mxu0 0.0
  %937 = vmatpush1.msra.mxu0 0.0
  %938 = vmatprep.subr.mxu0 0.0
  %939 = vmatpush1.msra.mxu0 0.0
  %940 = vmatprep.mubr.f32.mxu0 0.0
  %941 = vmatmul.mubr.f32.gmra.mrb[0].mxu0 %v872
  %v942 = vpop.f32.mrb[0].mxu0
  %v943 = vadd.f32 0.0, %v942
  %v944 = vpop.f32.mrb[0].mxu0
  %945 = vmatprep.mubr.f32.mxu0 0.0
  %946 = vmatmul.mubr.f32.gmra.mrb[0].mxu0 %v874
  %v947 = vpop.f32.mrb[0].mxu0
  %v948 = vpop.f32.mrb[0].mxu0
  %v949 = vadd.f32 0.0, %v948
  %950 = vdwg.mxu0
  %v951 = vadd.f32 %v943, %v163
  %v952 = vadd.f32 %v949, %v147
  %v953 = vtanh.pop %v951
  %v954 = vtanh.pop %v952
  %v955 = vsub.f32 0.0, %v951
  %v956 = vsub.f32 0.0, %v952
  %v957 = vmul.f32 %v955, 1.442695
  %v958 = vpow.pop %v957
  %v959 = vmul.f32 %v956, 1.442695
  %v960 = vpow.pop %v959
  %v961 = vadd.f32 %v958, 1.0
  %v962 = vadd.f32 %v960, 1.0
  %v963 = vrcp.pop %v961
  %v964 = vmul.f32 1.0, %v963
  %v965 = vrcp.pop %v962
  %v966 = vmul.f32 1.0, %v965
  %v967 = vsel %vm15, %v953, %v964
  %v968 = vsel %vm15, %v954, %v966
  %v969 = vmul.f32 %v967, %v852
  %v970 = vmul.f32 %v968, %v853
  %973 = vrot.lane.b32.xlu0 %v967, 64
  %v974 = vpop.permute.xlu0 %973
  %975 = vrot.lane.b32.xlu0 %v968, 64
  %v976 = vpop.permute.xlu0 %975
  %v979 = vmul.f32 %v967, %v974
  %v980 = vmul.f32 %v968, %v976
  %983 = vrot.lane.b32.xlu0 %v979, 32
  %v984 = vpop.permute.xlu0 %983
  %985 = vrot.lane.b32.xlu0 %v980, 32
  %v986 = vpop.permute.xlu0 %985
  %v989 = vadd.f32 %v969, %v984
  %v990 = vadd.f32 %v970, %v986
  %v991 = vtanh.pop %v989
  %v992 = vtanh.pop %v990
  %995 = vrot.lane.b32.xlu0 %v991, 64
  %v996 = vpop.permute.xlu0 %995
  %997 = vrot.lane.b32.xlu0 %v992, 64
  %v998 = vpop.permute.xlu0 %997
  %v1001 = vmul.f32 %v967, %v996
  %v1002 = vmul.f32 %v968, %v998
  %1005 = vrot.lane.b32.xlu0 %v1001, 32
  %v1006 = vpop.permute.xlu0 %1005
  %1007 = vrot.lane.b32.xlu0 %v1002, 32
  %v1008 = vpop.permute.xlu0 %1007
  %v1009 = vsel %vm187, %v1006, 0
  %v1011 = vsel %vm187, %v1008, 0
  %1013 = vmatprep.subr.mxu0 %v180
  %1014 = vmatpush1.msra.mxu0 %v179
  %1015 = vmatprep.subr.mxu0 %v182
  %1016 = vmatpush1.msra.mxu0 %v181
  %1017 = vmatprep.subr.mxu0 %v184
  %1018 = vmatpush1.msra.mxu0 %v183
  %1019 = vmatprep.subr.mxu0 %v186
  %1020 = vmatpush1.msra.mxu0 %v185
  %1021 = vmatprep.subr.mxu0 0.0
  %1022 = vmatpush1.msra.mxu0 0.0
  %1023 = vmatprep.subr.mxu0 0.0
  %1024 = vmatpush1.msra.mxu0 0.0
  %1025 = vmatprep.subr.mxu0 0.0
  %1026 = vmatpush1.msra.mxu0 0.0
  %1027 = vmatprep.subr.mxu0 0.0
  %1028 = vmatpush1.msra.mxu0 0.0
  %1029 = vmatprep.subr.mxu0 0.0
  %1030 = vmatpush1.msra.mxu0 0.0
  %1031 = vmatprep.subr.mxu0 0.0
  %1032 = vmatpush1.msra.mxu0 0.0
  %1033 = vmatprep.subr.mxu0 0.0
  %1034 = vmatpush1.msra.mxu0 0.0
  %1035 = vmatprep.subr.mxu0 0.0
  %1036 = vmatpush1.msra.mxu0 0.0
  %1037 = vmatprep.subr.mxu0 0.0
  %1038 = vmatpush1.msra.mxu0 0.0
  %1039 = vmatprep.subr.mxu0 0.0
  %1040 = vmatpush1.msra.mxu0 0.0
  %1041 = vmatprep.subr.mxu0 0.0
  %1042 = vmatpush1.msra.mxu0 0.0
  %1043 = vmatprep.subr.mxu0 0.0
  %1044 = vmatpush1.msra.mxu0 0.0
  %1045 = vmatprep.subr.mxu0 0.0
  %1046 = vmatpush1.msra.mxu0 0.0
  %1047 = vmatprep.subr.mxu0 0.0
  %1048 = vmatpush1.msra.mxu0 0.0
  %1049 = vmatprep.subr.mxu0 0.0
  %1050 = vmatpush1.msra.mxu0 0.0
  %1051 = vmatprep.subr.mxu0 0.0
  %1052 = vmatpush1.msra.mxu0 0.0
  %1053 = vmatprep.subr.mxu0 0.0
  %1054 = vmatpush1.msra.mxu0 0.0
  %1055 = vmatprep.subr.mxu0 0.0
  %1056 = vmatpush1.msra.mxu0 0.0
  %1057 = vmatprep.subr.mxu0 0.0
  %1058 = vmatpush1.msra.mxu0 0.0
  %1059 = vmatprep.subr.mxu0 0.0
  %1060 = vmatpush1.msra.mxu0 0.0
  %1061 = vmatprep.subr.mxu0 0.0
  %1062 = vmatpush1.msra.mxu0 0.0
  %1063 = vmatprep.subr.mxu0 0.0
  %1064 = vmatpush1.msra.mxu0 0.0
  %1065 = vmatprep.subr.mxu0 0.0
  %1066 = vmatpush1.msra.mxu0 0.0
  %1067 = vmatprep.subr.mxu0 0.0
  %1068 = vmatpush1.msra.mxu0 0.0
  %1069 = vmatprep.subr.mxu0 0.0
  %1070 = vmatpush1.msra.mxu0 0.0
  %1071 = vmatprep.subr.mxu0 0.0
  %1072 = vmatpush1.msra.mxu0 0.0
  %1073 = vmatprep.subr.mxu0 0.0
  %1074 = vmatpush1.msra.mxu0 0.0
  %1075 = vmatprep.subr.mxu0 0.0
  %1076 = vmatpush1.msra.mxu0 0.0
  %1077 = vmatprep.mubr.f32.mxu0 0.0
  %1078 = vmatmul.mubr.f32.gmra.mrb[0].mxu0 %v1009
  %v1079 = vpop.f32.mrb[0].mxu0
  %v1080 = vadd.f32 0.0, %v1079
  %v1081 = vpop.f32.mrb[0].mxu0
  %1082 = vmatprep.mubr.f32.mxu0 0.0
  %1083 = vmatmul.mubr.f32.gmra.mrb[0].mxu0 %v1011
  %v1084 = vpop.f32.mrb[0].mxu0
  %v1085 = vpop.f32.mrb[0].mxu0
  %v1086 = vadd.f32 0.0, %v1085
  %1087 = vdwg.mxu0
  %v1088 = vadd.f32 %v1080, %v169
  %v1089 = vadd.f32 %v1086, %v141
  %v1090 = vtanh.pop %v1088
  %v1091 = vtanh.pop %v1089
  %v1092 = vsub.f32 0.0, %v1088
  %v1093 = vsub.f32 0.0, %v1089
  %v1094 = vmul.f32 %v1092, 1.442695
  %v1095 = vpow.pop %v1094
  %v1096 = vmul.f32 %v1093, 1.442695
  %v1097 = vpow.pop %v1096
  %v1098 = vadd.f32 %v1095, 1.0
  %v1099 = vadd.f32 %v1097, 1.0
  %v1100 = vrcp.pop %v1098
  %v1101 = vmul.f32 1.0, %v1100
  %v1102 = vrcp.pop %v1099
  %v1103 = vmul.f32 1.0, %v1102
  %v1104 = vsel %vm15, %v1090, %v1101
  %v1105 = vsel %vm15, %v1091, %v1103
  %v1106 = vmul.f32 %v1104, %v989
  %v1107 = vmul.f32 %v1105, %v990
  %1110 = vrot.lane.b32.xlu0 %v1104, 64
  %v1111 = vpop.permute.xlu0 %1110
  %1112 = vrot.lane.b32.xlu0 %v1105, 64
  %v1113 = vpop.permute.xlu0 %1112
  %v1116 = vmul.f32 %v1104, %v1111
  %v1117 = vmul.f32 %v1105, %v1113
  %1120 = vrot.lane.b32.xlu0 %v1116, 32
  %v1121 = vpop.permute.xlu0 %1120
  %1122 = vrot.lane.b32.xlu0 %v1117, 32
  %v1123 = vpop.permute.xlu0 %1122
  %v1126 = vadd.f32 %v1106, %v1121
  %v1127 = vadd.f32 %v1107, %v1123
  %v1128 = vtanh.pop %v1126
  %v1129 = vtanh.pop %v1127
  %1132 = vrot.lane.b32.xlu0 %v1128, 64
  %v1133 = vpop.permute.xlu0 %1132
  %1134 = vrot.lane.b32.xlu0 %v1129, 64
  %v1135 = vpop.permute.xlu0 %1134
  %v1138 = vmul.f32 %v1104, %v1133
  %v1139 = vmul.f32 %v1105, %v1135
  %1142 = vrot.lane.b32.xlu0 %v1138, 32
  %v1143 = vpop.permute.xlu0 %1142
  %1144 = vrot.lane.b32.xlu0 %v1139, 32
  %v1145 = vpop.permute.xlu0 %1144
  %v1146 = vsel %vm187, %v1143, 0
  %v1148 = vsel %vm187, %v1145, 0
  %1150 = vmatprep.subr.mxu0 %v180
  %1151 = vmatpush1.msra.mxu0 %v179
  %1152 = vmatprep.subr.mxu0 %v182
  %1153 = vmatpush1.msra.mxu0 %v181
  %1154 = vmatprep.subr.mxu0 %v184
  %1155 = vmatpush1.msra.mxu0 %v183
  %1156 = vmatprep.subr.mxu0 %v186
  %1157 = vmatpush1.msra.mxu0 %v185
  %1158 = vmatprep.subr.mxu0 0.0
  %1159 = vmatpush1.msra.mxu0 0.0
  %1160 = vmatprep.subr.mxu0 0.0
  %1161 = vmatpush1.msra.mxu0 0.0
  %1162 = vmatprep.subr.mxu0 0.0
  %1163 = vmatpush1.msra.mxu0 0.0
  %1164 = vmatprep.subr.mxu0 0.0
  %1165 = vmatpush1.msra.mxu0 0.0
  %1166 = vmatprep.subr.mxu0 0.0
  %1167 = vmatpush1.msra.mxu0 0.0
  %1168 = vmatprep.subr.mxu0 0.0
  %1169 = vmatpush1.msra.mxu0 0.0
  %1170 = vmatprep.subr.mxu0 0.0
  %1171 = vmatpush1.msra.mxu0 0.0
  %1172 = vmatprep.subr.mxu0 0.0
  %1173 = vmatpush1.msra.mxu0 0.0
  %1174 = vmatprep.subr.mxu0 0.0
  %1175 = vmatpush1.msra.mxu0 0.0
  %1176 = vmatprep.subr.mxu0 0.0
  %1177 = vmatpush1.msra.mxu0 0.0
  %1178 = vmatprep.subr.mxu0 0.0
  %1179 = vmatpush1.msra.mxu0 0.0
  %1180 = vmatprep.subr.mxu0 0.0
  %1181 = vmatpush1.msra.mxu0 0.0
  %1182 = vmatprep.subr.mxu0 0.0
  %1183 = vmatpush1.msra.mxu0 0.0
  %1184 = vmatprep.subr.mxu0 0.0
  %1185 = vmatpush1.msra.mxu0 0.0
  %1186 = vmatprep.subr.mxu0 0.0
  %1187 = vmatpush1.msra.mxu0 0.0
  %1188 = vmatprep.subr.mxu0 0.0
  %1189 = vmatpush1.msra.mxu0 0.0
  %1190 = vmatprep.subr.mxu0 0.0
  %1191 = vmatpush1.msra.mxu0 0.0
  %1192 = vmatprep.subr.mxu0 0.0
  %1193 = vmatpush1.msra.mxu0 0.0
  %1194 = vmatprep.subr.mxu0 0.0
  %1195 = vmatpush1.msra.mxu0 0.0
  %1196 = vmatprep.subr.mxu0 0.0
  %1197 = vmatpush1.msra.mxu0 0.0
  %1198 = vmatprep.subr.mxu0 0.0
  %1199 = vmatpush1.msra.mxu0 0.0
  %1200 = vmatprep.subr.mxu0 0.0
  %1201 = vmatpush1.msra.mxu0 0.0
  %1202 = vmatprep.subr.mxu0 0.0
  %1203 = vmatpush1.msra.mxu0 0.0
  %1204 = vmatprep.subr.mxu0 0.0
  %1205 = vmatpush1.msra.mxu0 0.0
  %1206 = vmatprep.subr.mxu0 0.0
  %1207 = vmatpush1.msra.mxu0 0.0
  %1208 = vmatprep.subr.mxu0 0.0
  %1209 = vmatpush1.msra.mxu0 0.0
  %1210 = vmatprep.subr.mxu0 0.0
  %1211 = vmatpush1.msra.mxu0 0.0
  %1212 = vmatprep.subr.mxu0 0.0
  %1213 = vmatpush1.msra.mxu0 0.0
  %1214 = vmatprep.mubr.f32.mxu0 0.0
  %1215 = vmatmul.mubr.f32.gmra.mrb[0].mxu0 %v1146
  %v1216 = vpop.f32.mrb[0].mxu0
  %v1217 = vadd.f32 0.0, %v1216
  %v1218 = vpop.f32.mrb[0].mxu0
  %1219 = vmatprep.mubr.f32.mxu0 0.0
  %1220 = vmatmul.mubr.f32.gmra.mrb[0].mxu0 %v1148
  %v1221 = vpop.f32.mrb[0].mxu0
  %v1222 = vpop.f32.mrb[0].mxu0
  %v1223 = vadd.f32 0.0, %v1222
  %1224 = vdwg.mxu0
  %v1225 = vadd.f32 %v1217, %v175
  %v1226 = vadd.f32 %v1223, %v135
  %v1227 = vtanh.pop %v1225
  %v1228 = vtanh.pop %v1226
  %v1229 = vsub.f32 0.0, %v1225
  %v1230 = vsub.f32 0.0, %v1226
  %v1231 = vmul.f32 %v1229, 1.442695
  %v1232 = vpow.pop %v1231
  %v1233 = vmul.f32 %v1230, 1.442695
  %v1234 = vpow.pop %v1233
  %v1235 = vadd.f32 %v1232, 1.0
  %v1236 = vadd.f32 %v1234, 1.0
  %v1237 = vrcp.pop %v1235
  %v1238 = vmul.f32 1.0, %v1237
  %v1239 = vrcp.pop %v1236
  %v1240 = vmul.f32 1.0, %v1239
  %v1241 = vsel %vm15, %v1227, %v1238
  %v1242 = vsel %vm15, %v1228, %v1240
  %v1243 = vmul.f32 %v1241, %v1126
  %v1244 = vmul.f32 %v1242, %v1127
  %1247 = vrot.lane.b32.xlu0 %v1241, 64
  %v1248 = vpop.permute.xlu0 %1247
  %1249 = vrot.lane.b32.xlu0 %v1242, 64
  %v1250 = vpop.permute.xlu0 %1249
  %v1253 = vmul.f32 %v1241, %v1248
  %v1254 = vmul.f32 %v1242, %v1250
  %1257 = vrot.lane.b32.xlu0 %v1253, 32
  %v1258 = vpop.permute.xlu0 %1257
  %1259 = vrot.lane.b32.xlu0 %v1254, 32
  %v1260 = vpop.permute.xlu0 %1259
  %v1263 = vadd.f32 %v1243, %v1258
  %v1264 = vadd.f32 %v1244, %v1260
  %v1265 = vtanh.pop %v1263
  %v1266 = vtanh.pop %v1264
  %1269 = vrot.lane.b32.xlu0 %v1265, 64
  %v1270 = vpop.permute.xlu0 %1269
  %1271 = vrot.lane.b32.xlu0 %v1266, 64
  %v1272 = vpop.permute.xlu0 %1271
  %v1275 = vmul.f32 %v1241, %v1270
  %v1276 = vmul.f32 %v1242, %v1272
  %s1277 = scalar_lea.vmem %s1, 304
  %v1278 = vld [vmem:[%s1277] ss:$8 sm:$0x3]
  %v1279 = vld [vmem:[%s1 + $0x70] sm:$0xff]
  %v1280 = vld [vmem:[%s1 + $0x78] sm:$0xff]
  %v1281 = vld [vmem:[%s1 + $0x80] sm:$0xff]
  %v1282 = vld [vmem:[%s1 + $0x88] sm:$0xff]
  %v1283 = vld [vmem:[%s1 + $0x90] sm:$0xff]
  %v1284 = vld [vmem:[%s1 + $0x98] sm:$0xff]
  %v1285 = vld [vmem:[%s1 + $0xa0] sm:$0xff]
  %v1286 = vld [vmem:[%s1 + $0xa8] sm:$0xff]
  %v1287 = vld [vmem:[%s1 + $0xb0] sm:$0xff]
  %v1288 = vld [vmem:[%s1 + $0xb8] sm:$0xff]
  %v1289 = vld [vmem:[%s1 + $0xc0] sm:$0xff]
  %v1290 = vld [vmem:[%s1 + $0xc8] sm:$0xff]
  %v1291 = vld [vmem:[%s1 + $0xd0] sm:$0xff]
  %v1292 = vld [vmem:[%s1 + $0xd8] sm:$0xff]
  %v1293 = vld [vmem:[%s1 + $0xe0] sm:$0xff]
  %v1294 = vld [vmem:[%s1 + $0xe8] sm:$0xff]
  %1296 = vrot.lane.b32.xlu0 %v1276, 32
  %v1297 = vpop.permute.xlu0 %1296
  %v1298 = vsel %vm187, %v1297, 0
  %1300 = vmatprep.subr.mxu0 %v1288
  %1301 = vmatpush1.msra.mxu0 %v1287
  %1302 = vmatprep.subr.mxu0 %v1290
  %1303 = vmatpush1.msra.mxu0 %v1289
  %1304 = vmatprep.subr.mxu0 %v1292
  %1305 = vmatpush1.msra.mxu0 %v1291
  %1306 = vmatprep.subr.mxu0 %v1294
  %1307 = vmatpush1.msra.mxu0 %v1293
  %1308 = vmatprep.subr.mxu0 0.0
  %1309 = vmatpush1.msra.mxu0 0.0
  %1310 = vmatprep.subr.mxu0 0.0
  %1311 = vmatpush1.msra.mxu0 0.0
  %1312 = vmatprep.subr.mxu0 0.0
  %1313 = vmatpush1.msra.mxu0 0.0
  %1314 = vmatprep.subr.mxu0 0.0
  %1315 = vmatpush1.msra.mxu0 0.0
  %1316 = vmatprep.subr.mxu0 0.0
  %1317 = vmatpush1.msra.mxu0 0.0
  %1318 = vmatprep.subr.mxu0 0.0
  %1319 = vmatpush1.msra.mxu0 0.0
  %1320 = vmatprep.subr.mxu0 0.0
  %1321 = vmatpush1.msra.mxu0 0.0
  %1322 = vmatprep.subr.mxu0 0.0
  %1323 = vmatpush1.msra.mxu0 0.0
  %1324 = vmatprep.subr.mxu0 0.0
  %1325 = vmatpush1.msra.mxu0 0.0
  %1326 = vmatprep.subr.mxu0 0.0
  %1327 = vmatpush1.msra.mxu0 0.0
  %1328 = vmatprep.subr.mxu0 0.0
  %1329 = vmatpush1.msra.mxu0 0.0
  %1330 = vmatprep.subr.mxu0 0.0
  %1331 = vmatpush1.msra.mxu0 0.0
  %1332 = vmatprep.subr.mxu0 0.0
  %1333 = vmatpush1.msra.mxu0 0.0
  %1334 = vmatprep.subr.mxu0 0.0
  %1335 = vmatpush1.msra.mxu0 0.0
  %1336 = vmatprep.subr.mxu0 0.0
  %1337 = vmatpush1.msra.mxu0 0.0
  %1338 = vmatprep.subr.mxu0 0.0
  %1339 = vmatpush1.msra.mxu0 0.0
  %1340 = vmatprep.subr.mxu0 0.0
  %1341 = vmatpush1.msra.mxu0 0.0
  %1342 = vmatprep.subr.mxu0 0.0
  %1343 = vmatpush1.msra.mxu0 0.0
  %1344 = vmatprep.subr.mxu0 0.0
  %1345 = vmatpush1.msra.mxu0 0.0
  %1346 = vmatprep.subr.mxu0 0.0
  %1347 = vmatpush1.msra.mxu0 0.0
  %1348 = vmatprep.subr.mxu0 0.0
  %1349 = vmatpush1.msra.mxu0 0.0
  %1350 = vmatprep.subr.mxu0 0.0
  %1351 = vmatpush1.msra.mxu0 0.0
  %1352 = vmatprep.subr.mxu0 0.0
  %1353 = vmatpush1.msra.mxu0 0.0
  %1354 = vmatprep.subr.mxu0 0.0
  %1355 = vmatpush1.msra.mxu0 0.0
  %1356 = vmatprep.subr.mxu0 0.0
  %1357 = vmatpush1.msra.mxu0 0.0
  %1358 = vmatprep.subr.mxu0 0.0
  %1359 = vmatpush1.msra.mxu0 0.0
  %1360 = vmatprep.subr.mxu0 0.0
  %1361 = vmatpush1.msra.mxu0 0.0
  %1362 = vmatprep.subr.mxu0 0.0
  %1363 = vmatpush1.msra.mxu0 0.0
  %1364 = vmatprep.mubr.f32.mxu0 0.0
  %1365 = vmatmul.mubr.f32.gmra.mrb[0].mxu0 %v1298
  %v1366 = vpop.f32.mrb[0].mxu0
  %v1367 = vadd.f32 0.0, %v1366
  %v1368 = vpop.f32.mrb[0].mxu0
  %v1369 = vadd.f32 0.0, %v1368
  %1370 = vmatprep.mubr.f32.mxu0 0.0
  %1371 = vmatmul.mubr.f32.gmra.mrb[0].mxu0 %v1148
  %v1372 = vpop.f32.mrb[0].mxu0
  %v1373 = vadd.f32 0.0, %v1372
  %v1374 = vpop.f32.mrb[0].mxu0
  %v1375 = vadd.f32 0.0, %v1374
  %1376 = vmatprep.mubr.f32.mxu0 0.0
  %1377 = vmatmul.mubr.f32.gmra.mrb[0].mxu0 %v1011
  %v1378 = vpop.f32.mrb[0].mxu0
  %v1379 = vadd.f32 0.0, %v1378
  %v1380 = vpop.f32.mrb[0].mxu0
  %v1381 = vadd.f32 0.0, %v1380
  %1382 = vmatprep.mubr.f32.mxu0 0.0
  %1383 = vmatmul.mubr.f32.gmra.mrb[0].mxu0 %v874
  %v1384 = vpop.f32.mrb[0].mxu0
  %v1385 = vadd.f32 0.0, %v1384
  %v1386 = vpop.f32.mrb[0].mxu0
  %v1387 = vadd.f32 0.0, %v1386
  %1388 = vmatprep.mubr.f32.mxu0 0.0
  %1389 = vmatmul.mubr.f32.gmra.mrb[0].mxu0 %v737
  %v1390 = vpop.f32.mrb[0].mxu0
  %v1391 = vadd.f32 0.0, %v1390
  %v1392 = vpop.f32.mrb[0].mxu0
  %v1393 = vadd.f32 0.0, %v1392
  %1394 = vmatprep.mubr.f32.mxu0 0.0
  %1395 = vmatmul.mubr.f32.gmra.mrb[0].mxu0 %v600
  %v1396 = vpop.f32.mrb[0].mxu0
  %v1397 = vadd.f32 0.0, %v1396
  %v1398 = vpop.f32.mrb[0].mxu0
  %v1399 = vadd.f32 0.0, %v1398
  %1400 = vmatprep.mubr.f32.mxu0 0.0
  %1401 = vmatmul.mubr.f32.gmra.mrb[0].mxu0 %v463
  %v1402 = vpop.f32.mrb[0].mxu0
  %v1403 = vadd.f32 0.0, %v1402
  %v1404 = vpop.f32.mrb[0].mxu0
  %v1405 = vadd.f32 0.0, %v1404
  %1406 = vmatprep.mubr.f32.mxu0 0.0
  %1407 = vmatmul.mubr.f32.gmra.mrb[0].mxu0 %v326
  %v1408 = vpop.f32.mrb[0].mxu0
  %v1409 = vadd.f32 0.0, %v1408
  %v1410 = vpop.f32.mrb[0].mxu0
  %v1411 = vadd.f32 0.0, %v1410
  %1412 = vdwg.mxu0
  %1414 = vrot.lane.b32.xlu0 %v1275, 32
  %v1415 = vpop.permute.xlu0 %1414
  %v1416 = vsel %vm187, %v1415, 0
  %1418 = vmatprep.subr.mxu0 %v1280
  %1419 = vmatpush1.msra.mxu0 %v1279
  %1420 = vmatprep.subr.mxu0 %v1282
  %1421 = vmatpush1.msra.mxu0 %v1281
  %1422 = vmatprep.subr.mxu0 %v1284
  %1423 = vmatpush1.msra.mxu0 %v1283
  %1424 = vmatprep.subr.mxu0 %v1286
  %1425 = vmatpush1.msra.mxu0 %v1285
  %1426 = vmatprep.subr.mxu0 0.0
  %1427 = vmatpush1.msra.mxu0 0.0
  %1428 = vmatprep.subr.mxu0 0.0
  %1429 = vmatpush1.msra.mxu0 0.0
  %1430 = vmatprep.subr.mxu0 0.0
  %1431 = vmatpush1.msra.mxu0 0.0
  %1432 = vmatprep.subr.mxu0 0.0
  %1433 = vmatpush1.msra.mxu0 0.0
  %1434 = vmatprep.subr.mxu0 0.0
  %1435 = vmatpush1.msra.mxu0 0.0
  %1436 = vmatprep.subr.mxu0 0.0
  %1437 = vmatpush1.msra.mxu0 0.0
  %1438 = vmatprep.subr.mxu0 0.0
  %1439 = vmatpush1.msra.mxu0 0.0
  %1440 = vmatprep.subr.mxu0 0.0
  %1441 = vmatpush1.msra.mxu0 0.0
  %1442 = vmatprep.subr.mxu0 0.0
  %1443 = vmatpush1.msra.mxu0 0.0
  %1444 = vmatprep.subr.mxu0 0.0
  %1445 = vmatpush1.msra.mxu0 0.0
  %1446 = vmatprep.subr.mxu0 0.0
  %1447 = vmatpush1.msra.mxu0 0.0
  %1448 = vmatprep.subr.mxu0 0.0
  %1449 = vmatpush1.msra.mxu0 0.0
  %1450 = vmatprep.subr.mxu0 0.0
  %1451 = vmatpush1.msra.mxu0 0.0
  %1452 = vmatprep.subr.mxu0 0.0
  %1453 = vmatpush1.msra.mxu0 0.0
  %1454 = vmatprep.subr.mxu0 0.0
  %1455 = vmatpush1.msra.mxu0 0.0
  %1456 = vmatprep.subr.mxu0 0.0
  %1457 = vmatpush1.msra.mxu0 0.0
  %1458 = vmatprep.subr.mxu0 0.0
  %1459 = vmatpush1.msra.mxu0 0.0
  %1460 = vmatprep.subr.mxu0 0.0
  %1461 = vmatpush1.msra.mxu0 0.0
  %1462 = vmatprep.subr.mxu0 0.0
  %1463 = vmatpush1.msra.mxu0 0.0
  %1464 = vmatprep.subr.mxu0 0.0
  %1465 = vmatpush1.msra.mxu0 0.0
  %1466 = vmatprep.subr.mxu0 0.0
  %1467 = vmatpush1.msra.mxu0 0.0
  %1468 = vmatprep.subr.mxu0 0.0
  %1469 = vmatpush1.msra.mxu0 0.0
  %1470 = vmatprep.subr.mxu0 0.0
  %1471 = vmatpush1.msra.mxu0 0.0
  %1472 = vmatprep.subr.mxu0 0.0
  %1473 = vmatpush1.msra.mxu0 0.0
  %1474 = vmatprep.subr.mxu0 0.0
  %1475 = vmatpush1.msra.mxu0 0.0
  %1476 = vmatprep.subr.mxu0 0.0
  %1477 = vmatpush1.msra.mxu0 0.0
  %1478 = vmatprep.subr.mxu0 0.0
  %1479 = vmatpush1.msra.mxu0 0.0
  %1480 = vmatprep.subr.mxu0 0.0
  %1481 = vmatpush1.msra.mxu0 0.0
  %1482 = vmatprep.mubr.f32.mxu0 0.0
  %1483 = vmatmul.mubr.f32.gmra.mrb[0].mxu0 %v324
  %v1484 = vpop.f32.mrb[0].mxu0
  %v1485 = vadd.f32 %v1367, %v1484
  %v1486 = vpop.f32.mrb[0].mxu0
  %v1487 = vadd.f32 %v1369, %v1486
  %1488 = vmatprep.mubr.f32.mxu0 0.0
  %1489 = vmatmul.mubr.f32.gmra.mrb[0].mxu0 %v461
  %v1490 = vpop.f32.mrb[0].mxu0
  %v1491 = vadd.f32 %v1373, %v1490
  %v1492 = vpop.f32.mrb[0].mxu0
  %v1493 = vadd.f32 %v1375, %v1492
  %1494 = vmatprep.mubr.f32.mxu0 0.0
  %1495 = vmatmul.mubr.f32.gmra.mrb[0].mxu0 %v598
  %v1496 = vpop.f32.mrb[0].mxu0
  %v1497 = vadd.f32 %v1379, %v1496
  %v1498 = vpop.f32.mrb[0].mxu0
  %v1499 = vadd.f32 %v1381, %v1498
  %1500 = vmatprep.mubr.f32.mxu0 0.0
  %1501 = vmatmul.mubr.f32.gmra.mrb[0].mxu0 %v735
  %v1502 = vpop.f32.mrb[0].mxu0
  %v1503 = vadd.f32 %v1385, %v1502
  %v1504 = vpop.f32.mrb[0].mxu0
  %v1505 = vadd.f32 %v1387, %v1504
  %1506 = vmatprep.mubr.f32.mxu0 0.0
  %1507 = vmatmul.mubr.f32.gmra.mrb[0].mxu0 %v872
  %v1508 = vpop.f32.mrb[0].mxu0
  %v1509 = vadd.f32 %v1391, %v1508
  %v1510 = vpop.f32.mrb[0].mxu0
  %v1511 = vadd.f32 %v1393, %v1510
  %1512 = vmatprep.mubr.f32.mxu0 0.0
  %1513 = vmatmul.mubr.f32.gmra.mrb[0].mxu0 %v1009
  %v1514 = vpop.f32.mrb[0].mxu0
  %v1515 = vadd.f32 %v1397, %v1514
  %v1516 = vpop.f32.mrb[0].mxu0
  %v1517 = vadd.f32 %v1399, %v1516
  %1518 = vmatprep.mubr.f32.mxu0 0.0
  %1519 = vmatmul.mubr.f32.gmra.mrb[0].mxu0 %v1146
  %v1520 = vpop.f32.mrb[0].mxu0
  %v1521 = vadd.f32 %v1403, %v1520
  %v1522 = vpop.f32.mrb[0].mxu0
  %v1523 = vadd.f32 %v1405, %v1522
  %1524 = vmatprep.mubr.f32.mxu0 0.0
  %1525 = vmatmul.mubr.f32.gmra.mrb[0].mxu0 %v1416
  %v1526 = vpop.f32.mrb[0].mxu0
  %v1527 = vadd.f32 %v1409, %v1526
  %v1528 = vpop.f32.mrb[0].mxu0
  %v1529 = vadd.f32 %v1411, %v1528
  %1530 = vdwg.mxu0
  %v1532 = vlaneseq
  %v1533 = vshrl.u32 %v1532, 7
  %v1534 = vsub.s32 0, %v1533
  %v1535 = vrot.slane %v1278, %v1534
  %v1536 = vlaneseq
  %v1537 = vshrl.u32 %v1536, 7
  %v1538 = vsub.s32 1, %v1537
  %v1539 = vrot.slane %v1278, %v1538
  %v1542 = vadd.f32 %v1485, %v1535
  %v1543 = vadd.f32 %v1487, %v1539
  %v1544 = vadd.f32 %v1491, %v1535
  %v1545 = vadd.f32 %v1493, %v1539
  %v1546 = vadd.f32 %v1497, %v1535
  %v1547 = vadd.f32 %v1499, %v1539
  %v1548 = vadd.f32 %v1503, %v1535
  %v1549 = vadd.f32 %v1505, %v1539
  %v1550 = vadd.f32 %v1509, %v1535
  %v1551 = vadd.f32 %v1511, %v1539
  %v1552 = vadd.f32 %v1515, %v1535
  %v1553 = vadd.f32 %v1517, %v1539
  %v1554 = vadd.f32 %v1521, %v1535
  %v1555 = vadd.f32 %v1523, %v1539
  %v1556 = vadd.f32 %v1527, %v1535
  %v1557 = vadd.f32 %v1529, %v1539
  %v1558 = vld [vmem:[%s1 + $0xf0] sm:$0xff]
  %v1559 = vld [vmem:[%s1 + $0xf8] sm:$0xff]
  %v1560 = vld [vmem:[%s1 + $0x100] sm:$0xff]
  %v1561 = vld [vmem:[%s1 + $0x108] sm:$0xff]
  %v1562 = vld [vmem:[%s1 + $0x110] sm:$0xff]
  %v1563 = vld [vmem:[%s1 + $0x118] sm:$0xff]
  %v1564 = vld [vmem:[%s1 + $0x120] sm:$0xff]
  %v1565 = vld [vmem:[%s1 + $0x128] sm:$0xff]
  %1566 = vmatprep.subr.mxu0 %v1559
  %1567 = vmatpush1.msra.mxu0 %v1558
  %1568 = vmatprep.subr.mxu0 %v1561
  %1569 = vmatpush1.msra.mxu0 %v1560
  %1570 = vmatprep.subr.mxu0 %v1563
  %1571 = vmatpush1.msra.mxu0 %v1562
  %1572 = vmatprep.subr.mxu0 %v1565
  %1573 = vmatpush1.msra.mxu0 %v1564
  %1574 = vmatprep.subr.mxu0 0.0
  %1575 = vmatpush1.msra.mxu0 0.0
  %1576 = vmatprep.subr.mxu0 0.0
  %1577 = vmatpush1.msra.mxu0 0.0
  %1578 = vmatprep.subr.mxu0 0.0
  %1579 = vmatpush1.msra.mxu0 0.0
  %1580 = vmatprep.subr.mxu0 0.0
  %1581 = vmatpush1.msra.mxu0 0.0
  %1582 = vmatprep.subr.mxu0 0.0
  %1583 = vmatpush1.msra.mxu0 0.0
  %1584 = vmatprep.subr.mxu0 0.0
  %1585 = vmatpush1.msra.mxu0 0.0
  %1586 = vmatprep.subr.mxu0 0.0
  %1587 = vmatpush1.msra.mxu0 0.0
  %1588 = vmatprep.subr.mxu0 0.0
  %1589 = vmatpush1.msra.mxu0 0.0
  %1590 = vmatprep.subr.mxu0 0.0
  %1591 = vmatpush1.msra.mxu0 0.0
  %1592 = vmatprep.subr.mxu0 0.0
  %1593 = vmatpush1.msra.mxu0 0.0
  %1594 = vmatprep.subr.mxu0 0.0
  %1595 = vmatpush1.msra.mxu0 0.0
  %1596 = vmatprep.subr.mxu0 0.0
  %1597 = vmatpush1.msra.mxu0 0.0
  %1598 = vmatprep.subr.mxu0 0.0
  %1599 = vmatpush1.msra.mxu0 0.0
  %1600 = vmatprep.subr.mxu0 0.0
  %1601 = vmatpush1.msra.mxu0 0.0
  %1602 = vmatprep.subr.mxu0 0.0
  %1603 = vmatpush1.msra.mxu0 0.0
  %1604 = vmatprep.subr.mxu0 0.0
  %1605 = vmatpush1.msra.mxu0 0.0
  %1606 = vmatprep.subr.mxu0 0.0
  %1607 = vmatpush1.msra.mxu0 0.0
  %1608 = vmatprep.subr.mxu0 0.0
  %1609 = vmatpush1.msra.mxu0 0.0
  %1610 = vmatprep.subr.mxu0 0.0
  %1611 = vmatpush1.msra.mxu0 0.0
  %1612 = vmatprep.subr.mxu0 0.0
  %1613 = vmatpush1.msra.mxu0 0.0
  %1614 = vmatprep.subr.mxu0 0.0
  %1615 = vmatpush1.msra.mxu0 0.0
  %1616 = vmatprep.subr.mxu0 0.0
  %1617 = vmatpush1.msra.mxu0 0.0
  %1618 = vmatprep.subr.mxu0 0.0
  %1619 = vmatpush1.msra.mxu0 0.0
  %1620 = vmatprep.subr.mxu0 0.0
  %1621 = vmatpush1.msra.mxu0 0.0
  %1622 = vmatprep.subr.mxu0 0.0
  %1623 = vmatpush1.msra.mxu0 0.0
  %1624 = vmatprep.subr.mxu0 0.0
  %1625 = vmatpush1.msra.mxu0 0.0
  %1626 = vmatprep.subr.mxu0 0.0
  %1627 = vmatpush1.msra.mxu0 0.0
  %1628 = vmatprep.subr.mxu0 0.0
  %1629 = vmatpush1.msra.mxu0 0.0
  %1630 = vmatprep.mubr.f32.mxu0 0.0
  %1631 = vmatmul.mubr.f32.gmra.mrb[0].mxu0 %v189
  %v1632 = vpop.f32.mrb[0].mxu0
  %v1633 = vadd.f32 0.0, %v1632
  %v1634 = vpop.f32.mrb[0].mxu0
  %1635 = vmatprep.mubr.f32.mxu0 0.0
  %1636 = vmatmul.mubr.f32.gmra.mrb[0].mxu0 %v189
  %v1637 = vpop.f32.mrb[0].mxu0
  %v1638 = vpop.f32.mrb[0].mxu0
  %v1639 = vadd.f32 0.0, %v1638
  %1640 = vdwg.mxu0
  %v1641 = vadd.f32 %v1633, %v1542
  %v1642 = vadd.f32 %v1639, %v1557
  %v1643 = vtanh.pop %v1641
  %v1644 = vtanh.pop %v1642
  %v1645 = vsub.f32 0.0, %v1641
  %v1646 = vsub.f32 0.0, %v1642
  %v1647 = vmul.f32 %v1645, 1.442695
  %v1648 = vpow.pop %v1647
  %v1649 = vmul.f32 %v1646, 1.442695
  %v1650 = vpow.pop %v1649
  %v1651 = vadd.f32 %v1648, 1.0
  %v1652 = vadd.f32 %v1650, 1.0
  %v1653 = vrcp.pop %v1651
  %v1654 = vmul.f32 1.0, %v1653
  %v1655 = vrcp.pop %v1652
  %v1656 = vmul.f32 1.0, %v1655
  %v1657 = vsel %vm15, %v1643, %v1654
  %v1658 = vsel %vm15, %v1644, %v1656
  %v1659 = vmul.f32 %v1657, 0.0
  %v1660 = vmul.f32 %v1658, 0.0
  %1663 = vrot.lane.b32.xlu0 %v1657, 64
  %v1664 = vpop.permute.xlu0 %1663
  %1665 = vrot.lane.b32.xlu0 %v1658, 64
  %v1666 = vpop.permute.xlu0 %1665
  %v1669 = vmul.f32 %v1657, %v1664
  %v1670 = vmul.f32 %v1658, %v1666
  %1673 = vrot.lane.b32.xlu0 %v1669, 32
  %v1674 = vpop.permute.xlu0 %1673
  %1675 = vrot.lane.b32.xlu0 %v1670, 32
  %v1676 = vpop.permute.xlu0 %1675
  %v1679 = vadd.f32 %v1659, %v1674
  %v1680 = vadd.f32 %v1660, %v1676
  %v1681 = vtanh.pop %v1679
  %v1682 = vtanh.pop %v1680
  %1685 = vrot.lane.b32.xlu0 %v1681, 64
  %v1686 = vpop.permute.xlu0 %1685
  %1687 = vrot.lane.b32.xlu0 %v1682, 64
  %v1688 = vpop.permute.xlu0 %1687
  %v1691 = vmul.f32 %v1657, %v1686
  %v1692 = vmul.f32 %v1658, %v1688
  %1695 = vrot.lane.b32.xlu0 %v1691, 32
  %v1696 = vpop.permute.xlu0 %1695
  %1697 = vrot.lane.b32.xlu0 %v1692, 32
  %v1698 = vpop.permute.xlu0 %1697
  %v1699 = vsel %vm187, %v1696, 0
  %v1701 = vsel %vm187, %v1698, 0
  %1703 = vmatprep.subr.mxu0 %v1559
  %1704 = vmatpush1.msra.mxu0 %v1558
  %1705 = vmatprep.subr.mxu0 %v1561
  %1706 = vmatpush1.msra.mxu0 %v1560
  %1707 = vmatprep.subr.mxu0 %v1563
  %1708 = vmatpush1.msra.mxu0 %v1562
  %1709 = vmatprep.subr.mxu0 %v1565
  %1710 = vmatpush1.msra.mxu0 %v1564
  %1711 = vmatprep.subr.mxu0 0.0
  %1712 = vmatpush1.msra.mxu0 0.0
  %1713 = vmatprep.subr.mxu0 0.0
  %1714 = vmatpush1.msra.mxu0 0.0
  %1715 = vmatprep.subr.mxu0 0.0
  %1716 = vmatpush1.msra.mxu0 0.0
  %1717 = vmatprep.subr.mxu0 0.0
  %1718 = vmatpush1.msra.mxu0 0.0
  %1719 = vmatprep.subr.mxu0 0.0
  %1720 = vmatpush1.msra.mxu0 0.0
  %1721 = vmatprep.subr.mxu0 0.0
  %1722 = vmatpush1.msra.mxu0 0.0
  %1723 = vmatprep.subr.mxu0 0.0
  %1724 = vmatpush1.msra.mxu0 0.0
  %1725 = vmatprep.subr.mxu0 0.0
  %1726 = vmatpush1.msra.mxu0 0.0
  %1727 = vmatprep.subr.mxu0 0.0
  %1728 = vmatpush1.msra.mxu0 0.0
  %1729 = vmatprep.subr.mxu0 0.0
  %1730 = vmatpush1.msra.mxu0 0.0
  %1731 = vmatprep.subr.mxu0 0.0
  %1732 = vmatpush1.msra.mxu0 0.0
  %1733 = vmatprep.subr.mxu0 0.0
  %1734 = vmatpush1.msra.mxu0 0.0
  %1735 = vmatprep.subr.mxu0 0.0
  %1736 = vmatpush1.msra.mxu0 0.0
  %1737 = vmatprep.subr.mxu0 0.0
  %1738 = vmatpush1.msra.mxu0 0.0
  %1739 = vmatprep.subr.mxu0 0.0
  %1740 = vmatpush1.msra.mxu0 0.0
  %1741 = vmatprep.subr.mxu0 0.0
  %1742 = vmatpush1.msra.mxu0 0.0
  %1743 = vmatprep.subr.mxu0 0.0
  %1744 = vmatpush1.msra.mxu0 0.0
  %1745 = vmatprep.subr.mxu0 0.0
  %1746 = vmatpush1.msra.mxu0 0.0
  %1747 = vmatprep.subr.mxu0 0.0
  %1748 = vmatpush1.msra.mxu0 0.0
  %1749 = vmatprep.subr.mxu0 0.0
  %1750 = vmatpush1.msra.mxu0 0.0
  %1751 = vmatprep.subr.mxu0 0.0
  %1752 = vmatpush1.msra.mxu0 0.0
  %1753 = vmatprep.subr.mxu0 0.0
  %1754 = vmatpush1.msra.mxu0 0.0
  %1755 = vmatprep.subr.mxu0 0.0
  %1756 = vmatpush1.msra.mxu0 0.0
  %1757 = vmatprep.subr.mxu0 0.0
  %1758 = vmatpush1.msra.mxu0 0.0
  %1759 = vmatprep.subr.mxu0 0.0
  %1760 = vmatpush1.msra.mxu0 0.0
  %1761 = vmatprep.subr.mxu0 0.0
  %1762 = vmatpush1.msra.mxu0 0.0
  %1763 = vmatprep.subr.mxu0 0.0
  %1764 = vmatpush1.msra.mxu0 0.0
  %1765 = vmatprep.subr.mxu0 0.0
  %1766 = vmatpush1.msra.mxu0 0.0
  %1767 = vmatprep.mubr.f32.mxu0 0.0
  %1768 = vmatmul.mubr.f32.gmra.mrb[0].mxu0 %v1699
  %v1769 = vpop.f32.mrb[0].mxu0
  %v1770 = vadd.f32 0.0, %v1769
  %v1771 = vpop.f32.mrb[0].mxu0
  %1772 = vmatprep.mubr.f32.mxu0 0.0
  %1773 = vmatmul.mubr.f32.gmra.mrb[0].mxu0 %v1701
  %v1774 = vpop.f32.mrb[0].mxu0
  %v1775 = vpop.f32.mrb[0].mxu0
  %v1776 = vadd.f32 0.0, %v1775
  %1777 = vdwg.mxu0
  %v1778 = vadd.f32 %v1770, %v1544
  %v1779 = vadd.f32 %v1776, %v1555
  %v1780 = vtanh.pop %v1778
  %v1781 = vtanh.pop %v1779
  %v1782 = vsub.f32 0.0, %v1778
  %v1783 = vsub.f32 0.0, %v1779
  %v1784 = vmul.f32 %v1782, 1.442695
  %v1785 = vpow.pop %v1784
  %v1786 = vmul.f32 %v1783, 1.442695
  %v1787 = vpow.pop %v1786
  %v1788 = vadd.f32 %v1785, 1.0
  %v1789 = vadd.f32 %v1787, 1.0
  %v1790 = vrcp.pop %v1788
  %v1791 = vmul.f32 1.0, %v1790
  %v1792 = vrcp.pop %v1789
  %v1793 = vmul.f32 1.0, %v1792
  %v1794 = vsel %vm15, %v1780, %v1791
  %v1795 = vsel %vm15, %v1781, %v1793
  %v1796 = vmul.f32 %v1794, %v1679
  %v1797 = vmul.f32 %v1795, %v1680
  %1800 = vrot.lane.b32.xlu0 %v1794, 64
  %v1801 = vpop.permute.xlu0 %1800
  %1802 = vrot.lane.b32.xlu0 %v1795, 64
  %v1803 = vpop.permute.xlu0 %1802
  %v1806 = vmul.f32 %v1794, %v1801
  %v1807 = vmul.f32 %v1795, %v1803
  %1810 = vrot.lane.b32.xlu0 %v1806, 32
  %v1811 = vpop.permute.xlu0 %1810
  %1812 = vrot.lane.b32.xlu0 %v1807, 32
  %v1813 = vpop.permute.xlu0 %1812
  %v1816 = vadd.f32 %v1796, %v1811
  %v1817 = vadd.f32 %v1797, %v1813
  %v1818 = vtanh.pop %v1816
  %v1819 = vtanh.pop %v1817
  %1822 = vrot.lane.b32.xlu0 %v1818, 64
  %v1823 = vpop.permute.xlu0 %1822
  %1824 = vrot.lane.b32.xlu0 %v1819, 64
  %v1825 = vpop.permute.xlu0 %1824
  %v1828 = vmul.f32 %v1794, %v1823
  %v1829 = vmul.f32 %v1795, %v1825
  %1832 = vrot.lane.b32.xlu0 %v1828, 32
  %v1833 = vpop.permute.xlu0 %1832
  %1834 = vrot.lane.b32.xlu0 %v1829, 32
  %v1835 = vpop.permute.xlu0 %1834
  %v1836 = vsel %vm187, %v1833, 0
  %v1838 = vsel %vm187, %v1835, 0
  %1840 = vmatprep.subr.mxu0 %v1559
  %1841 = vmatpush1.msra.mxu0 %v1558
  %1842 = vmatprep.subr.mxu0 %v1561
  %1843 = vmatpush1.msra.mxu0 %v1560
  %1844 = vmatprep.subr.mxu0 %v1563
  %1845 = vmatpush1.msra.mxu0 %v1562
  %1846 = vmatprep.subr.mxu0 %v1565
  %1847 = vmatpush1.msra.mxu0 %v1564
  %1848 = vmatprep.subr.mxu0 0.0
  %1849 = vmatpush1.msra.mxu0 0.0
  %1850 = vmatprep.subr.mxu0 0.0
  %1851 = vmatpush1.msra.mxu0 0.0
  %1852 = vmatprep.subr.mxu0 0.0
  %1853 = vmatpush1.msra.mxu0 0.0
  %1854 = vmatprep.subr.mxu0 0.0
  %1855 = vmatpush1.msra.mxu0 0.0
  %1856 = vmatprep.subr.mxu0 0.0
  %1857 = vmatpush1.msra.mxu0 0.0
  %1858 = vmatprep.subr.mxu0 0.0
  %1859 = vmatpush1.msra.mxu0 0.0
  %1860 = vmatprep.subr.mxu0 0.0
  %1861 = vmatpush1.msra.mxu0 0.0
  %1862 = vmatprep.subr.mxu0 0.0
  %1863 = vmatpush1.msra.mxu0 0.0
  %1864 = vmatprep.subr.mxu0 0.0
  %1865 = vmatpush1.msra.mxu0 0.0
  %1866 = vmatprep.subr.mxu0 0.0
  %1867 = vmatpush1.msra.mxu0 0.0
  %1868 = vmatprep.subr.mxu0 0.0
  %1869 = vmatpush1.msra.mxu0 0.0
  %1870 = vmatprep.subr.mxu0 0.0
  %1871 = vmatpush1.msra.mxu0 0.0
  %1872 = vmatprep.subr.mxu0 0.0
  %1873 = vmatpush1.msra.mxu0 0.0
  %1874 = vmatprep.subr.mxu0 0.0
  %1875 = vmatpush1.msra.mxu0 0.0
  %1876 = vmatprep.subr.mxu0 0.0
  %1877 = vmatpush1.msra.mxu0 0.0
  %1878 = vmatprep.subr.mxu0 0.0
  %1879 = vmatpush1.msra.mxu0 0.0
  %1880 = vmatprep.subr.mxu0 0.0
  %1881 = vmatpush1.msra.mxu0 0.0
  %1882 = vmatprep.subr.mxu0 0.0
  %1883 = vmatpush1.msra.mxu0 0.0
  %1884 = vmatprep.subr.mxu0 0.0
  %1885 = vmatpush1.msra.mxu0 0.0
  %1886 = vmatprep.subr.mxu0 0.0
  %1887 = vmatpush1.msra.mxu0 0.0
  %1888 = vmatprep.subr.mxu0 0.0
  %1889 = vmatpush1.msra.mxu0 0.0
  %1890 = vmatprep.subr.mxu0 0.0
  %1891 = vmatpush1.msra.mxu0 0.0
  %1892 = vmatprep.subr.mxu0 0.0
  %1893 = vmatpush1.msra.mxu0 0.0
  %1894 = vmatprep.subr.mxu0 0.0
  %1895 = vmatpush1.msra.mxu0 0.0
  %1896 = vmatprep.subr.mxu0 0.0
  %1897 = vmatpush1.msra.mxu0 0.0
  %1898 = vmatprep.subr.mxu0 0.0
  %1899 = vmatpush1.msra.mxu0 0.0
  %1900 = vmatprep.subr.mxu0 0.0
  %1901 = vmatpush1.msra.mxu0 0.0
  %1902 = vmatprep.subr.mxu0 0.0
  %1903 = vmatpush1.msra.mxu0 0.0
  %1904 = vmatprep.mubr.f32.mxu0 0.0
  %1905 = vmatmul.mubr.f32.gmra.mrb[0].mxu0 %v1836
  %v1906 = vpop.f32.mrb[0].mxu0
  %v1907 = vadd.f32 0.0, %v1906
  %v1908 = vpop.f32.mrb[0].mxu0
  %1909 = vmatprep.mubr.f32.mxu0 0.0
  %1910 = vmatmul.mubr.f32.gmra.mrb[0].mxu0 %v1838
  %v1911 = vpop.f32.mrb[0].mxu0
  %v1912 = vpop.f32.mrb[0].mxu0
  %v1913 = vadd.f32 0.0, %v1912
  %1914 = vdwg.mxu0
  %v1915 = vadd.f32 %v1907, %v1546
  %v1916 = vadd.f32 %v1913, %v1553
  %v1917 = vtanh.pop %v1915
  %v1918 = vtanh.pop %v1916
  %v1919 = vsub.f32 0.0, %v1915
  %v1920 = vsub.f32 0.0, %v1916
  %v1921 = vmul.f32 %v1919, 1.442695
  %v1922 = vpow.pop %v1921
  %v1923 = vmul.f32 %v1920, 1.442695
  %v1924 = vpow.pop %v1923
  %v1925 = vadd.f32 %v1922, 1.0
  %v1926 = vadd.f32 %v1924, 1.0
  %v1927 = vrcp.pop %v1925
  %v1928 = vmul.f32 1.0, %v1927
  %v1929 = vrcp.pop %v1926
  %v1930 = vmul.f32 1.0, %v1929
  %v1931 = vsel %vm15, %v1917, %v1928
  %v1932 = vsel %vm15, %v1918, %v1930
  %v1933 = vmul.f32 %v1931, %v1816
  %v1934 = vmul.f32 %v1932, %v1817
  %1937 = vrot.lane.b32.xlu0 %v1931, 64
  %v1938 = vpop.permute.xlu0 %1937
  %1939 = vrot.lane.b32.xlu0 %v1932, 64
  %v1940 = vpop.permute.xlu0 %1939
  %v1943 = vmul.f32 %v1931, %v1938
  %v1944 = vmul.f32 %v1932, %v1940
  %1947 = vrot.lane.b32.xlu0 %v1943, 32
  %v1948 = vpop.permute.xlu0 %1947
  %1949 = vrot.lane.b32.xlu0 %v1944, 32
  %v1950 = vpop.permute.xlu0 %1949
  %v1953 = vadd.f32 %v1933, %v1948
  %v1954 = vadd.f32 %v1934, %v1950
  %v1955 = vtanh.pop %v1953
  %v1956 = vtanh.pop %v1954
  %1959 = vrot.lane.b32.xlu0 %v1955, 64
  %v1960 = vpop.permute.xlu0 %1959
  %1961 = vrot.lane.b32.xlu0 %v1956, 64
  %v1962 = vpop.permute.xlu0 %1961
  %v1965 = vmul.f32 %v1931, %v1960
  %v1966 = vmul.f32 %v1932, %v1962
  %1969 = vrot.lane.b32.xlu0 %v1965, 32
  %v1970 = vpop.permute.xlu0 %1969
  %1971 = vrot.lane.b32.xlu0 %v1966, 32
  %v1972 = vpop.permute.xlu0 %1971
  %v1973 = vsel %vm187, %v1970, 0
  %v1975 = vsel %vm187, %v1972, 0
  %1977 = vmatprep.subr.mxu0 %v1559
  %1978 = vmatpush1.msra.mxu0 %v1558
  %1979 = vmatprep.subr.mxu0 %v1561
  %1980 = vmatpush1.msra.mxu0 %v1560
  %1981 = vmatprep.subr.mxu0 %v1563
  %1982 = vmatpush1.msra.mxu0 %v1562
  %1983 = vmatprep.subr.mxu0 %v1565
  %1984 = vmatpush1.msra.mxu0 %v1564
  %1985 = vmatprep.subr.mxu0 0.0
  %1986 = vmatpush1.msra.mxu0 0.0
  %1987 = vmatprep.subr.mxu0 0.0
  %1988 = vmatpush1.msra.mxu0 0.0
  %1989 = vmatprep.subr.mxu0 0.0
  %1990 = vmatpush1.msra.mxu0 0.0
  %1991 = vmatprep.subr.mxu0 0.0
  %1992 = vmatpush1.msra.mxu0 0.0
  %1993 = vmatprep.subr.mxu0 0.0
  %1994 = vmatpush1.msra.mxu0 0.0
  %1995 = vmatprep.subr.mxu0 0.0
  %1996 = vmatpush1.msra.mxu0 0.0
  %1997 = vmatprep.subr.mxu0 0.0
  %1998 = vmatpush1.msra.mxu0 0.0
  %1999 = vmatprep.subr.mxu0 0.0
  %2000 = vmatpush1.msra.mxu0 0.0
  %2001 = vmatprep.subr.mxu0 0.0
  %2002 = vmatpush1.msra.mxu0 0.0
  %2003 = vmatprep.subr.mxu0 0.0
  %2004 = vmatpush1.msra.mxu0 0.0
  %2005 = vmatprep.subr.mxu0 0.0
  %2006 = vmatpush1.msra.mxu0 0.0
  %2007 = vmatprep.subr.mxu0 0.0
  %2008 = vmatpush1.msra.mxu0 0.0
  %2009 = vmatprep.subr.mxu0 0.0
  %2010 = vmatpush1.msra.mxu0 0.0
  %2011 = vmatprep.subr.mxu0 0.0
  %2012 = vmatpush1.msra.mxu0 0.0
  %2013 = vmatprep.subr.mxu0 0.0
  %2014 = vmatpush1.msra.mxu0 0.0
  %2015 = vmatprep.subr.mxu0 0.0
  %2016 = vmatpush1.msra.mxu0 0.0
  %2017 = vmatprep.subr.mxu0 0.0
  %2018 = vmatpush1.msra.mxu0 0.0
  %2019 = vmatprep.subr.mxu0 0.0
  %2020 = vmatpush1.msra.mxu0 0.0
  %2021 = vmatprep.subr.mxu0 0.0
  %2022 = vmatpush1.msra.mxu0 0.0
  %2023 = vmatprep.subr.mxu0 0.0
  %2024 = vmatpush1.msra.mxu0 0.0
  %2025 = vmatprep.subr.mxu0 0.0
  %2026 = vmatpush1.msra.mxu0 0.0
  %2027 = vmatprep.subr.mxu0 0.0
  %2028 = vmatpush1.msra.mxu0 0.0
  %2029 = vmatprep.subr.mxu0 0.0
  %2030 = vmatpush1.msra.mxu0 0.0
  %2031 = vmatprep.subr.mxu0 0.0
  %2032 = vmatpush1.msra.mxu0 0.0
  %2033 = vmatprep.subr.mxu0 0.0
  %2034 = vmatpush1.msra.mxu0 0.0
  %2035 = vmatprep.subr.mxu0 0.0
  %2036 = vmatpush1.msra.mxu0 0.0
  %2037 = vmatprep.subr.mxu0 0.0
  %2038 = vmatpush1.msra.mxu0 0.0
  %2039 = vmatprep.subr.mxu0 0.0
  %2040 = vmatpush1.msra.mxu0 0.0
  %2041 = vmatprep.mubr.f32.mxu0 0.0
  %2042 = vmatmul.mubr.f32.gmra.mrb[0].mxu0 %v1973
  %v2043 = vpop.f32.mrb[0].mxu0
  %v2044 = vadd.f32 0.0, %v2043
  %v2045 = vpop.f32.mrb[0].mxu0
  %2046 = vmatprep.mubr.f32.mxu0 0.0
  %2047 = vmatmul.mubr.f32.gmra.mrb[0].mxu0 %v1975
  %v2048 = vpop.f32.mrb[0].mxu0
  %v2049 = vpop.f32.mrb[0].mxu0
  %v2050 = vadd.f32 0.0, %v2049
  %2051 = vdwg.mxu0
  %v2052 = vadd.f32 %v2044, %v1548
  %v2053 = vadd.f32 %v2050, %v1551
  %v2054 = vtanh.pop %v2052
  %v2055 = vtanh.pop %v2053
  %v2056 = vsub.f32 0.0, %v2052
  %v2057 = vsub.f32 0.0, %v2053
  %v2058 = vmul.f32 %v2056, 1.442695
  %v2059 = vpow.pop %v2058
  %v2060 = vmul.f32 %v2057, 1.442695
  %v2061 = vpow.pop %v2060
  %v2062 = vadd.f32 %v2059, 1.0
  %v2063 = vadd.f32 %v2061, 1.0
  %v2064 = vrcp.pop %v2062
  %v2065 = vmul.f32 1.0, %v2064
  %v2066 = vrcp.pop %v2063
  %v2067 = vmul.f32 1.0, %v2066
  %v2068 = vsel %vm15, %v2054, %v2065
  %v2069 = vsel %vm15, %v2055, %v2067
  %v2070 = vmul.f32 %v2068, %v1953
  %v2071 = vmul.f32 %v2069, %v1954
  %2074 = vrot.lane.b32.xlu0 %v2068, 64
  %v2075 = vpop.permute.xlu0 %2074
  %2076 = vrot.lane.b32.xlu0 %v2069, 64
  %v2077 = vpop.permute.xlu0 %2076
  %v2080 = vmul.f32 %v2068, %v2075
  %v2081 = vmul.f32 %v2069, %v2077
  %2084 = vrot.lane.b32.xlu0 %v2080, 32
  %v2085 = vpop.permute.xlu0 %2084
  %2086 = vrot.lane.b32.xlu0 %v2081, 32
  %v2087 = vpop.permute.xlu0 %2086
  %v2090 = vadd.f32 %v2070, %v2085
  %v2091 = vadd.f32 %v2071, %v2087
  %v2092 = vtanh.pop %v2090
  %v2093 = vtanh.pop %v2091
  %2096 = vrot.lane.b32.xlu0 %v2092, 64
  %v2097 = vpop.permute.xlu0 %2096
  %2098 = vrot.lane.b32.xlu0 %v2093, 64
  %v2099 = vpop.permute.xlu0 %2098
  %v2102 = vmul.f32 %v2068, %v2097
  %v2103 = vmul.f32 %v2069, %v2099
  %2106 = vrot.lane.b32.xlu0 %v2102, 32
  %v2107 = vpop.permute.xlu0 %2106
  %2108 = vrot.lane.b32.xlu0 %v2103, 32
  %v2109 = vpop.permute.xlu0 %2108
  %v2110 = vsel %vm187, %v2107, 0
  %v2112 = vsel %vm187, %v2109, 0
  %2114 = vmatprep.subr.mxu0 %v1559
  %2115 = vmatpush1.msra.mxu0 %v1558
  %2116 = vmatprep.subr.mxu0 %v1561
  %2117 = vmatpush1.msra.mxu0 %v1560
  %2118 = vmatprep.subr.mxu0 %v1563
  %2119 = vmatpush1.msra.mxu0 %v1562
  %2120 = vmatprep.subr.mxu0 %v1565
  %2121 = vmatpush1.msra.mxu0 %v1564
  %2122 = vmatprep.subr.mxu0 0.0
  %2123 = vmatpush1.msra.mxu0 0.0
  %2124 = vmatprep.subr.mxu0 0.0
  %2125 = vmatpush1.msra.mxu0 0.0
  %2126 = vmatprep.subr.mxu0 0.0
  %2127 = vmatpush1.msra.mxu0 0.0
  %2128 = vmatprep.subr.mxu0 0.0
  %2129 = vmatpush1.msra.mxu0 0.0
  %2130 = vmatprep.subr.mxu0 0.0
  %2131 = vmatpush1.msra.mxu0 0.0
  %2132 = vmatprep.subr.mxu0 0.0
  %2133 = vmatpush1.msra.mxu0 0.0
  %2134 = vmatprep.subr.mxu0 0.0
  %2135 = vmatpush1.msra.mxu0 0.0
  %2136 = vmatprep.subr.mxu0 0.0
  %2137 = vmatpush1.msra.mxu0 0.0
  %2138 = vmatprep.subr.mxu0 0.0
  %2139 = vmatpush1.msra.mxu0 0.0
  %2140 = vmatprep.subr.mxu0 0.0
  %2141 = vmatpush1.msra.mxu0 0.0
  %2142 = vmatprep.subr.mxu0 0.0
  %2143 = vmatpush1.msra.mxu0 0.0
  %2144 = vmatprep.subr.mxu0 0.0
  %2145 = vmatpush1.msra.mxu0 0.0
  %2146 = vmatprep.subr.mxu0 0.0
  %2147 = vmatpush1.msra.mxu0 0.0
  %2148 = vmatprep.subr.mxu0 0.0
  %2149 = vmatpush1.msra.mxu0 0.0
  %2150 = vmatprep.subr.mxu0 0.0
  %2151 = vmatpush1.msra.mxu0 0.0
  %2152 = vmatprep.subr.mxu0 0.0
  %2153 = vmatpush1.msra.mxu0 0.0
  %2154 = vmatprep.subr.mxu0 0.0
  %2155 = vmatpush1.msra.mxu0 0.0
  %2156 = vmatprep.subr.mxu0 0.0
  %2157 = vmatpush1.msra.mxu0 0.0
  %2158 = vmatprep.subr.mxu0 0.0
  %2159 = vmatpush1.msra.mxu0 0.0
  %2160 = vmatprep.subr.mxu0 0.0
  %2161 = vmatpush1.msra.mxu0 0.0
  %2162 = vmatprep.subr.mxu0 0.0
  %2163 = vmatpush1.msra.mxu0 0.0
  %2164 = vmatprep.subr.mxu0 0.0
  %2165 = vmatpush1.msra.mxu0 0.0
  %2166 = vmatprep.subr.mxu0 0.0
  %2167 = vmatpush1.msra.mxu0 0.0
  %2168 = vmatprep.subr.mxu0 0.0
  %2169 = vmatpush1.msra.mxu0 0.0
  %2170 = vmatprep.subr.mxu0 0.0
  %2171 = vmatpush1.msra.mxu0 0.0
  %2172 = vmatprep.subr.mxu0 0.0
  %2173 = vmatpush1.msra.mxu0 0.0
  %2174 = vmatprep.subr.mxu0 0.0
  %2175 = vmatpush1.msra.mxu0 0.0
  %2176 = vmatprep.subr.mxu0 0.0
  %2177 = vmatpush1.msra.mxu0 0.0
  %2178 = vmatprep.mubr.f32.mxu0 0.0
  %2179 = vmatmul.mubr.f32.gmra.mrb[0].mxu0 %v2110
  %v2180 = vpop.f32.mrb[0].mxu0
  %v2181 = vadd.f32 0.0, %v2180
  %v2182 = vpop.f32.mrb[0].mxu0
  %2183 = vmatprep.mubr.f32.mxu0 0.0
  %2184 = vmatmul.mubr.f32.gmra.mrb[0].mxu0 %v2112
  %v2185 = vpop.f32.mrb[0].mxu0
  %v2186 = vpop.f32.mrb[0].mxu0
  %v2187 = vadd.f32 0.0, %v2186
  %2188 = vdwg.mxu0
  %v2189 = vadd.f32 %v2181, %v1550
  %v2190 = vadd.f32 %v2187, %v1549
  %v2191 = vtanh.pop %v2189
  %v2192 = vtanh.pop %v2190
  %v2193 = vsub.f32 0.0, %v2189
  %v2194 = vsub.f32 0.0, %v2190
  %v2195 = vmul.f32 %v2193, 1.442695
  %v2196 = vpow.pop %v2195
  %v2197 = vmul.f32 %v2194, 1.442695
  %v2198 = vpow.pop %v2197
  %v2199 = vadd.f32 %v2196, 1.0
  %v2200 = vadd.f32 %v2198, 1.0
  %v2201 = vrcp.pop %v2199
  %v2202 = vmul.f32 1.0, %v2201
  %v2203 = vrcp.pop %v2200
  %v2204 = vmul.f32 1.0, %v2203
  %v2205 = vsel %vm15, %v2191, %v2202
  %v2206 = vsel %vm15, %v2192, %v2204
  %v2207 = vmul.f32 %v2205, %v2090
  %v2208 = vmul.f32 %v2206, %v2091
  %2211 = vrot.lane.b32.xlu0 %v2205, 64
  %v2212 = vpop.permute.xlu0 %2211
  %2213 = vrot.lane.b32.xlu0 %v2206, 64
  %v2214 = vpop.permute.xlu0 %2213
  %v2217 = vmul.f32 %v2205, %v2212
  %v2218 = vmul.f32 %v2206, %v2214
  %2221 = vrot.lane.b32.xlu0 %v2217, 32
  %v2222 = vpop.permute.xlu0 %2221
  %2223 = vrot.lane.b32.xlu0 %v2218, 32
  %v2224 = vpop.permute.xlu0 %2223
  %v2227 = vadd.f32 %v2207, %v2222
  %v2228 = vadd.f32 %v2208, %v2224
  %v2229 = vtanh.pop %v2227
  %v2230 = vtanh.pop %v2228
  %2233 = vrot.lane.b32.xlu0 %v2229, 64
  %v2234 = vpop.permute.xlu0 %2233
  %2235 = vrot.lane.b32.xlu0 %v2230, 64
  %v2236 = vpop.permute.xlu0 %2235
  %v2239 = vmul.f32 %v2205, %v2234
  %v2240 = vmul.f32 %v2206, %v2236
  %2243 = vrot.lane.b32.xlu0 %v2239, 32
  %v2244 = vpop.permute.xlu0 %2243
  %2245 = vrot.lane.b32.xlu0 %v2240, 32
  %v2246 = vpop.permute.xlu0 %2245
  %v2247 = vsel %vm187, %v2244, 0
  %v2249 = vsel %vm187, %v2246, 0
  %2251 = vmatprep.subr.mxu0 %v1559
  %2252 = vmatpush1.msra.mxu0 %v1558
  %2253 = vmatprep.subr.mxu0 %v1561
  %2254 = vmatpush1.msra.mxu0 %v1560
  %2255 = vmatprep.subr.mxu0 %v1563
  %2256 = vmatpush1.msra.mxu0 %v1562
  %2257 = vmatprep.subr.mxu0 %v1565
  %2258 = vmatpush1.msra.mxu0 %v1564
  %2259 = vmatprep.subr.mxu0 0.0
  %2260 = vmatpush1.msra.mxu0 0.0
  %2261 = vmatprep.subr.mxu0 0.0
  %2262 = vmatpush1.msra.mxu0 0.0
  %2263 = vmatprep.subr.mxu0 0.0
  %2264 = vmatpush1.msra.mxu0 0.0
  %2265 = vmatprep.subr.mxu0 0.0
  %2266 = vmatpush1.msra.mxu0 0.0
  %2267 = vmatprep.subr.mxu0 0.0
  %2268 = vmatpush1.msra.mxu0 0.0
  %2269 = vmatprep.subr.mxu0 0.0
  %2270 = vmatpush1.msra.mxu0 0.0
  %2271 = vmatprep.subr.mxu0 0.0
  %2272 = vmatpush1.msra.mxu0 0.0
  %2273 = vmatprep.subr.mxu0 0.0
  %2274 = vmatpush1.msra.mxu0 0.0
  %2275 = vmatprep.subr.mxu0 0.0
  %2276 = vmatpush1.msra.mxu0 0.0
  %2277 = vmatprep.subr.mxu0 0.0
  %2278 = vmatpush1.msra.mxu0 0.0
  %2279 = vmatprep.subr.mxu0 0.0
  %2280 = vmatpush1.msra.mxu0 0.0
  %2281 = vmatprep.subr.mxu0 0.0
  %2282 = vmatpush1.msra.mxu0 0.0
  %2283 = vmatprep.subr.mxu0 0.0
  %2284 = vmatpush1.msra.mxu0 0.0
  %2285 = vmatprep.subr.mxu0 0.0
  %2286 = vmatpush1.msra.mxu0 0.0
  %2287 = vmatprep.subr.mxu0 0.0
  %2288 = vmatpush1.msra.mxu0 0.0
  %2289 = vmatprep.subr.mxu0 0.0
  %2290 = vmatpush1.msra.mxu0 0.0
  %2291 = vmatprep.subr.mxu0 0.0
  %2292 = vmatpush1.msra.mxu0 0.0
  %2293 = vmatprep.subr.mxu0 0.0
  %2294 = vmatpush1.msra.mxu0 0.0
  %2295 = vmatprep.subr.mxu0 0.0
  %2296 = vmatpush1.msra.mxu0 0.0
  %2297 = vmatprep.subr.mxu0 0.0
  %2298 = vmatpush1.msra.mxu0 0.0
  %2299 = vmatprep.subr.mxu0 0.0
  %2300 = vmatpush1.msra.mxu0 0.0
  %2301 = vmatprep.subr.mxu0 0.0
  %2302 = vmatpush1.msra.mxu0 0.0
  %2303 = vmatprep.subr.mxu0 0.0
  %2304 = vmatpush1.msra.mxu0 0.0
  %2305 = vmatprep.subr.mxu0 0.0
  %2306 = vmatpush1.msra.mxu0 0.0
  %2307 = vmatprep.subr.mxu0 0.0
  %2308 = vmatpush1.msra.mxu0 0.0
  %2309 = vmatprep.subr.mxu0 0.0
  %2310 = vmatpush1.msra.mxu0 0.0
  %2311 = vmatprep.subr.mxu0 0.0
  %2312 = vmatpush1.msra.mxu0 0.0
  %2313 = vmatprep.subr.mxu0 0.0
  %2314 = vmatpush1.msra.mxu0 0.0
  %2315 = vmatprep.mubr.f32.mxu0 0.0
  %2316 = vmatmul.mubr.f32.gmra.mrb[0].mxu0 %v2247
  %v2317 = vpop.f32.mrb[0].mxu0
  %v2318 = vadd.f32 0.0, %v2317
  %v2319 = vpop.f32.mrb[0].mxu0
  %2320 = vmatprep.mubr.f32.mxu0 0.0
  %2321 = vmatmul.mubr.f32.gmra.mrb[0].mxu0 %v2249
  %v2322 = vpop.f32.mrb[0].mxu0
  %v2323 = vpop.f32.mrb[0].mxu0
  %v2324 = vadd.f32 0.0, %v2323
  %2325 = vdwg.mxu0
  %v2326 = vadd.f32 %v2318, %v1552
  %v2327 = vadd.f32 %v2324, %v1547
  %v2328 = vtanh.pop %v2326
  %v2329 = vtanh.pop %v2327
  %v2330 = vsub.f32 0.0, %v2326
  %v2331 = vsub.f32 0.0, %v2327
  %v2332 = vmul.f32 %v2330, 1.442695
  %v2333 = vpow.pop %v2332
  %v2334 = vmul.f32 %v2331, 1.442695
  %v2335 = vpow.pop %v2334
  %v2336 = vadd.f32 %v2333, 1.0
  %v2337 = vadd.f32 %v2335, 1.0
  %v2338 = vrcp.pop %v2336
  %v2339 = vmul.f32 1.0, %v2338
  %v2340 = vrcp.pop %v2337
  %v2341 = vmul.f32 1.0, %v2340
  %v2342 = vsel %vm15, %v2328, %v2339
  %v2343 = vsel %vm15, %v2329, %v2341
  %v2344 = vmul.f32 %v2342, %v2227
  %v2345 = vmul.f32 %v2343, %v2228
  %2348 = vrot.lane.b32.xlu0 %v2342, 64
  %v2349 = vpop.permute.xlu0 %2348
  %2350 = vrot.lane.b32.xlu0 %v2343, 64
  %v2351 = vpop.permute.xlu0 %2350
  %v2354 = vmul.f32 %v2342, %v2349
  %v2355 = vmul.f32 %v2343, %v2351
  %2358 = vrot.lane.b32.xlu0 %v2354, 32
  %v2359 = vpop.permute.xlu0 %2358
  %2360 = vrot.lane.b32.xlu0 %v2355, 32
  %v2361 = vpop.permute.xlu0 %2360
  %v2364 = vadd.f32 %v2344, %v2359
  %v2365 = vadd.f32 %v2345, %v2361
  %v2366 = vtanh.pop %v2364
  %v2367 = vtanh.pop %v2365
  %2370 = vrot.lane.b32.xlu0 %v2366, 64
  %v2371 = vpop.permute.xlu0 %2370
  %2372 = vrot.lane.b32.xlu0 %v2367, 64
  %v2373 = vpop.permute.xlu0 %2372
  %v2376 = vmul.f32 %v2342, %v2371
  %v2377 = vmul.f32 %v2343, %v2373
  %2380 = vrot.lane.b32.xlu0 %v2376, 32
  %v2381 = vpop.permute.xlu0 %2380
  %2382 = vrot.lane.b32.xlu0 %v2377, 32
  %v2383 = vpop.permute.xlu0 %2382
  %v2384 = vsel %vm187, %v2381, 0
  %v2386 = vsel %vm187, %v2383, 0
  %2388 = vmatprep.subr.mxu0 %v1559
  %2389 = vmatpush1.msra.mxu0 %v1558
  %2390 = vmatprep.subr.mxu0 %v1561
  %2391 = vmatpush1.msra.mxu0 %v1560
  %2392 = vmatprep.subr.mxu0 %v1563
  %2393 = vmatpush1.msra.mxu0 %v1562
  %2394 = vmatprep.subr.mxu0 %v1565
  %2395 = vmatpush1.msra.mxu0 %v1564
  %2396 = vmatprep.subr.mxu0 0.0
  %2397 = vmatpush1.msra.mxu0 0.0
  %2398 = vmatprep.subr.mxu0 0.0
  %2399 = vmatpush1.msra.mxu0 0.0
  %2400 = vmatprep.subr.mxu0 0.0
  %2401 = vmatpush1.msra.mxu0 0.0
  %2402 = vmatprep.subr.mxu0 0.0
  %2403 = vmatpush1.msra.mxu0 0.0
  %2404 = vmatprep.subr.mxu0 0.0
  %2405 = vmatpush1.msra.mxu0 0.0
  %2406 = vmatprep.subr.mxu0 0.0
  %2407 = vmatpush1.msra.mxu0 0.0
  %2408 = vmatprep.subr.mxu0 0.0
  %2409 = vmatpush1.msra.mxu0 0.0
  %2410 = vmatprep.subr.mxu0 0.0
  %2411 = vmatpush1.msra.mxu0 0.0
  %2412 = vmatprep.subr.mxu0 0.0
  %2413 = vmatpush1.msra.mxu0 0.0
  %2414 = vmatprep.subr.mxu0 0.0
  %2415 = vmatpush1.msra.mxu0 0.0
  %2416 = vmatprep.subr.mxu0 0.0
  %2417 = vmatpush1.msra.mxu0 0.0
  %2418 = vmatprep.subr.mxu0 0.0
  %2419 = vmatpush1.msra.mxu0 0.0
  %2420 = vmatprep.subr.mxu0 0.0
  %2421 = vmatpush1.msra.mxu0 0.0
  %2422 = vmatprep.subr.mxu0 0.0
  %2423 = vmatpush1.msra.mxu0 0.0
  %2424 = vmatprep.subr.mxu0 0.0
  %2425 = vmatpush1.msra.mxu0 0.0
  %2426 = vmatprep.subr.mxu0 0.0
  %2427 = vmatpush1.msra.mxu0 0.0
  %2428 = vmatprep.subr.mxu0 0.0
  %2429 = vmatpush1.msra.mxu0 0.0
  %2430 = vmatprep.subr.mxu0 0.0
  %2431 = vmatpush1.msra.mxu0 0.0
  %2432 = vmatprep.subr.mxu0 0.0
  %2433 = vmatpush1.msra.mxu0 0.0
  %2434 = vmatprep.subr.mxu0 0.0
  %2435 = vmatpush1.msra.mxu0 0.0
  %2436 = vmatprep.subr.mxu0 0.0
  %2437 = vmatpush1.msra.mxu0 0.0
  %2438 = vmatprep.subr.mxu0 0.0
  %2439 = vmatpush1.msra.mxu0 0.0
  %2440 = vmatprep.subr.mxu0 0.0
  %2441 = vmatpush1.msra.mxu0 0.0
  %2442 = vmatprep.subr.mxu0 0.0
  %2443 = vmatpush1.msra.mxu0 0.0
  %2444 = vmatprep.subr.mxu0 0.0
  %2445 = vmatpush1.msra.mxu0 0.0
  %2446 = vmatprep.subr.mxu0 0.0
  %2447 = vmatpush1.msra.mxu0 0.0
  %2448 = vmatprep.subr.mxu0 0.0
  %2449 = vmatpush1.msra.mxu0 0.0
  %2450 = vmatprep.subr.mxu0 0.0
  %2451 = vmatpush1.msra.mxu0 0.0
  %2452 = vmatprep.mubr.f32.mxu0 0.0
  %2453 = vmatmul.mubr.f32.gmra.mrb[0].mxu0 %v2384
  %v2454 = vpop.f32.mrb[0].mxu0
  %v2455 = vadd.f32 0.0, %v2454
  %v2456 = vpop.f32.mrb[0].mxu0
  %2457 = vmatprep.mubr.f32.mxu0 0.0
  %2458 = vmatmul.mubr.f32.gmra.mrb[0].mxu0 %v2386
  %v2459 = vpop.f32.mrb[0].mxu0
  %v2460 = vpop.f32.mrb[0].mxu0
  %v2461 = vadd.f32 0.0, %v2460
  %2462 = vdwg.mxu0
  %v2463 = vadd.f32 %v2455, %v1554
  %v2464 = vadd.f32 %v2461, %v1545
  %v2465 = vtanh.pop %v2463
  %v2466 = vtanh.pop %v2464
  %v2467 = vsub.f32 0.0, %v2463
  %v2468 = vsub.f32 0.0, %v2464
  %v2469 = vmul.f32 %v2467, 1.442695
  %v2470 = vpow.pop %v2469
  %v2471 = vmul.f32 %v2468, 1.442695
  %v2472 = vpow.pop %v2471
  %v2473 = vadd.f32 %v2470, 1.0
  %v2474 = vadd.f32 %v2472, 1.0
  %v2475 = vrcp.pop %v2473
  %v2476 = vmul.f32 1.0, %v2475
  %v2477 = vrcp.pop %v2474
  %v2478 = vmul.f32 1.0, %v2477
  %v2479 = vsel %vm15, %v2465, %v2476
  %v2480 = vsel %vm15, %v2466, %v2478
  %v2481 = vmul.f32 %v2479, %v2364
  %v2482 = vmul.f32 %v2480, %v2365
  %2485 = vrot.lane.b32.xlu0 %v2479, 64
  %v2486 = vpop.permute.xlu0 %2485
  %2487 = vrot.lane.b32.xlu0 %v2480, 64
  %v2488 = vpop.permute.xlu0 %2487
  %v2491 = vmul.f32 %v2479, %v2486
  %v2492 = vmul.f32 %v2480, %v2488
  %2495 = vrot.lane.b32.xlu0 %v2491, 32
  %v2496 = vpop.permute.xlu0 %2495
  %2497 = vrot.lane.b32.xlu0 %v2492, 32
  %v2498 = vpop.permute.xlu0 %2497
  %v2501 = vadd.f32 %v2481, %v2496
  %v2502 = vadd.f32 %v2482, %v2498
  %v2503 = vtanh.pop %v2501
  %v2504 = vtanh.pop %v2502
  %2507 = vrot.lane.b32.xlu0 %v2503, 64
  %v2508 = vpop.permute.xlu0 %2507
  %2509 = vrot.lane.b32.xlu0 %v2504, 64
  %v2510 = vpop.permute.xlu0 %2509
  %v2513 = vmul.f32 %v2479, %v2508
  %v2514 = vmul.f32 %v2480, %v2510
  %2517 = vrot.lane.b32.xlu0 %v2513, 32
  %v2518 = vpop.permute.xlu0 %2517
  %2519 = vrot.lane.b32.xlu0 %v2514, 32
  %v2520 = vpop.permute.xlu0 %2519
  %v2521 = vsel %vm187, %v2518, 0
  %v2523 = vsel %vm187, %v2520, 0
  %2525 = vmatprep.subr.mxu0 %v1559
  %2526 = vmatpush1.msra.mxu0 %v1558
  %2527 = vmatprep.subr.mxu0 %v1561
  %2528 = vmatpush1.msra.mxu0 %v1560
  %2529 = vmatprep.subr.mxu0 %v1563
  %2530 = vmatpush1.msra.mxu0 %v1562
  %2531 = vmatprep.subr.mxu0 %v1565
  %2532 = vmatpush1.msra.mxu0 %v1564
  %2533 = vmatprep.subr.mxu0 0.0
  %2534 = vmatpush1.msra.mxu0 0.0
  %2535 = vmatprep.subr.mxu0 0.0
  %2536 = vmatpush1.msra.mxu0 0.0
  %2537 = vmatprep.subr.mxu0 0.0
  %2538 = vmatpush1.msra.mxu0 0.0
  %2539 = vmatprep.subr.mxu0 0.0
  %2540 = vmatpush1.msra.mxu0 0.0
  %2541 = vmatprep.subr.mxu0 0.0
  %2542 = vmatpush1.msra.mxu0 0.0
  %2543 = vmatprep.subr.mxu0 0.0
  %2544 = vmatpush1.msra.mxu0 0.0
  %2545 = vmatprep.subr.mxu0 0.0
  %2546 = vmatpush1.msra.mxu0 0.0
  %2547 = vmatprep.subr.mxu0 0.0
  %2548 = vmatpush1.msra.mxu0 0.0
  %2549 = vmatprep.subr.mxu0 0.0
  %2550 = vmatpush1.msra.mxu0 0.0
  %2551 = vmatprep.subr.mxu0 0.0
  %2552 = vmatpush1.msra.mxu0 0.0
  %2553 = vmatprep.subr.mxu0 0.0
  %2554 = vmatpush1.msra.mxu0 0.0
  %2555 = vmatprep.subr.mxu0 0.0
  %2556 = vmatpush1.msra.mxu0 0.0
  %2557 = vmatprep.subr.mxu0 0.0
  %2558 = vmatpush1.msra.mxu0 0.0
  %2559 = vmatprep.subr.mxu0 0.0
  %2560 = vmatpush1.msra.mxu0 0.0
  %2561 = vmatprep.subr.mxu0 0.0
  %2562 = vmatpush1.msra.mxu0 0.0
  %2563 = vmatprep.subr.mxu0 0.0
  %2564 = vmatpush1.msra.mxu0 0.0
  %2565 = vmatprep.subr.mxu0 0.0
  %2566 = vmatpush1.msra.mxu0 0.0
  %2567 = vmatprep.subr.mxu0 0.0
  %2568 = vmatpush1.msra.mxu0 0.0
  %2569 = vmatprep.subr.mxu0 0.0
  %2570 = vmatpush1.msra.mxu0 0.0
  %2571 = vmatprep.subr.mxu0 0.0
  %2572 = vmatpush1.msra.mxu0 0.0
  %2573 = vmatprep.subr.mxu0 0.0
  %2574 = vmatpush1.msra.mxu0 0.0
  %2575 = vmatprep.subr.mxu0 0.0
  %2576 = vmatpush1.msra.mxu0 0.0
  %2577 = vmatprep.subr.mxu0 0.0
  %2578 = vmatpush1.msra.mxu0 0.0
  %2579 = vmatprep.subr.mxu0 0.0
  %2580 = vmatpush1.msra.mxu0 0.0
  %2581 = vmatprep.subr.mxu0 0.0
  %2582 = vmatpush1.msra.mxu0 0.0
  %2583 = vmatprep.subr.mxu0 0.0
  %2584 = vmatpush1.msra.mxu0 0.0
  %2585 = vmatprep.subr.mxu0 0.0
  %2586 = vmatpush1.msra.mxu0 0.0
  %2587 = vmatprep.subr.mxu0 0.0
  %2588 = vmatpush1.msra.mxu0 0.0
  %2589 = vmatprep.mubr.f32.mxu0 0.0
  %2590 = vmatmul.mubr.f32.gmra.mrb[0].mxu0 %v2521
  %v2591 = vpop.f32.mrb[0].mxu0
  %v2592 = vadd.f32 0.0, %v2591
  %v2593 = vpop.f32.mrb[0].mxu0
  %2594 = vmatprep.mubr.f32.mxu0 0.0
  %2595 = vmatmul.mubr.f32.gmra.mrb[0].mxu0 %v2523
  %v2596 = vpop.f32.mrb[0].mxu0
  %v2597 = vpop.f32.mrb[0].mxu0
  %v2598 = vadd.f32 0.0, %v2597
  %2599 = vdwg.mxu0
  %v2600 = vadd.f32 %v2592, %v1556
  %v2601 = vadd.f32 %v2598, %v1543
  %v2602 = vtanh.pop %v2600
  %v2603 = vtanh.pop %v2601
  %v2604 = vsub.f32 0.0, %v2600
  %v2605 = vsub.f32 0.0, %v2601
  %v2606 = vmul.f32 %v2604, 1.442695
  %v2607 = vpow.pop %v2606
  %v2608 = vmul.f32 %v2605, 1.442695
  %v2609 = vpow.pop %v2608
  %v2610 = vadd.f32 %v2607, 1.0
  %v2611 = vadd.f32 %v2609, 1.0
  %v2612 = vrcp.pop %v2610
  %v2613 = vmul.f32 1.0, %v2612
  %v2614 = vrcp.pop %v2611
  %v2615 = vmul.f32 1.0, %v2614
  %v2616 = vsel %vm15, %v2602, %v2613
  %v2617 = vsel %vm15, %v2603, %v2615
  %v2618 = vmul.f32 %v2616, %v2501
  %v2619 = vmul.f32 %v2617, %v2502
  %2622 = vrot.lane.b32.xlu0 %v2616, 64
  %v2623 = vpop.permute.xlu0 %2622
  %2624 = vrot.lane.b32.xlu0 %v2617, 64
  %v2625 = vpop.permute.xlu0 %2624
  %v2628 = vmul.f32 %v2616, %v2623
  %v2629 = vmul.f32 %v2617, %v2625
  %2632 = vrot.lane.b32.xlu0 %v2628, 32
  %v2633 = vpop.permute.xlu0 %2632
  %2634 = vrot.lane.b32.xlu0 %v2629, 32
  %v2635 = vpop.permute.xlu0 %2634
  %v2638 = vadd.f32 %v2618, %v2633
  %v2639 = vadd.f32 %v2619, %v2635
  %v2640 = vtanh.pop %v2638
  %v2641 = vtanh.pop %v2639
  %2644 = vrot.lane.b32.xlu0 %v2640, 64
  %v2645 = vpop.permute.xlu0 %2644
  %2646 = vrot.lane.b32.xlu0 %v2641, 64
  %v2647 = vpop.permute.xlu0 %2646
  %v2650 = vmul.f32 %v2616, %v2645
  %v2651 = vmul.f32 %v2617, %v2647
  %v2652 = vld [vmem:[%s1 + $0x140] sm:$0xff]
  %v2653 = vld [vmem:[%s1 + $0x150] sm:$0xff]
  %v2654 = vld [vmem:[%s1 + $0x160] sm:$0xff]
  %v2655 = vld [vmem:[%s1 + $0x170] sm:$0xff]
  %v2656 = vld [vmem:[%s1 + $0x180] sm:$0xff]
  %v2657 = vld [vmem:[%s1 + $0x190] sm:$0xff]
  %v2658 = vld [vmem:[%s1 + $0x1a0] sm:$0xff]
  %v2659 = vld [vmem:[%s1 + $0x1b0] sm:$0xff]
  %v2660 = vld [vmem:[%s1 + $0x1c0] ss:$0 sm:$0xff]
  %2662 = vrot.lane.b32.xlu0 %v2651, 32
  %v2663 = vpop.permute.xlu0 %2662
  %v2664 = vsel %vm187, %v2663, 0
  %2666 = vmatprep.subr.mxu0 0.0
  %2667 = vmatpush1.msra.mxu0 %v2656
  %2668 = vmatprep.subr.mxu0 0.0
  %2669 = vmatpush1.msra.mxu0 %v2657
  %2670 = vmatprep.subr.mxu0 0.0
  %2671 = vmatpush1.msra.mxu0 %v2658
  %2672 = vmatprep.subr.mxu0 0.0
  %2673 = vmatpush1.msra.mxu0 %v2659
  %2674 = vmatprep.subr.mxu0 0.0
  %2675 = vmatpush1.msra.mxu0 0.0
  %2676 = vmatprep.subr.mxu0 0.0
  %2677 = vmatpush1.msra.mxu0 0.0
  %2678 = vmatprep.subr.mxu0 0.0
  %2679 = vmatpush1.msra.mxu0 0.0
  %2680 = vmatprep.subr.mxu0 0.0
  %2681 = vmatpush1.msra.mxu0 0.0
  %2682 = vmatprep.subr.mxu0 0.0
  %2683 = vmatpush1.msra.mxu0 0.0
  %2684 = vmatprep.subr.mxu0 0.0
  %2685 = vmatpush1.msra.mxu0 0.0
  %2686 = vmatprep.subr.mxu0 0.0
  %2687 = vmatpush1.msra.mxu0 0.0
  %2688 = vmatprep.subr.mxu0 0.0
  %2689 = vmatpush1.msra.mxu0 0.0
  %2690 = vmatprep.subr.mxu0 0.0
  %2691 = vmatpush1.msra.mxu0 0.0
  %2692 = vmatprep.subr.mxu0 0.0
  %2693 = vmatpush1.msra.mxu0 0.0
  %2694 = vmatprep.subr.mxu0 0.0
  %2695 = vmatpush1.msra.mxu0 0.0
  %2696 = vmatprep.subr.mxu0 0.0
  %2697 = vmatpush1.msra.mxu0 0.0
  %2698 = vmatprep.subr.mxu0 0.0
  %2699 = vmatpush1.msra.mxu0 0.0
  %2700 = vmatprep.subr.mxu0 0.0
  %2701 = vmatpush1.msra.mxu0 0.0
  %2702 = vmatprep.subr.mxu0 0.0
  %2703 = vmatpush1.msra.mxu0 0.0
  %2704 = vmatprep.subr.mxu0 0.0
  %2705 = vmatpush1.msra.mxu0 0.0
  %2706 = vmatprep.subr.mxu0 0.0
  %2707 = vmatpush1.msra.mxu0 0.0
  %2708 = vmatprep.subr.mxu0 0.0
  %2709 = vmatpush1.msra.mxu0 0.0
  %2710 = vmatprep.subr.mxu0 0.0
  %2711 = vmatpush1.msra.mxu0 0.0
  %2712 = vmatprep.subr.mxu0 0.0
  %2713 = vmatpush1.msra.mxu0 0.0
  %2714 = vmatprep.subr.mxu0 0.0
  %2715 = vmatpush1.msra.mxu0 0.0
  %2716 = vmatprep.subr.mxu0 0.0
  %2717 = vmatpush1.msra.mxu0 0.0
  %2718 = vmatprep.subr.mxu0 0.0
  %2719 = vmatpush1.msra.mxu0 0.0
  %2720 = vmatprep.subr.mxu0 0.0
  %2721 = vmatpush1.msra.mxu0 0.0
  %2722 = vmatprep.subr.mxu0 0.0
  %2723 = vmatpush1.msra.mxu0 0.0
  %2724 = vmatprep.subr.mxu0 0.0
  %2725 = vmatpush1.msra.mxu0 0.0
  %2726 = vmatprep.subr.mxu0 0.0
  %2727 = vmatpush1.msra.mxu0 0.0
  %2728 = vmatprep.subr.mxu0 0.0
  %2729 = vmatpush1.msra.mxu0 0.0
  %2730 = vmatprep.mubr.f32.mxu0 0.0
  %2731 = vmatmul.mubr.f32.gmra.mrb[0].mxu0 %v2664
  %v2732 = vpop.f32.mrb[0].mxu0
  %v2733 = vadd.f32 0.0, %v2732
  %v2734 = vpop.f32.mrb[0].mxu0
  %2735 = vmatprep.mubr.f32.mxu0 0.0
  %2736 = vmatmul.mubr.f32.gmra.mrb[0].mxu0 %v2523
  %v2737 = vpop.f32.mrb[0].mxu0
  %v2738 = vadd.f32 0.0, %v2737
  %v2739 = vpop.f32.mrb[0].mxu0
  %2740 = vmatprep.mubr.f32.mxu0 0.0
  %2741 = vmatmul.mubr.f32.gmra.mrb[0].mxu0 %v2386
  %v2742 = vpop.f32.mrb[0].mxu0
  %v2743 = vadd.f32 0.0, %v2742
  %v2744 = vpop.f32.mrb[0].mxu0
  %2745 = vmatprep.mubr.f32.mxu0 0.0
  %2746 = vmatmul.mubr.f32.gmra.mrb[0].mxu0 %v2249
  %v2747 = vpop.f32.mrb[0].mxu0
  %v2748 = vadd.f32 0.0, %v2747
  %v2749 = vpop.f32.mrb[0].mxu0
  %2750 = vmatprep.mubr.f32.mxu0 0.0
  %2751 = vmatmul.mubr.f32.gmra.mrb[0].mxu0 %v2112
  %v2752 = vpop.f32.mrb[0].mxu0
  %v2753 = vadd.f32 0.0, %v2752
  %v2754 = vpop.f32.mrb[0].mxu0
  %2755 = vmatprep.mubr.f32.mxu0 0.0
  %2756 = vmatmul.mubr.f32.gmra.mrb[0].mxu0 %v1975
  %v2757 = vpop.f32.mrb[0].mxu0
  %v2758 = vadd.f32 0.0, %v2757
  %v2759 = vpop.f32.mrb[0].mxu0
  %2760 = vmatprep.mubr.f32.mxu0 0.0
  %2761 = vmatmul.mubr.f32.gmra.mrb[0].mxu0 %v1838
  %v2762 = vpop.f32.mrb[0].mxu0
  %v2763 = vadd.f32 0.0, %v2762
  %v2764 = vpop.f32.mrb[0].mxu0
  %2765 = vmatprep.mubr.f32.mxu0 0.0
  %2766 = vmatmul.mubr.f32.gmra.mrb[0].mxu0 %v1701
  %v2767 = vpop.f32.mrb[0].mxu0
  %v2768 = vadd.f32 0.0, %v2767
  %v2769 = vpop.f32.mrb[0].mxu0
  %2770 = vdwg.mxu0
  %2772 = vrot.lane.b32.xlu0 %v2650, 32
  %v2773 = vpop.permute.xlu0 %2772
  %v2774 = vsel %vm187, %v2773, 0
  %2776 = vmatprep.subr.mxu0 0.0
  %2777 = vmatpush1.msra.mxu0 %v2652
  %2778 = vmatprep.subr.mxu0 0.0
  %2779 = vmatpush1.msra.mxu0 %v2653
  %2780 = vmatprep.subr.mxu0 0.0
  %2781 = vmatpush1.msra.mxu0 %v2654
  %2782 = vmatprep.subr.mxu0 0.0
  %2783 = vmatpush1.msra.mxu0 %v2655
  %2784 = vmatprep.subr.mxu0 0.0
  %2785 = vmatpush1.msra.mxu0 0.0
  %2786 = vmatprep.subr.mxu0 0.0
  %2787 = vmatpush1.msra.mxu0 0.0
  %2788 = vmatprep.subr.mxu0 0.0
  %2789 = vmatpush1.msra.mxu0 0.0
  %2790 = vmatprep.subr.mxu0 0.0
  %2791 = vmatpush1.msra.mxu0 0.0
  %2792 = vmatprep.subr.mxu0 0.0
  %2793 = vmatpush1.msra.mxu0 0.0
  %2794 = vmatprep.subr.mxu0 0.0
  %2795 = vmatpush1.msra.mxu0 0.0
  %2796 = vmatprep.subr.mxu0 0.0
  %2797 = vmatpush1.msra.mxu0 0.0
  %2798 = vmatprep.subr.mxu0 0.0
  %2799 = vmatpush1.msra.mxu0 0.0
  %2800 = vmatprep.subr.mxu0 0.0
  %2801 = vmatpush1.msra.mxu0 0.0
  %2802 = vmatprep.subr.mxu0 0.0
  %2803 = vmatpush1.msra.mxu0 0.0
  %2804 = vmatprep.subr.mxu0 0.0
  %2805 = vmatpush1.msra.mxu0 0.0
  %2806 = vmatprep.subr.mxu0 0.0
  %2807 = vmatpush1.msra.mxu0 0.0
  %2808 = vmatprep.subr.mxu0 0.0
  %2809 = vmatpush1.msra.mxu0 0.0
  %2810 = vmatprep.subr.mxu0 0.0
  %2811 = vmatpush1.msra.mxu0 0.0
  %2812 = vmatprep.subr.mxu0 0.0
  %2813 = vmatpush1.msra.mxu0 0.0
  %2814 = vmatprep.subr.mxu0 0.0
  %2815 = vmatpush1.msra.mxu0 0.0
  %2816 = vmatprep.subr.mxu0 0.0
  %2817 = vmatpush1.msra.mxu0 0.0
  %2818 = vmatprep.subr.mxu0 0.0
  %2819 = vmatpush1.msra.mxu0 0.0
  %2820 = vmatprep.subr.mxu0 0.0
  %2821 = vmatpush1.msra.mxu0 0.0
  %2822 = vmatprep.subr.mxu0 0.0
  %2823 = vmatpush1.msra.mxu0 0.0
  %2824 = vmatprep.subr.mxu0 0.0
  %2825 = vmatpush1.msra.mxu0 0.0
  %2826 = vmatprep.subr.mxu0 0.0
  %2827 = vmatpush1.msra.mxu0 0.0
  %2828 = vmatprep.subr.mxu0 0.0
  %2829 = vmatpush1.msra.mxu0 0.0
  %2830 = vmatprep.subr.mxu0 0.0
  %2831 = vmatpush1.msra.mxu0 0.0
  %2832 = vmatprep.subr.mxu0 0.0
  %2833 = vmatpush1.msra.mxu0 0.0
  %2834 = vmatprep.subr.mxu0 0.0
  %2835 = vmatpush1.msra.mxu0 0.0
  %2836 = vmatprep.subr.mxu0 0.0
  %2837 = vmatpush1.msra.mxu0 0.0
  %2838 = vmatprep.subr.mxu0 0.0
  %2839 = vmatpush1.msra.mxu0 0.0
  %2840 = vmatprep.mubr.f32.mxu0 0.0
  %2841 = vmatmul.mubr.f32.gmra.mrb[0].mxu0 %v1699
  %v2842 = vpop.f32.mrb[0].mxu0
  %v2843 = vadd.f32 %v2733, %v2842
  %v2844 = vpop.f32.mrb[0].mxu0
  %2845 = vmatprep.mubr.f32.mxu0 0.0
  %2846 = vmatmul.mubr.f32.gmra.mrb[0].mxu0 %v1836
  %v2847 = vpop.f32.mrb[0].mxu0
  %v2848 = vadd.f32 %v2738, %v2847
  %v2849 = vpop.f32.mrb[0].mxu0
  %2850 = vmatprep.mubr.f32.mxu0 0.0
  %2851 = vmatmul.mubr.f32.gmra.mrb[0].mxu0 %v1973
  %v2852 = vpop.f32.mrb[0].mxu0
  %v2853 = vadd.f32 %v2743, %v2852
  %v2854 = vpop.f32.mrb[0].mxu0
  %2855 = vmatprep.mubr.f32.mxu0 0.0
  %2856 = vmatmul.mubr.f32.gmra.mrb[0].mxu0 %v2110
  %v2857 = vpop.f32.mrb[0].mxu0
  %v2858 = vadd.f32 %v2748, %v2857
  %v2859 = vpop.f32.mrb[0].mxu0
  %2860 = vmatprep.mubr.f32.mxu0 0.0
  %2861 = vmatmul.mubr.f32.gmra.mrb[0].mxu0 %v2247
  %v2862 = vpop.f32.mrb[0].mxu0
  %v2863 = vadd.f32 %v2753, %v2862
  %v2864 = vpop.f32.mrb[0].mxu0
  %2865 = vmatprep.mubr.f32.mxu0 0.0
  %2866 = vmatmul.mubr.f32.gmra.mrb[0].mxu0 %v2384
  %v2867 = vpop.f32.mrb[0].mxu0
  %v2868 = vadd.f32 %v2758, %v2867
  %v2869 = vpop.f32.mrb[0].mxu0
  %2870 = vmatprep.mubr.f32.mxu0 0.0
  %2871 = vmatmul.mubr.f32.gmra.mrb[0].mxu0 %v2521
  %v2872 = vpop.f32.mrb[0].mxu0
  %v2873 = vadd.f32 %v2763, %v2872
  %v2874 = vpop.f32.mrb[0].mxu0
  %2875 = vmatprep.mubr.f32.mxu0 0.0
  %2876 = vmatmul.mubr.f32.gmra.mrb[0].mxu0 %v2774
  %v2877 = vpop.f32.mrb[0].mxu0
  %v2878 = vadd.f32 %v2768, %v2877
  %v2879 = vpop.f32.mrb[0].mxu0
  %2880 = vdwg.mxu0
  %v2881 = vadd.f32 %v2843, %v2660
  %v2882 = vadd.f32 %v2848, %v2660
  %v2883 = vadd.f32 %v2853, %v2660
  %v2884 = vadd.f32 %v2858, %v2660
  %v2885 = vadd.f32 %v2863, %v2660
  %v2886 = vadd.f32 %v2868, %v2660
  %v2887 = vadd.f32 %v2873, %v2660
  %v2888 = vadd.f32 %v2878, %v2660
  %v2889 = vsub.f32 0.0, %v2881
  %v2890 = vsub.f32 0.0, %v2882
  %v2891 = vsub.f32 0.0, %v2883
  %v2892 = vsub.f32 0.0, %v2884
  %v2893 = vsub.f32 0.0, %v2885
  %v2894 = vsub.f32 0.0, %v2886
  %v2895 = vsub.f32 0.0, %v2887
  %v2896 = vsub.f32 0.0, %v2888
  %v2897 = vmul.f32 %v2889, 1.442695
  %v2898 = vpow.pop %v2897
  %v2899 = vmul.f32 %v2890, 1.442695
  %v2900 = vpow.pop %v2899
  %v2901 = vmul.f32 %v2891, 1.442695
  %v2902 = vpow.pop %v2901
  %v2903 = vmul.f32 %v2892, 1.442695
  %v2904 = vpow.pop %v2903
  %v2905 = vmul.f32 %v2893, 1.442695
  %v2906 = vpow.pop %v2905
  %v2907 = vmul.f32 %v2894, 1.442695
  %v2908 = vpow.pop %v2907
  %v2909 = vmul.f32 %v2895, 1.442695
  %v2910 = vpow.pop %v2909
  %v2911 = vmul.f32 %v2896, 1.442695
  %v2912 = vpow.pop %v2911
  %v2913 = vadd.f32 %v2898, 1.0
  %v2914 = vadd.f32 %v2900, 1.0
  %v2915 = vadd.f32 %v2902, 1.0
  %v2916 = vadd.f32 %v2904, 1.0
  %v2917 = vadd.f32 %v2906, 1.0
  %v2918 = vadd.f32 %v2908, 1.0
  %v2919 = vadd.f32 %v2910, 1.0
  %v2920 = vadd.f32 %v2912, 1.0
  %v2921 = vrcp.pop %v2913
  %v2922 = vmul.f32 1.0, %v2921
  %v2923 = vrcp.pop %v2914
  %v2924 = vmul.f32 1.0, %v2923
  %v2925 = vrcp.pop %v2915
  %v2926 = vmul.f32 1.0, %v2925
  %v2927 = vrcp.pop %v2916
  %v2928 = vmul.f32 1.0, %v2927
  %v2929 = vrcp.pop %v2917
  %v2930 = vmul.f32 1.0, %v2929
  %v2931 = vrcp.pop %v2918
  %v2932 = vmul.f32 1.0, %v2931
  %v2933 = vrcp.pop %v2919
  %v2934 = vmul.f32 1.0, %v2933
  %v2935 = vrcp.pop %v2920
  %v2936 = vmul.f32 1.0, %v2935
  %2937 = vst [vmem:[%s2] sm:$0xff] %v2922
  %2938 = vst [vmem:[%s2 + $0x8] sm:$0xff] %v2924
  %2939 = vst [vmem:[%s2 + $0x10] sm:$0xff] %v2926
  %2940 = vst [vmem:[%s2 + $0x18] sm:$0xff] %v2928
  %2941 = vst [vmem:[%s2 + $0x20] sm:$0xff] %v2930
  %2942 = vst [vmem:[%s2 + $0x28] sm:$0xff] %v2932
  %2943 = vst [vmem:[%s2 + $0x30] sm:$0xff] %v2934
  %2944 = vst [vmem:[%s2 + $0x38] sm:$0xff] %v2936
  // Predicated region
  $region10: #{_lambda_.1} parent=0 // pred_check
    _
  $region11: #{_lambda_.1} parent=0 // pred_check_branch
    %2946 = sbr.rel (0) target = $region13
  $region12: #{_lambda_.1} parent=0 // pred_region
    _
  $region13: #{_lambda_.1} parent=0 // pred_fallthru
    _
  // Predicated region
  $region14: #{_lambda_.1} parent=0 // pred_check
    _
  $region15: #{_lambda_.1} parent=0 // pred_check_branch
    %2948 = sbr.rel (0) target = $region17
  $region16: #{_lambda_.1} parent=0 // pred_region
    _
  $region17: #{_lambda_.1} parent=0 // pred_fallthru
    _

</llo_original>
